<compile_context>
chip_gen: v7x
topology: tpu7x:2x2x1
jax: 0.10.0
libtpu: 0.0.40
codegen_flags: <defaults>
</compile_context>

<pallas_src>
import jax
import jax.numpy as jnp
from jax import lax
from jax.experimental import pallas as pl
from jax.experimental.pallas import tpu as pltpu


def _round_up(v, m):
    return ((v + m - 1) // m) * m


def _make_kernel(Cin, Cout, D, WP, PPL, STRIP, LCPY):
    taps = [(kd, kh, kw) for kd in range(3) for kh in range(3) for kw in range(3)]

    def kernel(x_ref, w_ref, b_ref, o_ref, rhs_ref):
        # x_ref:   (1, D+2, Cin, PPL)  bf16  all padded depth planes of one batch el.
        # w_ref:   (Cout, 27*Cin)      bf16  resident weights (constant index_map)
        # b_ref:   (Cout, 1)           f32
        # o_ref:   (1, Cout, D*STRIP)  f32   channels-first, lane-dense output slab
        # rhs_ref: (27*Cin, D*STRIP)   bf16  scratch: tap-stacked im2col RHS
        rhs_ref[...] = jnp.zeros_like(rhs_ref)

        # Scatter the 27 shifted tap views of every depth plane into the stacked
        # contraction-dim RHS: rows = tap*Cin + cin, cols = d*STRIP + lane.
        for t, (kd, kh, kw) in enumerate(taps):
            s = kh * WP + kw                       # static in-plane lane shift
            r0 = t * Cin
            for d in range(D):
                c0 = d * STRIP
                rhs_ref[r0:r0 + Cin, c0:c0 + LCPY] = x_ref[0, d + kd, :, s:s + LCPY]

        # One wide MXU matmul per batch element, f32 accumulation.
        acc = jnp.dot(w_ref[...], rhs_ref[...], preferred_element_type=jnp.float32)
        o_ref[0] = jnp.maximum(acc + b_ref[...], 0.0).astype(o_ref.dtype)

    return kernel


def _cr_forward(x_ncdhw, weight, bias):
    """Conv3d(in->out, kernel=3, stride=1, padding=1) + ReLU.

    x: (N, Cin, D, H, W)   weight: (Cout, Cin, 3, 3, 3)   bias: (Cout,)
    returns (N, Cout, D, H, W) float32
    """
    N, Cin, D, H, W = x_ncdhw.shape
    Cout = weight.shape[0]
    HP, WP = H + 2, W + 2
    s_max = 2 * WP + 2                          # largest in-plane tap shift
    PPL = _round_up(HP * WP + 2, 128)           # tight padded plane length
    STRIP = _round_up(H * WP, 128)              # output lanes per depth plane
    LCPY = min(STRIP, PPL - s_max)              # copied lanes per (tap, depth)
    assert LCPY >= H * WP                       # copies cover every valid output lane
    LTOT = D * STRIP
    K = 27 * Cin

    # ---- layout glue only (no HBM im2col): NCDHW -> (N, D+2, Cin, PPL) bf16 planes
    xt = jnp.transpose(x_ncdhw, (0, 2, 1, 3, 4))                 # (N, D, Cin, H, W)
    xp = jnp.pad(xt, ((0, 0), (1, 1), (0, 0), (1, 1), (1, 1)))   # pad D, H, W by 1
    xf = xp.reshape(N, D + 2, Cin, HP * WP)
    xf = jnp.pad(xf, ((0, 0), (0, 0), (0, 0), (0, PPL - HP * WP)))
    xf = xf.astype(jnp.bfloat16)

    # weight (Cout, Cin, kd, kh, kw) -> (Cout, 27*Cin), column = tap*Cin + cin
    w_flat = jnp.transpose(weight, (0, 2, 3, 4, 1)).reshape(Cout, K).astype(jnp.bfloat16)
    b_col = bias.reshape(Cout, 1).astype(jnp.float32)

    kernel = _make_kernel(Cin, Cout, D, WP, PPL, STRIP, LCPY)

    flops = 2 * N * Cout * K * LTOT
    bytes_accessed = (xf.size * 2 + w_flat.size * 2 + b_col.size * 4
                      + N * Cout * LTOT * 4)

    out = pl.pallas_call(
        kernel,
        out_shape=jax.ShapeDtypeStruct((N, Cout, LTOT), jnp.float32),
        grid_spec=pltpu.PrefetchScalarGridSpec(
            num_scalar_prefetch=0,
            grid=(N,),                                       # one batch element / step
            in_specs=[
                pl.BlockSpec((1, D + 2, Cin, PPL), lambda n: (n, 0, 0, 0)),
                pl.BlockSpec((Cout, K), lambda n: (0, 0)),   # weights resident
                pl.BlockSpec((Cout, 1), lambda n: (0, 0)),   # bias resident
            ],
            out_specs=pl.BlockSpec((1, Cout, LTOT), lambda n: (n, 0, 0)),
            scratch_shapes=[pltpu.VMEM((K, LTOT), jnp.bfloat16)],
        ),
        compiler_params=pltpu.CompilerParams(
            dimension_semantics=("parallel",),
        ),
        cost_estimate=pl.CostEstimate(
            flops=flops, transcendentals=0, bytes_accessed=bytes_accessed),
    )(xf, w_flat, b_col)

    # channels-first already: only drop lane padding + padded plane columns
    out = out.reshape(N, Cout, D, STRIP)[..., :H * WP]
    out = out.reshape(N, Cout, D, H, WP)[..., :W]
    return out                                               # (N, Cout, D, H, W)


cr_forward = jax.jit(_cr_forward)


if __name__ == "__main__":
    key = jax.random.PRNGKey(0)
    k_x, k_w, k_b = jax.random.split(key, 3)

    # small shapes consistent with the module: batch=2, in=4, out=8, 8^3 volume
    N, Cin, Cout, D, H, W = 2, 4, 8, 8, 8, 8
    x = jax.random.normal(k_x, (N, Cin, D, H, W), dtype=jnp.float32)

    # deterministic PyTorch-style uniform init with fan-in bound
    fan_in = Cin * 3 * 3 * 3
    bound = 1.0 / (fan_in ** 0.5)
    weight = jax.random.uniform(k_w, (Cout, Cin, 3, 3, 3), jnp.float32, -bound, bound)
    bias = jax.random.uniform(k_b, (Cout,), jnp.float32, -bound, bound)

    out = jax.block_until_ready(cr_forward(x, weight, bias))

    # reference 1: identical bf16-quantized inputs, f32 accumulation (tight check)
    xq = x.astype(jnp.bfloat16).astype(jnp.float32)
    wq = weight.astype(jnp.bfloat16).astype(jnp.float32)
    ref_q = lax.conv_general_dilated(
        xq, wq, window_strides=(1, 1, 1),
        padding=((1, 1), (1, 1), (1, 1)),
        dimension_numbers=("NCDHW", "OIDHW", "NCDHW"))
    ref_q = jnp.maximum(ref_q + bias.reshape(1, Cout, 1, 1, 1), 0.0)

    # reference 2: full f32 conv (loose check; kernel feeds the MXU bf16 inputs)
    ref_f = lax.conv_general_dilated(
        x, weight, window_strides=(1, 1, 1),
        padding=((1, 1), (1, 1), (1, 1)),
        dimension_numbers=("NCDHW", "OIDHW", "NCDHW"))
    ref_f = jnp.maximum(ref_f + bias.reshape(1, Cout, 1, 1, 1), 0.0)

    assert out.shape == (N, Cout, D, H, W)
    assert out.dtype == jnp.float32
    assert jnp.allclose(out, ref_q, atol=2e-3, rtol=2e-3), \
        float(jnp.max(jnp.abs(out - ref_q)))
    assert jnp.allclose(out, ref_f, atol=5e-2, rtol=5e-2), \
        float(jnp.max(jnp.abs(out - ref_f)))

    print("KERNEL_OK")
</pallas_src>

<mosaic_0001>
module attributes {stable_mosaic.version = 11 : i64} {
  func.func @kernel(%arg0: i32, %arg1: memref<1x10x4x128xbf16, #tpu.memory_space<vmem>>, %arg2: memref<8x108xbf16, #tpu.memory_space<vmem>>, %arg3: memref<8x1xf32, #tpu.memory_space<vmem>>, %arg4: memref<1x8x1024xf32, #tpu.memory_space<vmem>>, %arg5: memref<108x1024xbf16, #tpu.memory_space<vmem>>) attributes {dimension_semantics = [#tpu.dimension_semantics<parallel>], iteration_bounds = array<i64: 2>, scalar_prefetch = 0 : i64, scratch_operands = 1 : i64, tpu.core_type = #tpu.core_type<tc>, window_params = [{transform_indices = @transform_0, window_bounds = array<i64: 1, 10, 4, 128>}, {pipeline_mode = #tpu.pipeline_mode<synchronous>, transform_indices = @transform_1, window_bounds = array<i64: 8, 108>}, {pipeline_mode = #tpu.pipeline_mode<synchronous>, transform_indices = @transform_2, window_bounds = array<i64: 8, 1>}, {transform_indices = @transform_3, window_bounds = array<i64: 1, 8, 1024>}]} {
    %cst = arith.constant 0.000000e+00 : bf16
    %0 = vector.broadcast %cst : bf16 to vector<108x1024xbf16>
    %c0 = arith.constant 0 : index
    %c0_0 = arith.constant 0 : index
    %1 = vector.load %arg5[%c0, %c0_0] : memref<108x1024xbf16, #tpu.memory_space<vmem>>, vector<108x1024xbf16>
    tpu.vector_store %arg5[%c0, %c0_0], %0 {strides = array<i32>} : memref<108x1024xbf16, #tpu.memory_space<vmem>>, vector<108x1024xbf16>,
    %c0_1 = arith.constant 0 : index
    %c0_2 = arith.constant 0 : index
    %c0_3 = arith.constant 0 : index
    %c0_4 = arith.constant 0 : index
    %2 = vector.load %arg1[%c0_1, %c0_2, %c0_3, %c0_4] : memref<1x10x4x128xbf16, #tpu.memory_space<vmem>>, vector<1x1x4x106xbf16>
    %3 = vector.shape_cast %2 : vector<1x1x4x106xbf16> to vector<4x106xbf16>
    %c0_5 = arith.constant 0 : index
    %c0_6 = arith.constant 0 : index
    %4 = vector.load %arg5[%c0_5, %c0_6] : memref<108x1024xbf16, #tpu.memory_space<vmem>>, vector<4x106xbf16>
    tpu.vector_store %arg5[%c0_5, %c0_6], %3 {strides = array<i32>} : memref<108x1024xbf16, #tpu.memory_space<vmem>>, vector<4x106xbf16>,
    %c0_7 = arith.constant 0 : index
    %c1 = arith.constant 1 : index
    %c0_8 = arith.constant 0 : index
    %c0_9 = arith.constant 0 : index
    %5 = vector.load %arg1[%c0_7, %c1, %c0_8, %c0_9] : memref<1x10x4x128xbf16, #tpu.memory_space<vmem>>, vector<1x1x4x106xbf16>
    %6 = vector.shape_cast %5 : vector<1x1x4x106xbf16> to vector<4x106xbf16>
    %c0_10 = arith.constant 0 : index
    %c128 = arith.constant 128 : index
    %7 = vector.load %arg5[%c0_10, %c128] : memref<108x1024xbf16, #tpu.memory_space<vmem>>, vector<4x106xbf16>
    tpu.vector_store %arg5[%c0_10, %c128], %6 {strides = array<i32>} : memref<108x1024xbf16, #tpu.memory_space<vmem>>, vector<4x106xbf16>,
    %c0_11 = arith.constant 0 : index
    %c2 = arith.constant 2 : index
    %c0_12 = arith.constant 0 : index
    %c0_13 = arith.constant 0 : index
    %8 = vector.load %arg1[%c0_11, %c2, %c0_12, %c0_13] : memref<1x10x4x128xbf16, #tpu.memory_space<vmem>>, vector<1x1x4x106xbf16>
    %9 = vector.shape_cast %8 : vector<1x1x4x106xbf16> to vector<4x106xbf16>
    %c0_14 = arith.constant 0 : index
    %c256 = arith.constant 256 : index
    %10 = vector.load %arg5[%c0_14, %c256] : memref<108x1024xbf16, #tpu.memory_space<vmem>>, vector<4x106xbf16>
    tpu.vector_store %arg5[%c0_14, %c256], %9 {strides = array<i32>} : memref<108x1024xbf16, #tpu.memory_space<vmem>>, vector<4x106xbf16>,
    %c0_15 = arith.constant 0 : index
    %c3 = arith.constant 3 : index
    %c0_16 = arith.constant 0 : index
    %c0_17 = arith.constant 0 : index
    %11 = vector.load %arg1[%c0_15, %c3, %c0_16, %c0_17] : memref<1x10x4x128xbf16, #tpu.memory_space<vmem>>, vector<1x1x4x106xbf16>
    %12 = vector.shape_cast %11 : vector<1x1x4x106xbf16> to vector<4x106xbf16>
    %c0_18 = arith.constant 0 : index
    %c384 = arith.constant 384 : index
    %13 = vector.load %arg5[%c0_18, %c384] : memref<108x1024xbf16, #tpu.memory_space<vmem>>, vector<4x106xbf16>
    tpu.vector_store %arg5[%c0_18, %c384], %12 {strides = array<i32>} : memref<108x1024xbf16, #tpu.memory_space<vmem>>, vector<4x106xbf16>,
    %c0_19 = arith.constant 0 : index
    %c4 = arith.constant 4 : index
    %c0_20 = arith.constant 0 : index
    %c0_21 = arith.constant 0 : index
    %14 = vector.load %arg1[%c0_19, %c4, %c0_20, %c0_21] : memref<1x10x4x128xbf16, #tpu.memory_space<vmem>>, vector<1x1x4x106xbf16>
    %15 = vector.shape_cast %14 : vector<1x1x4x106xbf16> to vector<4x106xbf16>
    %c0_22 = arith.constant 0 : index
    %c512 = arith.constant 512 : index
    %16 = vector.load %arg5[%c0_22, %c512] : memref<108x1024xbf16, #tpu.memory_space<vmem>>, vector<4x106xbf16>
    tpu.vector_store %arg5[%c0_22, %c512], %15 {strides = array<i32>} : memref<108x1024xbf16, #tpu.memory_space<vmem>>, vector<4x106xbf16>,
    %c0_23 = arith.constant 0 : index
    %c5 = arith.constant 5 : index
    %c0_24 = arith.constant 0 : index
    %c0_25 = arith.constant 0 : index
    %17 = vector.load %arg1[%c0_23, %c5, %c0_24, %c0_25] : memref<1x10x4x128xbf16, #tpu.memory_space<vmem>>, vector<1x1x4x106xbf16>
    %18 = vector.shape_cast %17 : vector<1x1x4x106xbf16> to vector<4x106xbf16>
    %c0_26 = arith.constant 0 : index
    %c640 = arith.constant 640 : index
    %19 = vector.load %arg5[%c0_26, %c640] : memref<108x1024xbf16, #tpu.memory_space<vmem>>, vector<4x106xbf16>
    tpu.vector_store %arg5[%c0_26, %c640], %18 {strides = array<i32>} : memref<108x1024xbf16, #tpu.memory_space<vmem>>, vector<4x106xbf16>,
    %c0_27 = arith.constant 0 : index
    %c6 = arith.constant 6 : index
    %c0_28 = arith.constant 0 : index
    %c0_29 = arith.constant 0 : index
    %20 = vector.load %arg1[%c0_27, %c6, %c0_28, %c0_29] : memref<1x10x4x128xbf16, #tpu.memory_space<vmem>>, vector<1x1x4x106xbf16>
    %21 = vector.shape_cast %20 : vector<1x1x4x106xbf16> to vector<4x106xbf16>
    %c0_30 = arith.constant 0 : index
    %c768 = arith.constant 768 : index
    %22 = vector.load %arg5[%c0_30, %c768] : memref<108x1024xbf16, #tpu.memory_space<vmem>>, vector<4x106xbf16>
    tpu.vector_store %arg5[%c0_30, %c768], %21 {strides = array<i32>} : memref<108x1024xbf16, #tpu.memory_space<vmem>>, vector<4x106xbf16>,
    %c0_31 = arith.constant 0 : index
    %c7 = arith.constant 7 : index
    %c0_32 = arith.constant 0 : index
    %c0_33 = arith.constant 0 : index
    %23 = vector.load %arg1[%c0_31, %c7, %c0_32, %c0_33] : memref<1x10x4x128xbf16, #tpu.memory_space<vmem>>, vector<1x1x4x106xbf16>
    %24 = vector.shape_cast %23 : vector<1x1x4x106xbf16> to vector<4x106xbf16>
    %c0_34 = arith.constant 0 : index
    %c896 = arith.constant 896 : index
    %25 = vector.load %arg5[%c0_34, %c896] : memref<108x1024xbf16, #tpu.memory_space<vmem>>, vector<4x106xbf16>
    tpu.vector_store %arg5[%c0_34, %c896], %24 {strides = array<i32>} : memref<108x1024xbf16, #tpu.memory_space<vmem>>, vector<4x106xbf16>,
    %c0_35 = arith.constant 0 : index
    %c0_36 = arith.constant 0 : index
    %c0_37 = arith.constant 0 : index
    %c1_38 = arith.constant 1 : index
    %26 = vector.load %arg1[%c0_35, %c0_36, %c0_37, %c1_38] : memref<1x10x4x128xbf16, #tpu.memory_space<vmem>>, vector<1x1x4x106xbf16>
    %27 = vector.shape_cast %26 : vector<1x1x4x106xbf16> to vector<4x106xbf16>
    %c4_39 = arith.constant 4 : index
    %c0_40 = arith.constant 0 : index
    %28 = vector.load %arg5[%c4_39, %c0_40] : memref<108x1024xbf16, #tpu.memory_space<vmem>>, vector<4x106xbf16>
    tpu.vector_store %arg5[%c4_39, %c0_40], %27 {strides = array<i32>} : memref<108x1024xbf16, #tpu.memory_space<vmem>>, vector<4x106xbf16>,
    %c0_41 = arith.constant 0 : index
    %c1_42 = arith.constant 1 : index
    %c0_43 = arith.constant 0 : index
    %c1_44 = arith.constant 1 : index
    %29 = vector.load %arg1[%c0_41, %c1_42, %c0_43, %c1_44] : memref<1x10x4x128xbf16, #tpu.memory_space<vmem>>, vector<1x1x4x106xbf16>
    %30 = vector.shape_cast %29 : vector<1x1x4x106xbf16> to vector<4x106xbf16>
    %c4_45 = arith.constant 4 : index
    %c128_46 = arith.constant 128 : index
    %31 = vector.load %arg5[%c4_45, %c128_46] : memref<108x1024xbf16, #tpu.memory_space<vmem>>, vector<4x106xbf16>
    tpu.vector_store %arg5[%c4_45, %c128_46], %30 {strides = array<i32>} : memref<108x1024xbf16, #tpu.memory_space<vmem>>, vector<4x106xbf16>,
    %c0_47 = arith.constant 0 : index
    %c2_48 = arith.constant 2 : index
    %c0_49 = arith.constant 0 : index
    %c1_50 = arith.constant 1 : index
    %32 = vector.load %arg1[%c0_47, %c2_48, %c0_49, %c1_50] : memref<1x10x4x128xbf16, #tpu.memory_space<vmem>>, vector<1x1x4x106xbf16>
    %33 = vector.shape_cast %32 : vector<1x1x4x106xbf16> to vector<4x106xbf16>
    %c4_51 = arith.constant 4 : index
    %c256_52 = arith.constant 256 : index
    %34 = vector.load %arg5[%c4_51, %c256_52] : memref<108x1024xbf16, #tpu.memory_space<vmem>>, vector<4x106xbf16>
    tpu.vector_store %arg5[%c4_51, %c256_52], %33 {strides = array<i32>} : memref<108x1024xbf16, #tpu.memory_space<vmem>>, vector<4x106xbf16>,
    %c0_53 = arith.constant 0 : index
    %c3_54 = arith.constant 3 : index
    %c0_55 = arith.constant 0 : index
    %c1_56 = arith.constant 1 : index
    %35 = vector.load %arg1[%c0_53, %c3_54, %c0_55, %c1_56] : memref<1x10x4x128xbf16, #tpu.memory_space<vmem>>, vector<1x1x4x106xbf16>
    %36 = vector.shape_cast %35 : vector<1x1x4x106xbf16> to vector<4x106xbf16>
    %c4_57 = arith.constant 4 : index
    %c384_58 = arith.constant 384 : index
    %37 = vector.load %arg5[%c4_57, %c384_58] : memref<108x1024xbf16, #tpu.memory_space<vmem>>, vector<4x106xbf16>
    tpu.vector_store %arg5[%c4_57, %c384_58], %36 {strides = array<i32>} : memref<108x1024xbf16, #tpu.memory_space<vmem>>, vector<4x106xbf16>,
    %c0_59 = arith.constant 0 : index
    %c4_60 = arith.constant 4 : index
    %c0_61 = arith.constant 0 : index
    %c1_62 = arith.constant 1 : index
    %38 = vector.load %arg1[%c0_59, %c4_60, %c0_61, %c1_62] : memref<1x10x4x128xbf16, #tpu.memory_space<vmem>>, vector<1x1x4x106xbf16>
    %39 = vector.shape_cast %38 : vector<1x1x4x106xbf16> to vector<4x106xbf16>
    %c4_63 = arith.constant 4 : index
    %c512_64 = arith.constant 512 : index
    %40 = vector.load %arg5[%c4_63, %c512_64] : memref<108x1024xbf16, #tpu.memory_space<vmem>>, vector<4x106xbf16>
    tpu.vector_store %arg5[%c4_63, %c512_64], %39 {strides = array<i32>} : memref<108x1024xbf16, #tpu.memory_space<vmem>>, vector<4x106xbf16>,
    %c0_65 = arith.constant 0 : index
    %c5_66 = arith.constant 5 : index
    %c0_67 = arith.constant 0 : index
    %c1_68 = arith.constant 1 : index
    %41 = vector.load %arg1[%c0_65, %c5_66, %c0_67, %c1_68] : memref<1x10x4x128xbf16, #tpu.memory_space<vmem>>, vector<1x1x4x106xbf16>
    %42 = vector.shape_cast %41 : vector<1x1x4x106xbf16> to vector<4x106xbf16>
    %c4_69 = arith.constant 4 : index
    %c640_70 = arith.constant 640 : index
    %43 = vector.load %arg5[%c4_69, %c640_70] : memref<108x1024xbf16, #tpu.memory_space<vmem>>, vector<4x106xbf16>
    tpu.vector_store %arg5[%c4_69, %c640_70], %42 {strides = array<i32>} : memref<108x1024xbf16, #tpu.memory_space<vmem>>, vector<4x106xbf16>,
    %c0_71 = arith.constant 0 : index
    %c6_72 = arith.constant 6 : index
    %c0_73 = arith.constant 0 : index
    %c1_74 = arith.constant 1 : index
    %44 = vector.load %arg1[%c0_71, %c6_72, %c0_73, %c1_74] : memref<1x10x4x128xbf16, #tpu.memory_space<vmem>>, vector<1x1x4x106xbf16>
    %45 = vector.shape_cast %44 : vector<1x1x4x106xbf16> to vector<4x106xbf16>
    %c4_75 = arith.constant 4 : index
    %c768_76 = arith.constant 768 : index
    %46 = vector.load %arg5[%c4_75, %c768_76] : memref<108x1024xbf16, #tpu.memory_space<vmem>>, vector<4x106xbf16>
    tpu.vector_store %arg5[%c4_75, %c768_76], %45 {strides = array<i32>} : memref<108x1024xbf16, #tpu.memory_space<vmem>>, vector<4x106xbf16>,
    %c0_77 = arith.constant 0 : index
    %c7_78 = arith.constant 7 : index
    %c0_79 = arith.constant 0 : index
    %c1_80 = arith.constant 1 : index
    %47 = vector.load %arg1[%c0_77, %c7_78, %c0_79, %c1_80] : memref<1x10x4x128xbf16, #tpu.memory_space<vmem>>, vector<1x1x4x106xbf16>
    %48 = vector.shape_cast %47 : vector<1x1x4x106xbf16> to vector<4x106xbf16>
    %c4_81 = arith.constant 4 : index
    %c896_82 = arith.constant 896 : index
    %49 = vector.load %arg5[%c4_81, %c896_82] : memref<108x1024xbf16, #tpu.memory_space<vmem>>, vector<4x106xbf16>
    tpu.vector_store %arg5[%c4_81, %c896_82], %48 {strides = array<i32>} : memref<108x1024xbf16, #tpu.memory_space<vmem>>, vector<4x106xbf16>,
    %c0_83 = arith.constant 0 : index
    %c0_84 = arith.constant 0 : index
    %c0_85 = arith.constant 0 : index
    %c2_86 = arith.constant 2 : index
    %50 = vector.load %arg1[%c0_83, %c0_84, %c0_85, %c2_86] : memref<1x10x4x128xbf16, #tpu.memory_space<vmem>>, vector<1x1x4x106xbf16>
    %51 = vector.shape_cast %50 : vector<1x1x4x106xbf16> to vector<4x106xbf16>
    %c8 = arith.constant 8 : index
    %c0_87 = arith.constant 0 : index
    %52 = vector.load %arg5[%c8, %c0_87] : memref<108x1024xbf16, #tpu.memory_space<vmem>>, vector<4x106xbf16>
    tpu.vector_store %arg5[%c8, %c0_87], %51 {strides = array<i32>} : memref<108x1024xbf16, #tpu.memory_space<vmem>>, vector<4x106xbf16>,
    %c0_88 = arith.constant 0 : index
    %c1_89 = arith.constant 1 : index
    %c0_90 = arith.constant 0 : index
    %c2_91 = arith.constant 2 : index
    %53 = vector.load %arg1[%c0_88, %c1_89, %c0_90, %c2_91] : memref<1x10x4x128xbf16, #tpu.memory_space<vmem>>, vector<1x1x4x106xbf16>
    %54 = vector.shape_cast %53 : vector<1x1x4x106xbf16> to vector<4x106xbf16>
    %c8_92 = arith.constant 8 : index
    %c128_93 = arith.constant 128 : index
    %55 = vector.load %arg5[%c8_92, %c128_93] : memref<108x1024xbf16, #tpu.memory_space<vmem>>, vector<4x106xbf16>
    tpu.vector_store %arg5[%c8_92, %c128_93], %54 {strides = array<i32>} : memref<108x1024xbf16, #tpu.memory_space<vmem>>, vector<4x106xbf16>,
    %c0_94 = arith.constant 0 : index
    %c2_95 = arith.constant 2 : index
    %c0_96 = arith.constant 0 : index
    %c2_97 = arith.constant 2 : index
    %56 = vector.load %arg1[%c0_94, %c2_95, %c0_96, %c2_97] : memref<1x10x4x128xbf16, #tpu.memory_space<vmem>>, vector<1x1x4x106xbf16>
    %57 = vector.shape_cast %56 : vector<1x1x4x106xbf16> to vector<4x106xbf16>
    %c8_98 = arith.constant 8 : index
    %c256_99 = arith.constant 256 : index
    %58 = vector.load %arg5[%c8_98, %c256_99] : memref<108x1024xbf16, #tpu.memory_space<vmem>>, vector<4x106xbf16>
    tpu.vector_store %arg5[%c8_98, %c256_99], %57 {strides = array<i32>} : memref<108x1024xbf16, #tpu.memory_space<vmem>>, vector<4x106xbf16>,
    %c0_100 = arith.constant 0 : index
    %c3_101 = arith.constant 3 : index
    %c0_102 = arith.constant 0 : index
    %c2_103 = arith.constant 2 : index
    %59 = vector.load %arg1[%c0_100, %c3_101, %c0_102, %c2_103] : memref<1x10x4x128xbf16, #tpu.memory_space<vmem>>, vector<1x1x4x106xbf16>
    %60 = vector.shape_cast %59 : vector<1x1x4x106xbf16> to vector<4x106xbf16>
    %c8_104 = arith.constant 8 : index
    %c384_105 = arith.constant 384 : index
    %61 = vector.load %arg5[%c8_104, %c384_105] : memref<108x1024xbf16, #tpu.memory_space<vmem>>, vector<4x106xbf16>
    tpu.vector_store %arg5[%c8_104, %c384_105], %60 {strides = array<i32>} : memref<108x1024xbf16, #tpu.memory_space<vmem>>, vector<4x106xbf16>,
    %c0_106 = arith.constant 0 : index
    %c4_107 = arith.constant 4 : index
    %c0_108 = arith.constant 0 : index
    %c2_109 = arith.constant 2 : index
    %62 = vector.load %arg1[%c0_106, %c4_107, %c0_108, %c2_109] : memref<1x10x4x128xbf16, #tpu.memory_space<vmem>>, vector<1x1x4x106xbf16>
    %63 = vector.shape_cast %62 : vector<1x1x4x106xbf16> to vector<4x106xbf16>
    %c8_110 = arith.constant 8 : index
    %c512_111 = arith.constant 512 : index
    %64 = vector.load %arg5[%c8_110, %c512_111] : memref<108x1024xbf16, #tpu.memory_space<vmem>>, vector<4x106xbf16>
    tpu.vector_store %arg5[%c8_110, %c512_111], %63 {strides = array<i32>} : memref<108x1024xbf16, #tpu.memory_space<vmem>>, vector<4x106xbf16>,
    %c0_112 = arith.constant 0 : index
    %c5_113 = arith.constant 5 : index
    %c0_114 = arith.constant 0 : index
    %c2_115 = arith.constant 2 : index
    %65 = vector.load %arg1[%c0_112, %c5_113, %c0_114, %c2_115] : memref<1x10x4x128xbf16, #tpu.memory_space<vmem>>, vector<1x1x4x106xbf16>
    %66 = vector.shape_cast %65 : vector<1x1x4x106xbf16> to vector<4x106xbf16>
    %c8_116 = arith.constant 8 : index
    %c640_117 = arith.constant 640 : index
    %67 = vector.load %arg5[%c8_116, %c640_117] : memref<108x1024xbf16, #tpu.memory_space<vmem>>, vector<4x106xbf16>
    tpu.vector_store %arg5[%c8_116, %c640_117], %66 {strides = array<i32>} : memref<108x1024xbf16, #tpu.memory_space<vmem>>, vector<4x106xbf16>,
    %c0_118 = arith.constant 0 : index
    %c6_119 = arith.constant 6 : index
    %c0_120 = arith.constant 0 : index
    %c2_121 = arith.constant 2 : index
    %68 = vector.load %arg1[%c0_118, %c6_119, %c0_120, %c2_121] : memref<1x10x4x128xbf16, #tpu.memory_space<vmem>>, vector<1x1x4x106xbf16>
    %69 = vector.shape_cast %68 : vector<1x1x4x106xbf16> to vector<4x106xbf16>
    %c8_122 = arith.constant 8 : index
    %c768_123 = arith.constant 768 : index
    %70 = vector.load %arg5[%c8_122, %c768_123] : memref<108x1024xbf16, #tpu.memory_space<vmem>>, vector<4x106xbf16>
    tpu.vector_store %arg5[%c8_122, %c768_123], %69 {strides = array<i32>} : memref<108x1024xbf16, #tpu.memory_space<vmem>>, vector<4x106xbf16>,
    %c0_124 = arith.constant 0 : index
    %c7_125 = arith.constant 7 : index
    %c0_126 = arith.constant 0 : index
    %c2_127 = arith.constant 2 : index
    %71 = vector.load %arg1[%c0_124, %c7_125, %c0_126, %c2_127] : memref<1x10x4x128xbf16, #tpu.memory_space<vmem>>, vector<1x1x4x106xbf16>
    %72 = vector.shape_cast %71 : vector<1x1x4x106xbf16> to vector<4x106xbf16>
    %c8_128 = arith.constant 8 : index
    %c896_129 = arith.constant 896 : index
    %73 = vector.load %arg5[%c8_128, %c896_129] : memref<108x1024xbf16, #tpu.memory_space<vmem>>, vector<4x106xbf16>
    tpu.vector_store %arg5[%c8_128, %c896_129], %72 {strides = array<i32>} : memref<108x1024xbf16, #tpu.memory_space<vmem>>, vector<4x106xbf16>,
    %c0_130 = arith.constant 0 : index
    %c0_131 = arith.constant 0 : index
    %c0_132 = arith.constant 0 : index
    %c10 = arith.constant 10 : index
    %74 = vector.load %arg1[%c0_130, %c0_131, %c0_132, %c10] : memref<1x10x4x128xbf16, #tpu.memory_space<vmem>>, vector<1x1x4x106xbf16>
    %75 = vector.shape_cast %74 : vector<1x1x4x106xbf16> to vector<4x106xbf16>
    %c12 = arith.constant 12 : index
    %c0_133 = arith.constant 0 : index
    %76 = vector.load %arg5[%c12, %c0_133] : memref<108x1024xbf16, #tpu.memory_space<vmem>>, vector<4x106xbf16>
    tpu.vector_store %arg5[%c12, %c0_133], %75 {strides = array<i32>} : memref<108x1024xbf16, #tpu.memory_space<vmem>>, vector<4x106xbf16>,
    %c0_134 = arith.constant 0 : index
    %c1_135 = arith.constant 1 : index
    %c0_136 = arith.constant 0 : index
    %c10_137 = arith.constant 10 : index
    %77 = vector.load %arg1[%c0_134, %c1_135, %c0_136, %c10_137] : memref<1x10x4x128xbf16, #tpu.memory_space<vmem>>, vector<1x1x4x106xbf16>
    %78 = vector.shape_cast %77 : vector<1x1x4x106xbf16> to vector<4x106xbf16>
    %c12_138 = arith.constant 12 : index
    %c128_139 = arith.constant 128 : index
    %79 = vector.load %arg5[%c12_138, %c128_139] : memref<108x1024xbf16, #tpu.memory_space<vmem>>, vector<4x106xbf16>
    tpu.vector_store %arg5[%c12_138, %c128_139], %78 {strides = array<i32>} : memref<108x1024xbf16, #tpu.memory_space<vmem>>, vector<4x106xbf16>,
    %c0_140 = arith.constant 0 : index
    %c2_141 = arith.constant 2 : index
    %c0_142 = arith.constant 0 : index
    %c10_143 = arith.constant 10 : index
    %80 = vector.load %arg1[%c0_140, %c2_141, %c0_142, %c10_143] : memref<1x10x4x128xbf16, #tpu.memory_space<vmem>>, vector<1x1x4x106xbf16>
    %81 = vector.shape_cast %80 : vector<1x1x4x106xbf16> to vector<4x106xbf16>
    %c12_144 = arith.constant 12 : index
    %c256_145 = arith.constant 256 : index
    %82 = vector.load %arg5[%c12_144, %c256_145] : memref<108x1024xbf16, #tpu.memory_space<vmem>>, vector<4x106xbf16>
    tpu.vector_store %arg5[%c12_144, %c256_145], %81 {strides = array<i32>} : memref<108x1024xbf16, #tpu.memory_space<vmem>>, vector<4x106xbf16>,
    %c0_146 = arith.constant 0 : index
    %c3_147 = arith.constant 3 : index
    %c0_148 = arith.constant 0 : index
    %c10_149 = arith.constant 10 : index
    %83 = vector.load %arg1[%c0_146, %c3_147, %c0_148, %c10_149] : memref<1x10x4x128xbf16, #tpu.memory_space<vmem>>, vector<1x1x4x106xbf16>
    %84 = vector.shape_cast %83 : vector<1x1x4x106xbf16> to vector<4x106xbf16>
    %c12_150 = arith.constant 12 : index
    %c384_151 = arith.constant 384 : index
    %85 = vector.load %arg5[%c12_150, %c384_151] : memref<108x1024xbf16, #tpu.memory_space<vmem>>, vector<4x106xbf16>
    tpu.vector_store %arg5[%c12_150, %c384_151], %84 {strides = array<i32>} : memref<108x1024xbf16, #tpu.memory_space<vmem>>, vector<4x106xbf16>,
    %c0_152 = arith.constant 0 : index
    %c4_153 = arith.constant 4 : index
    %c0_154 = arith.constant 0 : index
    %c10_155 = arith.constant 10 : index
    %86 = vector.load %arg1[%c0_152, %c4_153, %c0_154, %c10_155] : memref<1x10x4x128xbf16, #tpu.memory_space<vmem>>, vector<1x1x4x106xbf16>
    %87 = vector.shape_cast %86 : vector<1x1x4x106xbf16> to vector<4x106xbf16>
    %c12_156 = arith.constant 12 : index
    %c512_157 = arith.constant 512 : index
    %88 = vector.load %arg5[%c12_156, %c512_157] : memref<108x1024xbf16, #tpu.memory_space<vmem>>, vector<4x106xbf16>
    tpu.vector_store %arg5[%c12_156, %c512_157], %87 {strides = array<i32>} : memref<108x1024xbf16, #tpu.memory_space<vmem>>, vector<4x106xbf16>,
    %c0_158 = arith.constant 0 : index
    %c5_159 = arith.constant 5 : index
    %c0_160 = arith.constant 0 : index
    %c10_161 = arith.constant 10 : index
    %89 = vector.load %arg1[%c0_158, %c5_159, %c0_160, %c10_161] : memref<1x10x4x128xbf16, #tpu.memory_space<vmem>>, vector<1x1x4x106xbf16>
    %90 = vector.shape_cast %89 : vector<1x1x4x106xbf16> to vector<4x106xbf16>
    %c12_162 = arith.constant 12 : index
    %c640_163 = arith.constant 640 : index
    %91 = vector.load %arg5[%c12_162, %c640_163] : memref<108x1024xbf16, #tpu.memory_space<vmem>>, vector<4x106xbf16>
    tpu.vector_store %arg5[%c12_162, %c640_163], %90 {strides = array<i32>} : memref<108x1024xbf16, #tpu.memory_space<vmem>>, vector<4x106xbf16>,
    %c0_164 = arith.constant 0 : index
    %c6_165 = arith.constant 6 : index
    %c0_166 = arith.constant 0 : index
    %c10_167 = arith.constant 10 : index
    %92 = vector.load %arg1[%c0_164, %c6_165, %c0_166, %c10_167] : memref<1x10x4x128xbf16, #tpu.memory_space<vmem>>, vector<1x1x4x106xbf16>
    %93 = vector.shape_cast %92 : vector<1x1x4x106xbf16> to vector<4x106xbf16>
    %c12_168 = arith.constant 12 : index
    %c768_169 = arith.constant 768 : index
    %94 = vector.load %arg5[%c12_168, %c768_169] : memref<108x1024xbf16, #tpu.memory_space<vmem>>, vector<4x106xbf16>
    tpu.vector_store %arg5[%c12_168, %c768_169], %93 {strides = array<i32>} : memref<108x1024xbf16, #tpu.memory_space<vmem>>, vector<4x106xbf16>,
    %c0_170 = arith.constant 0 : index
    %c7_171 = arith.constant 7 : index
    %c0_172 = arith.constant 0 : index
    %c10_173 = arith.constant 10 : index
    %95 = vector.load %arg1[%c0_170, %c7_171, %c0_172, %c10_173] : memref<1x10x4x128xbf16, #tpu.memory_space<vmem>>, vector<1x1x4x106xbf16>
    %96 = vector.shape_cast %95 : vector<1x1x4x106xbf16> to vector<4x106xbf16>
    %c12_174 = arith.constant 12 : index
    %c896_175 = arith.constant 896 : index
    %97 = vector.load %arg5[%c12_174, %c896_175] : memref<108x1024xbf16, #tpu.memory_space<vmem>>, vector<4x106xbf16>
    tpu.vector_store %arg5[%c12_174, %c896_175], %96 {strides = array<i32>} : memref<108x1024xbf16, #tpu.memory_space<vmem>>, vector<4x106xbf16>,
    %c0_176 = arith.constant 0 : index
    %c0_177 = arith.constant 0 : index
    %c0_178 = arith.constant 0 : index
    %c11 = arith.constant 11 : index
    %98 = vector.load %arg1[%c0_176, %c0_177, %c0_178, %c11] : memref<1x10x4x128xbf16, #tpu.memory_space<vmem>>, vector<1x1x4x106xbf16>
    %99 = vector.shape_cast %98 : vector<1x1x4x106xbf16> to vector<4x106xbf16>
    %c16 = arith.constant 16 : index
    %c0_179 = arith.constant 0 : index
    %100 = vector.load %arg5[%c16, %c0_179] : memref<108x1024xbf16, #tpu.memory_space<vmem>>, vector<4x106xbf16>
    tpu.vector_store %arg5[%c16, %c0_179], %99 {strides = array<i32>} : memref<108x1024xbf16, #tpu.memory_space<vmem>>, vector<4x106xbf16>,
    %c0_180 = arith.constant 0 : index
    %c1_181 = arith.constant 1 : index
    %c0_182 = arith.constant 0 : index
    %c11_183 = arith.constant 11 : index
    %101 = vector.load %arg1[%c0_180, %c1_181, %c0_182, %c11_183] : memref<1x10x4x128xbf16, #tpu.memory_space<vmem>>, vector<1x1x4x106xbf16>
    %102 = vector.shape_cast %101 : vector<1x1x4x106xbf16> to vector<4x106xbf16>
    %c16_184 = arith.constant 16 : index
    %c128_185 = arith.constant 128 : index
    %103 = vector.load %arg5[%c16_184, %c128_185] : memref<108x1024xbf16, #tpu.memory_space<vmem>>, vector<4x106xbf16>
    tpu.vector_store %arg5[%c16_184, %c128_185], %102 {strides = array<i32>} : memref<108x1024xbf16, #tpu.memory_space<vmem>>, vector<4x106xbf16>,
    %c0_186 = arith.constant 0 : index
    %c2_187 = arith.constant 2 : index
    %c0_188 = arith.constant 0 : index
    %c11_189 = arith.constant 11 : index
    %104 = vector.load %arg1[%c0_186, %c2_187, %c0_188, %c11_189] : memref<1x10x4x128xbf16, #tpu.memory_space<vmem>>, vector<1x1x4x106xbf16>
    %105 = vector.shape_cast %104 : vector<1x1x4x106xbf16> to vector<4x106xbf16>
    %c16_190 = arith.constant 16 : index
    %c256_191 = arith.constant 256 : index
    %106 = vector.load %arg5[%c16_190, %c256_191] : memref<108x1024xbf16, #tpu.memory_space<vmem>>, vector<4x106xbf16>
    tpu.vector_store %arg5[%c16_190, %c256_191], %105 {strides = array<i32>} : memref<108x1024xbf16, #tpu.memory_space<vmem>>, vector<4x106xbf16>,
    %c0_192 = arith.constant 0 : index
    %c3_193 = arith.constant 3 : index
    %c0_194 = arith.constant 0 : index
    %c11_195 = arith.constant 11 : index
    %107 = vector.load %arg1[%c0_192, %c3_193, %c0_194, %c11_195] : memref<1x10x4x128xbf16, #tpu.memory_space<vmem>>, vector<1x1x4x106xbf16>
    %108 = vector.shape_cast %107 : vector<1x1x4x106xbf16> to vector<4x106xbf16>
    %c16_196 = arith.constant 16 : index
    %c384_197 = arith.constant 384 : index
    %109 = vector.load %arg5[%c16_196, %c384_197] : memref<108x1024xbf16, #tpu.memory_space<vmem>>, vector<4x106xbf16>
    tpu.vector_store %arg5[%c16_196, %c384_197], %108 {strides = array<i32>} : memref<108x1024xbf16, #tpu.memory_space<vmem>>, vector<4x106xbf16>,
    %c0_198 = arith.constant 0 : index
    %c4_199 = arith.constant 4 : index
    %c0_200 = arith.constant 0 : index
    %c11_201 = arith.constant 11 : index
    %110 = vector.load %arg1[%c0_198, %c4_199, %c0_200, %c11_201] : memref<1x10x4x128xbf16, #tpu.memory_space<vmem>>, vector<1x1x4x106xbf16>
    %111 = vector.shape_cast %110 : vector<1x1x4x106xbf16> to vector<4x106xbf16>
    %c16_202 = arith.constant 16 : index
    %c512_203 = arith.constant 512 : index
    %112 = vector.load %arg5[%c16_202, %c512_203] : memref<108x1024xbf16, #tpu.memory_space<vmem>>, vector<4x106xbf16>
    tpu.vector_store %arg5[%c16_202, %c512_203], %111 {strides = array<i32>} : memref<108x1024xbf16, #tpu.memory_space<vmem>>, vector<4x106xbf16>,
    %c0_204 = arith.constant 0 : index
    %c5_205 = arith.constant 5 : index
    %c0_206 = arith.constant 0 : index
    %c11_207 = arith.constant 11 : index
    %113 = vector.load %arg1[%c0_204, %c5_205, %c0_206, %c11_207] : memref<1x10x4x128xbf16, #tpu.memory_space<vmem>>, vector<1x1x4x106xbf16>
    %114 = vector.shape_cast %113 : vector<1x1x4x106xbf16> to vector<4x106xbf16>
    %c16_208 = arith.constant 16 : index
    %c640_209 = arith.constant 640 : index
    %115 = vector.load %arg5[%c16_208, %c640_209] : memref<108x1024xbf16, #tpu.memory_space<vmem>>, vector<4x106xbf16>
    tpu.vector_store %arg5[%c16_208, %c640_209], %114 {strides = array<i32>} : memref<108x1024xbf16, #tpu.memory_space<vmem>>, vector<4x106xbf16>,
    %c0_210 = arith.constant 0 : index
    %c6_211 = arith.constant 6 : index
    %c0_212 = arith.constant 0 : index
    %c11_213 = arith.constant 11 : index
    %116 = vector.load %arg1[%c0_210, %c6_211, %c0_212, %c11_213] : memref<1x10x4x128xbf16, #tpu.memory_space<vmem>>, vector<1x1x4x106xbf16>
    %117 = vector.shape_cast %116 : vector<1x1x4x106xbf16> to vector<4x106xbf16>
    %c16_214 = arith.constant 16 : index
    %c768_215 = arith.constant 768 : index
    %118 = vector.load %arg5[%c16_214, %c768_215] : memref<108x1024xbf16, #tpu.memory_space<vmem>>, vector<4x106xbf16>
    tpu.vector_store %arg5[%c16_214, %c768_215], %117 {strides = array<i32>} : memref<108x1024xbf16, #tpu.memory_space<vmem>>, vector<4x106xbf16>,
    %c0_216 = arith.constant 0 : index
    %c7_217 = arith.constant 7 : index
    %c0_218 = arith.constant 0 : index
    %c11_219 = arith.constant 11 : index
    %119 = vector.load %arg1[%c0_216, %c7_217, %c0_218, %c11_219] : memref<1x10x4x128xbf16, #tpu.memory_space<vmem>>, vector<1x1x4x106xbf16>
    %120 = vector.shape_cast %119 : vector<1x1x4x106xbf16> to vector<4x106xbf16>
    %c16_220 = arith.constant 16 : index
    %c896_221 = arith.constant 896 : index
    %121 = vector.load %arg5[%c16_220, %c896_221] : memref<108x1024xbf16, #tpu.memory_space<vmem>>, vector<4x106xbf16>
    tpu.vector_store %arg5[%c16_220, %c896_221], %120 {strides = array<i32>} : memref<108x1024xbf16, #tpu.memory_space<vmem>>, vector<4x106xbf16>,
    %c0_222 = arith.constant 0 : index
    %c0_223 = arith.constant 0 : index
    %c0_224 = arith.constant 0 : index
    %c12_225 = arith.constant 12 : index
    %122 = vector.load %arg1[%c0_222, %c0_223, %c0_224, %c12_225] : memref<1x10x4x128xbf16, #tpu.memory_space<vmem>>, vector<1x1x4x106xbf16>
    %123 = vector.shape_cast %122 : vector<1x1x4x106xbf16> to vector<4x106xbf16>
    %c20 = arith.constant 20 : index
    %c0_226 = arith.constant 0 : index
    %124 = vector.load %arg5[%c20, %c0_226] : memref<108x1024xbf16, #tpu.memory_space<vmem>>, vector<4x106xbf16>
    tpu.vector_store %arg5[%c20, %c0_226], %123 {strides = array<i32>} : memref<108x1024xbf16, #tpu.memory_space<vmem>>, vector<4x106xbf16>,
    %c0_227 = arith.constant 0 : index
    %c1_228 = arith.constant 1 : index
    %c0_229 = arith.constant 0 : index
    %c12_230 = arith.constant 12 : index
    %125 = vector.load %arg1[%c0_227, %c1_228, %c0_229, %c12_230] : memref<1x10x4x128xbf16, #tpu.memory_space<vmem>>, vector<1x1x4x106xbf16>
    %126 = vector.shape_cast %125 : vector<1x1x4x106xbf16> to vector<4x106xbf16>
    %c20_231 = arith.constant 20 : index
    %c128_232 = arith.constant 128 : index
    %127 = vector.load %arg5[%c20_231, %c128_232] : memref<108x1024xbf16, #tpu.memory_space<vmem>>, vector<4x106xbf16>
    tpu.vector_store %arg5[%c20_231, %c128_232], %126 {strides = array<i32>} : memref<108x1024xbf16, #tpu.memory_space<vmem>>, vector<4x106xbf16>,
    %c0_233 = arith.constant 0 : index
    %c2_234 = arith.constant 2 : index
    %c0_235 = arith.constant 0 : index
    %c12_236 = arith.constant 12 : index
    %128 = vector.load %arg1[%c0_233, %c2_234, %c0_235, %c12_236] : memref<1x10x4x128xbf16, #tpu.memory_space<vmem>>, vector<1x1x4x106xbf16>
    %129 = vector.shape_cast %128 : vector<1x1x4x106xbf16> to vector<4x106xbf16>
    %c20_237 = arith.constant 20 : index
    %c256_238 = arith.constant 256 : index
    %130 = vector.load %arg5[%c20_237, %c256_238] : memref<108x1024xbf16, #tpu.memory_space<vmem>>, vector<4x106xbf16>
    tpu.vector_store %arg5[%c20_237, %c256_238], %129 {strides = array<i32>} : memref<108x1024xbf16, #tpu.memory_space<vmem>>, vector<4x106xbf16>,
    %c0_239 = arith.constant 0 : index
    %c3_240 = arith.constant 3 : index
    %c0_241 = arith.constant 0 : index
    %c12_242 = arith.constant 12 : index
    %131 = vector.load %arg1[%c0_239, %c3_240, %c0_241, %c12_242] : memref<1x10x4x128xbf16, #tpu.memory_space<vmem>>, vector<1x1x4x106xbf16>
    %132 = vector.shape_cast %131 : vector<1x1x4x106xbf16> to vector<4x106xbf16>
    %c20_243 = arith.constant 20 : index
    %c384_244 = arith.constant 384 : index
    %133 = vector.load %arg5[%c20_243, %c384_244] : memref<108x1024xbf16, #tpu.memory_space<vmem>>, vector<4x106xbf16>
    tpu.vector_store %arg5[%c20_243, %c384_244], %132 {strides = array<i32>} : memref<108x1024xbf16, #tpu.memory_space<vmem>>, vector<4x106xbf16>,
    %c0_245 = arith.constant 0 : index
    %c4_246 = arith.constant 4 : index
    %c0_247 = arith.constant 0 : index
    %c12_248 = arith.constant 12 : index
    %134 = vector.load %arg1[%c0_245, %c4_246, %c0_247, %c12_248] : memref<1x10x4x128xbf16, #tpu.memory_space<vmem>>, vector<1x1x4x106xbf16>
    %135 = vector.shape_cast %134 : vector<1x1x4x106xbf16> to vector<4x106xbf16>
    %c20_249 = arith.constant 20 : index
    %c512_250 = arith.constant 512 : index
    %136 = vector.load %arg5[%c20_249, %c512_250] : memref<108x1024xbf16, #tpu.memory_space<vmem>>, vector<4x106xbf16>
    tpu.vector_store %arg5[%c20_249, %c512_250], %135 {strides = array<i32>} : memref<108x1024xbf16, #tpu.memory_space<vmem>>, vector<4x106xbf16>,
    %c0_251 = arith.constant 0 : index
    %c5_252 = arith.constant 5 : index
    %c0_253 = arith.constant 0 : index
    %c12_254 = arith.constant 12 : index
    %137 = vector.load %arg1[%c0_251, %c5_252, %c0_253, %c12_254] : memref<1x10x4x128xbf16, #tpu.memory_space<vmem>>, vector<1x1x4x106xbf16>
    %138 = vector.shape_cast %137 : vector<1x1x4x106xbf16> to vector<4x106xbf16>
    %c20_255 = arith.constant 20 : index
    %c640_256 = arith.constant 640 : index
    %139 = vector.load %arg5[%c20_255, %c640_256] : memref<108x1024xbf16, #tpu.memory_space<vmem>>, vector<4x106xbf16>
    tpu.vector_store %arg5[%c20_255, %c640_256], %138 {strides = array<i32>} : memref<108x1024xbf16, #tpu.memory_space<vmem>>, vector<4x106xbf16>,
    %c0_257 = arith.constant 0 : index
    %c6_258 = arith.constant 6 : index
    %c0_259 = arith.constant 0 : index
    %c12_260 = arith.constant 12 : index
    %140 = vector.load %arg1[%c0_257, %c6_258, %c0_259, %c12_260] : memref<1x10x4x128xbf16, #tpu.memory_space<vmem>>, vector<1x1x4x106xbf16>
    %141 = vector.shape_cast %140 : vector<1x1x4x106xbf16> to vector<4x106xbf16>
    %c20_261 = arith.constant 20 : index
    %c768_262 = arith.constant 768 : index
    %142 = vector.load %arg5[%c20_261, %c768_262] : memref<108x1024xbf16, #tpu.memory_space<vmem>>, vector<4x106xbf16>
    tpu.vector_store %arg5[%c20_261, %c768_262], %141 {strides = array<i32>} : memref<108x1024xbf16, #tpu.memory_space<vmem>>, vector<4x106xbf16>,
    %c0_263 = arith.constant 0 : index
    %c7_264 = arith.constant 7 : index
    %c0_265 = arith.constant 0 : index
    %c12_266 = arith.constant 12 : index
    %143 = vector.load %arg1[%c0_263, %c7_264, %c0_265, %c12_266] : memref<1x10x4x128xbf16, #tpu.memory_space<vmem>>, vector<1x1x4x106xbf16>
    %144 = vector.shape_cast %143 : vector<1x1x4x106xbf16> to vector<4x106xbf16>
    %c20_267 = arith.constant 20 : index
    %c896_268 = arith.constant 896 : index
    %145 = vector.load %arg5[%c20_267, %c896_268] : memref<108x1024xbf16, #tpu.memory_space<vmem>>, vector<4x106xbf16>
    tpu.vector_store %arg5[%c20_267, %c896_268], %144 {strides = array<i32>} : memref<108x1024xbf16, #tpu.memory_space<vmem>>, vector<4x106xbf16>,
    %c0_269 = arith.constant 0 : index
    %c0_270 = arith.constant 0 : index
    %c0_271 = arith.constant 0 : index
    %c20_272 = arith.constant 20 : index
    %146 = vector.load %arg1[%c0_269, %c0_270, %c0_271, %c20_272] : memref<1x10x4x128xbf16, #tpu.memory_space<vmem>>, vector<1x1x4x106xbf16>
    %147 = vector.shape_cast %146 : vector<1x1x4x106xbf16> to vector<4x106xbf16>
    %c24 = arith.constant 24 : index
    %c0_273 = arith.constant 0 : index
    %148 = vector.load %arg5[%c24, %c0_273] : memref<108x1024xbf16, #tpu.memory_space<vmem>>, vector<4x106xbf16>
    tpu.vector_store %arg5[%c24, %c0_273], %147 {strides = array<i32>} : memref<108x1024xbf16, #tpu.memory_space<vmem>>, vector<4x106xbf16>,
    %c0_274 = arith.constant 0 : index
    %c1_275 = arith.constant 1 : index
    %c0_276 = arith.constant 0 : index
    %c20_277 = arith.constant 20 : index
    %149 = vector.load %arg1[%c0_274, %c1_275, %c0_276, %c20_277] : memref<1x10x4x128xbf16, #tpu.memory_space<vmem>>, vector<1x1x4x106xbf16>
    %150 = vector.shape_cast %149 : vector<1x1x4x106xbf16> to vector<4x106xbf16>
    %c24_278 = arith.constant 24 : index
    %c128_279 = arith.constant 128 : index
    %151 = vector.load %arg5[%c24_278, %c128_279] : memref<108x1024xbf16, #tpu.memory_space<vmem>>, vector<4x106xbf16>
    tpu.vector_store %arg5[%c24_278, %c128_279], %150 {strides = array<i32>} : memref<108x1024xbf16, #tpu.memory_space<vmem>>, vector<4x106xbf16>,
    %c0_280 = arith.constant 0 : index
    %c2_281 = arith.constant 2 : index
    %c0_282 = arith.constant 0 : index
    %c20_283 = arith.constant 20 : index
    %152 = vector.load %arg1[%c0_280, %c2_281, %c0_282, %c20_283] : memref<1x10x4x128xbf16, #tpu.memory_space<vmem>>, vector<1x1x4x106xbf16>
    %153 = vector.shape_cast %152 : vector<1x1x4x106xbf16> to vector<4x106xbf16>
    %c24_284 = arith.constant 24 : index
    %c256_285 = arith.constant 256 : index
    %154 = vector.load %arg5[%c24_284, %c256_285] : memref<108x1024xbf16, #tpu.memory_space<vmem>>, vector<4x106xbf16>
    tpu.vector_store %arg5[%c24_284, %c256_285], %153 {strides = array<i32>} : memref<108x1024xbf16, #tpu.memory_space<vmem>>, vector<4x106xbf16>,
    %c0_286 = arith.constant 0 : index
    %c3_287 = arith.constant 3 : index
    %c0_288 = arith.constant 0 : index
    %c20_289 = arith.constant 20 : index
    %155 = vector.load %arg1[%c0_286, %c3_287, %c0_288, %c20_289] : memref<1x10x4x128xbf16, #tpu.memory_space<vmem>>, vector<1x1x4x106xbf16>
    %156 = vector.shape_cast %155 : vector<1x1x4x106xbf16> to vector<4x106xbf16>
    %c24_290 = arith.constant 24 : index
    %c384_291 = arith.constant 384 : index
    %157 = vector.load %arg5[%c24_290, %c384_291] : memref<108x1024xbf16, #tpu.memory_space<vmem>>, vector<4x106xbf16>
    tpu.vector_store %arg5[%c24_290, %c384_291], %156 {strides = array<i32>} : memref<108x1024xbf16, #tpu.memory_space<vmem>>, vector<4x106xbf16>,
    %c0_292 = arith.constant 0 : index
    %c4_293 = arith.constant 4 : index
    %c0_294 = arith.constant 0 : index
    %c20_295 = arith.constant 20 : index
    %158 = vector.load %arg1[%c0_292, %c4_293, %c0_294, %c20_295] : memref<1x10x4x128xbf16, #tpu.memory_space<vmem>>, vector<1x1x4x106xbf16>
    %159 = vector.shape_cast %158 : vector<1x1x4x106xbf16> to vector<4x106xbf16>
    %c24_296 = arith.constant 24 : index
    %c512_297 = arith.constant 512 : index
    %160 = vector.load %arg5[%c24_296, %c512_297] : memref<108x1024xbf16, #tpu.memory_space<vmem>>, vector<4x106xbf16>
    tpu.vector_store %arg5[%c24_296, %c512_297], %159 {strides = array<i32>} : memref<108x1024xbf16, #tpu.memory_space<vmem>>, vector<4x106xbf16>,
    %c0_298 = arith.constant 0 : index
    %c5_299 = arith.constant 5 : index
    %c0_300 = arith.constant 0 : index
    %c20_301 = arith.constant 20 : index
    %161 = vector.load %arg1[%c0_298, %c5_299, %c0_300, %c20_301] : memref<1x10x4x128xbf16, #tpu.memory_space<vmem>>, vector<1x1x4x106xbf16>
    %162 = vector.shape_cast %161 : vector<1x1x4x106xbf16> to vector<4x106xbf16>
    %c24_302 = arith.constant 24 : index
    %c640_303 = arith.constant 640 : index
    %163 = vector.load %arg5[%c24_302, %c640_303] : memref<108x1024xbf16, #tpu.memory_space<vmem>>, vector<4x106xbf16>
    tpu.vector_store %arg5[%c24_302, %c640_303], %162 {strides = array<i32>} : memref<108x1024xbf16, #tpu.memory_space<vmem>>, vector<4x106xbf16>,
    %c0_304 = arith.constant 0 : index
    %c6_305 = arith.constant 6 : index
    %c0_306 = arith.constant 0 : index
    %c20_307 = arith.constant 20 : index
    %164 = vector.load %arg1[%c0_304, %c6_305, %c0_306, %c20_307] : memref<1x10x4x128xbf16, #tpu.memory_space<vmem>>, vector<1x1x4x106xbf16>
    %165 = vector.shape_cast %164 : vector<1x1x4x106xbf16> to vector<4x106xbf16>
    %c24_308 = arith.constant 24 : index
    %c768_309 = arith.constant 768 : index
    %166 = vector.load %arg5[%c24_308, %c768_309] : memref<108x1024xbf16, #tpu.memory_space<vmem>>, vector<4x106xbf16>
    tpu.vector_store %arg5[%c24_308, %c768_309], %165 {strides = array<i32>} : memref<108x1024xbf16, #tpu.memory_space<vmem>>, vector<4x106xbf16>,
    %c0_310 = arith.constant 0 : index
    %c7_311 = arith.constant 7 : index
    %c0_312 = arith.constant 0 : index
    %c20_313 = arith.constant 20 : index
    %167 = vector.load %arg1[%c0_310, %c7_311, %c0_312, %c20_313] : memref<1x10x4x128xbf16, #tpu.memory_space<vmem>>, vector<1x1x4x106xbf16>
    %168 = vector.shape_cast %167 : vector<1x1x4x106xbf16> to vector<4x106xbf16>
    %c24_314 = arith.constant 24 : index
    %c896_315 = arith.constant 896 : index
    %169 = vector.load %arg5[%c24_314, %c896_315] : memref<108x1024xbf16, #tpu.memory_space<vmem>>, vector<4x106xbf16>
    tpu.vector_store %arg5[%c24_314, %c896_315], %168 {strides = array<i32>} : memref<108x1024xbf16, #tpu.memory_space<vmem>>, vector<4x106xbf16>,
    %c0_316 = arith.constant 0 : index
    %c0_317 = arith.constant 0 : index
    %c0_318 = arith.constant 0 : index
    %c21 = arith.constant 21 : index
    %170 = vector.load %arg1[%c0_316, %c0_317, %c0_318, %c21] : memref<1x10x4x128xbf16, #tpu.memory_space<vmem>>, vector<1x1x4x106xbf16>
    %171 = vector.shape_cast %170 : vector<1x1x4x106xbf16> to vector<4x106xbf16>
    %c28 = arith.constant 28 : index
    %c0_319 = arith.constant 0 : index
    %172 = vector.load %arg5[%c28, %c0_319] : memref<108x1024xbf16, #tpu.memory_space<vmem>>, vector<4x106xbf16>
    tpu.vector_store %arg5[%c28, %c0_319], %171 {strides = array<i32>} : memref<108x1024xbf16, #tpu.memory_space<vmem>>, vector<4x106xbf16>,
    %c0_320 = arith.constant 0 : index
    %c1_321 = arith.constant 1 : index
    %c0_322 = arith.constant 0 : index
    %c21_323 = arith.constant 21 : index
    %173 = vector.load %arg1[%c0_320, %c1_321, %c0_322, %c21_323] : memref<1x10x4x128xbf16, #tpu.memory_space<vmem>>, vector<1x1x4x106xbf16>
    %174 = vector.shape_cast %173 : vector<1x1x4x106xbf16> to vector<4x106xbf16>
    %c28_324 = arith.constant 28 : index
    %c128_325 = arith.constant 128 : index
    %175 = vector.load %arg5[%c28_324, %c128_325] : memref<108x1024xbf16, #tpu.memory_space<vmem>>, vector<4x106xbf16>
    tpu.vector_store %arg5[%c28_324, %c128_325], %174 {strides = array<i32>} : memref<108x1024xbf16, #tpu.memory_space<vmem>>, vector<4x106xbf16>,
    %c0_326 = arith.constant 0 : index
    %c2_327 = arith.constant 2 : index
    %c0_328 = arith.constant 0 : index
    %c21_329 = arith.constant 21 : index
    %176 = vector.load %arg1[%c0_326, %c2_327, %c0_328, %c21_329] : memref<1x10x4x128xbf16, #tpu.memory_space<vmem>>, vector<1x1x4x106xbf16>
    %177 = vector.shape_cast %176 : vector<1x1x4x106xbf16> to vector<4x106xbf16>
    %c28_330 = arith.constant 28 : index
    %c256_331 = arith.constant 256 : index
    %178 = vector.load %arg5[%c28_330, %c256_331] : memref<108x1024xbf16, #tpu.memory_space<vmem>>, vector<4x106xbf16>
    tpu.vector_store %arg5[%c28_330, %c256_331], %177 {strides = array<i32>} : memref<108x1024xbf16, #tpu.memory_space<vmem>>, vector<4x106xbf16>,
    %c0_332 = arith.constant 0 : index
    %c3_333 = arith.constant 3 : index
    %c0_334 = arith.constant 0 : index
    %c21_335 = arith.constant 21 : index
    %179 = vector.load %arg1[%c0_332, %c3_333, %c0_334, %c21_335] : memref<1x10x4x128xbf16, #tpu.memory_space<vmem>>, vector<1x1x4x106xbf16>
    %180 = vector.shape_cast %179 : vector<1x1x4x106xbf16> to vector<4x106xbf16>
    %c28_336 = arith.constant 28 : index
    %c384_337 = arith.constant 384 : index
    %181 = vector.load %arg5[%c28_336, %c384_337] : memref<108x1024xbf16, #tpu.memory_space<vmem>>, vector<4x106xbf16>
    tpu.vector_store %arg5[%c28_336, %c384_337], %180 {strides = array<i32>} : memref<108x1024xbf16, #tpu.memory_space<vmem>>, vector<4x106xbf16>,
    %c0_338 = arith.constant 0 : index
    %c4_339 = arith.constant 4 : index
    %c0_340 = arith.constant 0 : index
    %c21_341 = arith.constant 21 : index
    %182 = vector.load %arg1[%c0_338, %c4_339, %c0_340, %c21_341] : memref<1x10x4x128xbf16, #tpu.memory_space<vmem>>, vector<1x1x4x106xbf16>
    %183 = vector.shape_cast %182 : vector<1x1x4x106xbf16> to vector<4x106xbf16>
    %c28_342 = arith.constant 28 : index
    %c512_343 = arith.constant 512 : index
    %184 = vector.load %arg5[%c28_342, %c512_343] : memref<108x1024xbf16, #tpu.memory_space<vmem>>, vector<4x106xbf16>
    tpu.vector_store %arg5[%c28_342, %c512_343], %183 {strides = array<i32>} : memref<108x1024xbf16, #tpu.memory_space<vmem>>, vector<4x106xbf16>,
    %c0_344 = arith.constant 0 : index
    %c5_345 = arith.constant 5 : index
    %c0_346 = arith.constant 0 : index
    %c21_347 = arith.constant 21 : index
    %185 = vector.load %arg1[%c0_344, %c5_345, %c0_346, %c21_347] : memref<1x10x4x128xbf16, #tpu.memory_space<vmem>>, vector<1x1x4x106xbf16>
    %186 = vector.shape_cast %185 : vector<1x1x4x106xbf16> to vector<4x106xbf16>
    %c28_348 = arith.constant 28 : index
    %c640_349 = arith.constant 640 : index
    %187 = vector.load %arg5[%c28_348, %c640_349] : memref<108x1024xbf16, #tpu.memory_space<vmem>>, vector<4x106xbf16>
    tpu.vector_store %arg5[%c28_348, %c640_349], %186 {strides = array<i32>} : memref<108x1024xbf16, #tpu.memory_space<vmem>>, vector<4x106xbf16>,
    %c0_350 = arith.constant 0 : index
    %c6_351 = arith.constant 6 : index
    %c0_352 = arith.constant 0 : index
    %c21_353 = arith.constant 21 : index
    %188 = vector.load %arg1[%c0_350, %c6_351, %c0_352, %c21_353] : memref<1x10x4x128xbf16, #tpu.memory_space<vmem>>, vector<1x1x4x106xbf16>
    %189 = vector.shape_cast %188 : vector<1x1x4x106xbf16> to vector<4x106xbf16>
    %c28_354 = arith.constant 28 : index
    %c768_355 = arith.constant 768 : index
    %190 = vector.load %arg5[%c28_354, %c768_355] : memref<108x1024xbf16, #tpu.memory_space<vmem>>, vector<4x106xbf16>
    tpu.vector_store %arg5[%c28_354, %c768_355], %189 {strides = array<i32>} : memref<108x1024xbf16, #tpu.memory_space<vmem>>, vector<4x106xbf16>,
    %c0_356 = arith.constant 0 : index
    %c7_357 = arith.constant 7 : index
    %c0_358 = arith.constant 0 : index
    %c21_359 = arith.constant 21 : index
    %191 = vector.load %arg1[%c0_356, %c7_357, %c0_358, %c21_359] : memref<1x10x4x128xbf16, #tpu.memory_space<vmem>>, vector<1x1x4x106xbf16>
    %192 = vector.shape_cast %191 : vector<1x1x4x106xbf16> to vector<4x106xbf16>
    %c28_360 = arith.constant 28 : index
    %c896_361 = arith.constant 896 : index
    %193 = vector.load %arg5[%c28_360, %c896_361] : memref<108x1024xbf16, #tpu.memory_space<vmem>>, vector<4x106xbf16>
    tpu.vector_store %arg5[%c28_360, %c896_361], %192 {strides = array<i32>} : memref<108x1024xbf16, #tpu.memory_space<vmem>>, vector<4x106xbf16>,
    %c0_362 = arith.constant 0 : index
    %c0_363 = arith.constant 0 : index
    %c0_364 = arith.constant 0 : index
    %c22 = arith.constant 22 : index
    %194 = vector.load %arg1[%c0_362, %c0_363, %c0_364, %c22] : memref<1x10x4x128xbf16, #tpu.memory_space<vmem>>, vector<1x1x4x106xbf16>
    %195 = vector.shape_cast %194 : vector<1x1x4x106xbf16> to vector<4x106xbf16>
    %c32 = arith.constant 32 : index
    %c0_365 = arith.constant 0 : index
    %196 = vector.load %arg5[%c32, %c0_365] : memref<108x1024xbf16, #tpu.memory_space<vmem>>, vector<4x106xbf16>
    tpu.vector_store %arg5[%c32, %c0_365], %195 {strides = array<i32>} : memref<108x1024xbf16, #tpu.memory_space<vmem>>, vector<4x106xbf16>,
    %c0_366 = arith.constant 0 : index
    %c1_367 = arith.constant 1 : index
    %c0_368 = arith.constant 0 : index
    %c22_369 = arith.constant 22 : index
    %197 = vector.load %arg1[%c0_366, %c1_367, %c0_368, %c22_369] : memref<1x10x4x128xbf16, #tpu.memory_space<vmem>>, vector<1x1x4x106xbf16>
    %198 = vector.shape_cast %197 : vector<1x1x4x106xbf16> to vector<4x106xbf16>
    %c32_370 = arith.constant 32 : index
    %c128_371 = arith.constant 128 : index
    %199 = vector.load %arg5[%c32_370, %c128_371] : memref<108x1024xbf16, #tpu.memory_space<vmem>>, vector<4x106xbf16>
    tpu.vector_store %arg5[%c32_370, %c128_371], %198 {strides = array<i32>} : memref<108x1024xbf16, #tpu.memory_space<vmem>>, vector<4x106xbf16>,
    %c0_372 = arith.constant 0 : index
    %c2_373 = arith.constant 2 : index
    %c0_374 = arith.constant 0 : index
    %c22_375 = arith.constant 22 : index
    %200 = vector.load %arg1[%c0_372, %c2_373, %c0_374, %c22_375] : memref<1x10x4x128xbf16, #tpu.memory_space<vmem>>, vector<1x1x4x106xbf16>
    %201 = vector.shape_cast %200 : vector<1x1x4x106xbf16> to vector<4x106xbf16>
    %c32_376 = arith.constant 32 : index
    %c256_377 = arith.constant 256 : index
    %202 = vector.load %arg5[%c32_376, %c256_377] : memref<108x1024xbf16, #tpu.memory_space<vmem>>, vector<4x106xbf16>
    tpu.vector_store %arg5[%c32_376, %c256_377], %201 {strides = array<i32>} : memref<108x1024xbf16, #tpu.memory_space<vmem>>, vector<4x106xbf16>,
    %c0_378 = arith.constant 0 : index
    %c3_379 = arith.constant 3 : index
    %c0_380 = arith.constant 0 : index
    %c22_381 = arith.constant 22 : index
    %203 = vector.load %arg1[%c0_378, %c3_379, %c0_380, %c22_381] : memref<1x10x4x128xbf16, #tpu.memory_space<vmem>>, vector<1x1x4x106xbf16>
    %204 = vector.shape_cast %203 : vector<1x1x4x106xbf16> to vector<4x106xbf16>
    %c32_382 = arith.constant 32 : index
    %c384_383 = arith.constant 384 : index
    %205 = vector.load %arg5[%c32_382, %c384_383] : memref<108x1024xbf16, #tpu.memory_space<vmem>>, vector<4x106xbf16>
    tpu.vector_store %arg5[%c32_382, %c384_383], %204 {strides = array<i32>} : memref<108x1024xbf16, #tpu.memory_space<vmem>>, vector<4x106xbf16>,
    %c0_384 = arith.constant 0 : index
    %c4_385 = arith.constant 4 : index
    %c0_386 = arith.constant 0 : index
    %c22_387 = arith.constant 22 : index
    %206 = vector.load %arg1[%c0_384, %c4_385, %c0_386, %c22_387] : memref<1x10x4x128xbf16, #tpu.memory_space<vmem>>, vector<1x1x4x106xbf16>
    %207 = vector.shape_cast %206 : vector<1x1x4x106xbf16> to vector<4x106xbf16>
    %c32_388 = arith.constant 32 : index
    %c512_389 = arith.constant 512 : index
    %208 = vector.load %arg5[%c32_388, %c512_389] : memref<108x1024xbf16, #tpu.memory_space<vmem>>, vector<4x106xbf16>
    tpu.vector_store %arg5[%c32_388, %c512_389], %207 {strides = array<i32>} : memref<108x1024xbf16, #tpu.memory_space<vmem>>, vector<4x106xbf16>,
    %c0_390 = arith.constant 0 : index
    %c5_391 = arith.constant 5 : index
    %c0_392 = arith.constant 0 : index
    %c22_393 = arith.constant 22 : index
    %209 = vector.load %arg1[%c0_390, %c5_391, %c0_392, %c22_393] : memref<1x10x4x128xbf16, #tpu.memory_space<vmem>>, vector<1x1x4x106xbf16>
    %210 = vector.shape_cast %209 : vector<1x1x4x106xbf16> to vector<4x106xbf16>
    %c32_394 = arith.constant 32 : index
    %c640_395 = arith.constant 640 : index
    %211 = vector.load %arg5[%c32_394, %c640_395] : memref<108x1024xbf16, #tpu.memory_space<vmem>>, vector<4x106xbf16>
    tpu.vector_store %arg5[%c32_394, %c640_395], %210 {strides = array<i32>} : memref<108x1024xbf16, #tpu.memory_space<vmem>>, vector<4x106xbf16>,
    %c0_396 = arith.constant 0 : index
    %c6_397 = arith.constant 6 : index
    %c0_398 = arith.constant 0 : index
    %c22_399 = arith.constant 22 : index
    %212 = vector.load %arg1[%c0_396, %c6_397, %c0_398, %c22_399] : memref<1x10x4x128xbf16, #tpu.memory_space<vmem>>, vector<1x1x4x106xbf16>
    %213 = vector.shape_cast %212 : vector<1x1x4x106xbf16> to vector<4x106xbf16>
    %c32_400 = arith.constant 32 : index
    %c768_401 = arith.constant 768 : index
    %214 = vector.load %arg5[%c32_400, %c768_401] : memref<108x1024xbf16, #tpu.memory_space<vmem>>, vector<4x106xbf16>
    tpu.vector_store %arg5[%c32_400, %c768_401], %213 {strides = array<i32>} : memref<108x1024xbf16, #tpu.memory_space<vmem>>, vector<4x106xbf16>,
    %c0_402 = arith.constant 0 : index
    %c7_403 = arith.constant 7 : index
    %c0_404 = arith.constant 0 : index
    %c22_405 = arith.constant 22 : index
    %215 = vector.load %arg1[%c0_402, %c7_403, %c0_404, %c22_405] : memref<1x10x4x128xbf16, #tpu.memory_space<vmem>>, vector<1x1x4x106xbf16>
    %216 = vector.shape_cast %215 : vector<1x1x4x106xbf16> to vector<4x106xbf16>
    %c32_406 = arith.constant 32 : index
    %c896_407 = arith.constant 896 : index
    %217 = vector.load %arg5[%c32_406, %c896_407] : memref<108x1024xbf16, #tpu.memory_space<vmem>>, vector<4x106xbf16>
    tpu.vector_store %arg5[%c32_406, %c896_407], %216 {strides = array<i32>} : memref<108x1024xbf16, #tpu.memory_space<vmem>>, vector<4x106xbf16>,
    %c0_408 = arith.constant 0 : index
    %c1_409 = arith.constant 1 : index
    %c0_410 = arith.constant 0 : index
    %c0_411 = arith.constant 0 : index
    %218 = vector.load %arg1[%c0_408, %c1_409, %c0_410, %c0_411] : memref<1x10x4x128xbf16, #tpu.memory_space<vmem>>, vector<1x1x4x106xbf16>
    %219 = vector.shape_cast %218 : vector<1x1x4x106xbf16> to vector<4x106xbf16>
    %c36 = arith.constant 36 : index
    %c0_412 = arith.constant 0 : index
    %220 = vector.load %arg5[%c36, %c0_412] : memref<108x1024xbf16, #tpu.memory_space<vmem>>, vector<4x106xbf16>
    tpu.vector_store %arg5[%c36, %c0_412], %219 {strides = array<i32>} : memref<108x1024xbf16, #tpu.memory_space<vmem>>, vector<4x106xbf16>,
    %c0_413 = arith.constant 0 : index
    %c2_414 = arith.constant 2 : index
    %c0_415 = arith.constant 0 : index
    %c0_416 = arith.constant 0 : index
    %221 = vector.load %arg1[%c0_413, %c2_414, %c0_415, %c0_416] : memref<1x10x4x128xbf16, #tpu.memory_space<vmem>>, vector<1x1x4x106xbf16>
    %222 = vector.shape_cast %221 : vector<1x1x4x106xbf16> to vector<4x106xbf16>
    %c36_417 = arith.constant 36 : index
    %c128_418 = arith.constant 128 : index
    %223 = vector.load %arg5[%c36_417, %c128_418] : memref<108x1024xbf16, #tpu.memory_space<vmem>>, vector<4x106xbf16>
    tpu.vector_store %arg5[%c36_417, %c128_418], %222 {strides = array<i32>} : memref<108x1024xbf16, #tpu.memory_space<vmem>>, vector<4x106xbf16>,
    %c0_419 = arith.constant 0 : index
    %c3_420 = arith.constant 3 : index
    %c0_421 = arith.constant 0 : index
    %c0_422 = arith.constant 0 : index
    %224 = vector.load %arg1[%c0_419, %c3_420, %c0_421, %c0_422] : memref<1x10x4x128xbf16, #tpu.memory_space<vmem>>, vector<1x1x4x106xbf16>
    %225 = vector.shape_cast %224 : vector<1x1x4x106xbf16> to vector<4x106xbf16>
    %c36_423 = arith.constant 36 : index
    %c256_424 = arith.constant 256 : index
    %226 = vector.load %arg5[%c36_423, %c256_424] : memref<108x1024xbf16, #tpu.memory_space<vmem>>, vector<4x106xbf16>
    tpu.vector_store %arg5[%c36_423, %c256_424], %225 {strides = array<i32>} : memref<108x1024xbf16, #tpu.memory_space<vmem>>, vector<4x106xbf16>,
    %c0_425 = arith.constant 0 : index
    %c4_426 = arith.constant 4 : index
    %c0_427 = arith.constant 0 : index
    %c0_428 = arith.constant 0 : index
    %227 = vector.load %arg1[%c0_425, %c4_426, %c0_427, %c0_428] : memref<1x10x4x128xbf16, #tpu.memory_space<vmem>>, vector<1x1x4x106xbf16>
    %228 = vector.shape_cast %227 : vector<1x1x4x106xbf16> to vector<4x106xbf16>
    %c36_429 = arith.constant 36 : index
    %c384_430 = arith.constant 384 : index
    %229 = vector.load %arg5[%c36_429, %c384_430] : memref<108x1024xbf16, #tpu.memory_space<vmem>>, vector<4x106xbf16>
    tpu.vector_store %arg5[%c36_429, %c384_430], %228 {strides = array<i32>} : memref<108x1024xbf16, #tpu.memory_space<vmem>>, vector<4x106xbf16>,
    %c0_431 = arith.constant 0 : index
    %c5_432 = arith.constant 5 : index
    %c0_433 = arith.constant 0 : index
    %c0_434 = arith.constant 0 : index
    %230 = vector.load %arg1[%c0_431, %c5_432, %c0_433, %c0_434] : memref<1x10x4x128xbf16, #tpu.memory_space<vmem>>, vector<1x1x4x106xbf16>
    %231 = vector.shape_cast %230 : vector<1x1x4x106xbf16> to vector<4x106xbf16>
    %c36_435 = arith.constant 36 : index
    %c512_436 = arith.constant 512 : index
    %232 = vector.load %arg5[%c36_435, %c512_436] : memref<108x1024xbf16, #tpu.memory_space<vmem>>, vector<4x106xbf16>
    tpu.vector_store %arg5[%c36_435, %c512_436], %231 {strides = array<i32>} : memref<108x1024xbf16, #tpu.memory_space<vmem>>, vector<4x106xbf16>,
    %c0_437 = arith.constant 0 : index
    %c6_438 = arith.constant 6 : index
    %c0_439 = arith.constant 0 : index
    %c0_440 = arith.constant 0 : index
    %233 = vector.load %arg1[%c0_437, %c6_438, %c0_439, %c0_440] : memref<1x10x4x128xbf16, #tpu.memory_space<vmem>>, vector<1x1x4x106xbf16>
    %234 = vector.shape_cast %233 : vector<1x1x4x106xbf16> to vector<4x106xbf16>
    %c36_441 = arith.constant 36 : index
    %c640_442 = arith.constant 640 : index
    %235 = vector.load %arg5[%c36_441, %c640_442] : memref<108x1024xbf16, #tpu.memory_space<vmem>>, vector<4x106xbf16>
    tpu.vector_store %arg5[%c36_441, %c640_442], %234 {strides = array<i32>} : memref<108x1024xbf16, #tpu.memory_space<vmem>>, vector<4x106xbf16>,
    %c0_443 = arith.constant 0 : index
    %c7_444 = arith.constant 7 : index
    %c0_445 = arith.constant 0 : index
    %c0_446 = arith.constant 0 : index
    %236 = vector.load %arg1[%c0_443, %c7_444, %c0_445, %c0_446] : memref<1x10x4x128xbf16, #tpu.memory_space<vmem>>, vector<1x1x4x106xbf16>
    %237 = vector.shape_cast %236 : vector<1x1x4x106xbf16> to vector<4x106xbf16>
    %c36_447 = arith.constant 36 : index
    %c768_448 = arith.constant 768 : index
    %238 = vector.load %arg5[%c36_447, %c768_448] : memref<108x1024xbf16, #tpu.memory_space<vmem>>, vector<4x106xbf16>
    tpu.vector_store %arg5[%c36_447, %c768_448], %237 {strides = array<i32>} : memref<108x1024xbf16, #tpu.memory_space<vmem>>, vector<4x106xbf16>,
    %c0_449 = arith.constant 0 : index
    %c8_450 = arith.constant 8 : index
    %c0_451 = arith.constant 0 : index
    %c0_452 = arith.constant 0 : index
    %239 = vector.load %arg1[%c0_449, %c8_450, %c0_451, %c0_452] : memref<1x10x4x128xbf16, #tpu.memory_space<vmem>>, vector<1x1x4x106xbf16>
    %240 = vector.shape_cast %239 : vector<1x1x4x106xbf16> to vector<4x106xbf16>
    %c36_453 = arith.constant 36 : index
    %c896_454 = arith.constant 896 : index
    %241 = vector.load %arg5[%c36_453, %c896_454] : memref<108x1024xbf16, #tpu.memory_space<vmem>>, vector<4x106xbf16>
    tpu.vector_store %arg5[%c36_453, %c896_454], %240 {strides = array<i32>} : memref<108x1024xbf16, #tpu.memory_space<vmem>>, vector<4x106xbf16>,
    %c0_455 = arith.constant 0 : index
    %c1_456 = arith.constant 1 : index
    %c0_457 = arith.constant 0 : index
    %c1_458 = arith.constant 1 : index
    %242 = vector.load %arg1[%c0_455, %c1_456, %c0_457, %c1_458] : memref<1x10x4x128xbf16, #tpu.memory_space<vmem>>, vector<1x1x4x106xbf16>
    %243 = vector.shape_cast %242 : vector<1x1x4x106xbf16> to vector<4x106xbf16>
    %c40 = arith.constant 40 : index
    %c0_459 = arith.constant 0 : index
    %244 = vector.load %arg5[%c40, %c0_459] : memref<108x1024xbf16, #tpu.memory_space<vmem>>, vector<4x106xbf16>
    tpu.vector_store %arg5[%c40, %c0_459], %243 {strides = array<i32>} : memref<108x1024xbf16, #tpu.memory_space<vmem>>, vector<4x106xbf16>,
    %c0_460 = arith.constant 0 : index
    %c2_461 = arith.constant 2 : index
    %c0_462 = arith.constant 0 : index
    %c1_463 = arith.constant 1 : index
    %245 = vector.load %arg1[%c0_460, %c2_461, %c0_462, %c1_463] : memref<1x10x4x128xbf16, #tpu.memory_space<vmem>>, vector<1x1x4x106xbf16>
    %246 = vector.shape_cast %245 : vector<1x1x4x106xbf16> to vector<4x106xbf16>
    %c40_464 = arith.constant 40 : index
    %c128_465 = arith.constant 128 : index
    %247 = vector.load %arg5[%c40_464, %c128_465] : memref<108x1024xbf16, #tpu.memory_space<vmem>>, vector<4x106xbf16>
    tpu.vector_store %arg5[%c40_464, %c128_465], %246 {strides = array<i32>} : memref<108x1024xbf16, #tpu.memory_space<vmem>>, vector<4x106xbf16>,
    %c0_466 = arith.constant 0 : index
    %c3_467 = arith.constant 3 : index
    %c0_468 = arith.constant 0 : index
    %c1_469 = arith.constant 1 : index
    %248 = vector.load %arg1[%c0_466, %c3_467, %c0_468, %c1_469] : memref<1x10x4x128xbf16, #tpu.memory_space<vmem>>, vector<1x1x4x106xbf16>
    %249 = vector.shape_cast %248 : vector<1x1x4x106xbf16> to vector<4x106xbf16>
    %c40_470 = arith.constant 40 : index
    %c256_471 = arith.constant 256 : index
    %250 = vector.load %arg5[%c40_470, %c256_471] : memref<108x1024xbf16, #tpu.memory_space<vmem>>, vector<4x106xbf16>
    tpu.vector_store %arg5[%c40_470, %c256_471], %249 {strides = array<i32>} : memref<108x1024xbf16, #tpu.memory_space<vmem>>, vector<4x106xbf16>,
    %c0_472 = arith.constant 0 : index
    %c4_473 = arith.constant 4 : index
    %c0_474 = arith.constant 0 : index
    %c1_475 = arith.constant 1 : index
    %251 = vector.load %arg1[%c0_472, %c4_473, %c0_474, %c1_475] : memref<1x10x4x128xbf16, #tpu.memory_space<vmem>>, vector<1x1x4x106xbf16>
    %252 = vector.shape_cast %251 : vector<1x1x4x106xbf16> to vector<4x106xbf16>
    %c40_476 = arith.constant 40 : index
    %c384_477 = arith.constant 384 : index
    %253 = vector.load %arg5[%c40_476, %c384_477] : memref<108x1024xbf16, #tpu.memory_space<vmem>>, vector<4x106xbf16>
    tpu.vector_store %arg5[%c40_476, %c384_477], %252 {strides = array<i32>} : memref<108x1024xbf16, #tpu.memory_space<vmem>>, vector<4x106xbf16>,
    %c0_478 = arith.constant 0 : index
    %c5_479 = arith.constant 5 : index
    %c0_480 = arith.constant 0 : index
    %c1_481 = arith.constant 1 : index
    %254 = vector.load %arg1[%c0_478, %c5_479, %c0_480, %c1_481] : memref<1x10x4x128xbf16, #tpu.memory_space<vmem>>, vector<1x1x4x106xbf16>
    %255 = vector.shape_cast %254 : vector<1x1x4x106xbf16> to vector<4x106xbf16>
    %c40_482 = arith.constant 40 : index
    %c512_483 = arith.constant 512 : index
    %256 = vector.load %arg5[%c40_482, %c512_483] : memref<108x1024xbf16, #tpu.memory_space<vmem>>, vector<4x106xbf16>
    tpu.vector_store %arg5[%c40_482, %c512_483], %255 {strides = array<i32>} : memref<108x1024xbf16, #tpu.memory_space<vmem>>, vector<4x106xbf16>,
    %c0_484 = arith.constant 0 : index
    %c6_485 = arith.constant 6 : index
    %c0_486 = arith.constant 0 : index
    %c1_487 = arith.constant 1 : index
    %257 = vector.load %arg1[%c0_484, %c6_485, %c0_486, %c1_487] : memref<1x10x4x128xbf16, #tpu.memory_space<vmem>>, vector<1x1x4x106xbf16>
    %258 = vector.shape_cast %257 : vector<1x1x4x106xbf16> to vector<4x106xbf16>
    %c40_488 = arith.constant 40 : index
    %c640_489 = arith.constant 640 : index
    %259 = vector.load %arg5[%c40_488, %c640_489] : memref<108x1024xbf16, #tpu.memory_space<vmem>>, vector<4x106xbf16>
    tpu.vector_store %arg5[%c40_488, %c640_489], %258 {strides = array<i32>} : memref<108x1024xbf16, #tpu.memory_space<vmem>>, vector<4x106xbf16>,
    %c0_490 = arith.constant 0 : index
    %c7_491 = arith.constant 7 : index
    %c0_492 = arith.constant 0 : index
    %c1_493 = arith.constant 1 : index
    %260 = vector.load %arg1[%c0_490, %c7_491, %c0_492, %c1_493] : memref<1x10x4x128xbf16, #tpu.memory_space<vmem>>, vector<1x1x4x106xbf16>
    %261 = vector.shape_cast %260 : vector<1x1x4x106xbf16> to vector<4x106xbf16>
    %c40_494 = arith.constant 40 : index
    %c768_495 = arith.constant 768 : index
    %262 = vector.load %arg5[%c40_494, %c768_495] : memref<108x1024xbf16, #tpu.memory_space<vmem>>, vector<4x106xbf16>
    tpu.vector_store %arg5[%c40_494, %c768_495], %261 {strides = array<i32>} : memref<108x1024xbf16, #tpu.memory_space<vmem>>, vector<4x106xbf16>,
    %c0_496 = arith.constant 0 : index
    %c8_497 = arith.constant 8 : index
    %c0_498 = arith.constant 0 : index
    %c1_499 = arith.constant 1 : index
    %263 = vector.load %arg1[%c0_496, %c8_497, %c0_498, %c1_499] : memref<1x10x4x128xbf16, #tpu.memory_space<vmem>>, vector<1x1x4x106xbf16>
    %264 = vector.shape_cast %263 : vector<1x1x4x106xbf16> to vector<4x106xbf16>
    %c40_500 = arith.constant 40 : index
    %c896_501 = arith.constant 896 : index
    %265 = vector.load %arg5[%c40_500, %c896_501] : memref<108x1024xbf16, #tpu.memory_space<vmem>>, vector<4x106xbf16>
    tpu.vector_store %arg5[%c40_500, %c896_501], %264 {strides = array<i32>} : memref<108x1024xbf16, #tpu.memory_space<vmem>>, vector<4x106xbf16>,
    %c0_502 = arith.constant 0 : index
    %c1_503 = arith.constant 1 : index
    %c0_504 = arith.constant 0 : index
    %c2_505 = arith.constant 2 : index
    %266 = vector.load %arg1[%c0_502, %c1_503, %c0_504, %c2_505] : memref<1x10x4x128xbf16, #tpu.memory_space<vmem>>, vector<1x1x4x106xbf16>
    %267 = vector.shape_cast %266 : vector<1x1x4x106xbf16> to vector<4x106xbf16>
    %c44 = arith.constant 44 : index
    %c0_506 = arith.constant 0 : index
    %268 = vector.load %arg5[%c44, %c0_506] : memref<108x1024xbf16, #tpu.memory_space<vmem>>, vector<4x106xbf16>
    tpu.vector_store %arg5[%c44, %c0_506], %267 {strides = array<i32>} : memref<108x1024xbf16, #tpu.memory_space<vmem>>, vector<4x106xbf16>,
    %c0_507 = arith.constant 0 : index
    %c2_508 = arith.constant 2 : index
    %c0_509 = arith.constant 0 : index
    %c2_510 = arith.constant 2 : index
    %269 = vector.load %arg1[%c0_507, %c2_508, %c0_509, %c2_510] : memref<1x10x4x128xbf16, #tpu.memory_space<vmem>>, vector<1x1x4x106xbf16>
    %270 = vector.shape_cast %269 : vector<1x1x4x106xbf16> to vector<4x106xbf16>
    %c44_511 = arith.constant 44 : index
    %c128_512 = arith.constant 128 : index
    %271 = vector.load %arg5[%c44_511, %c128_512] : memref<108x1024xbf16, #tpu.memory_space<vmem>>, vector<4x106xbf16>
    tpu.vector_store %arg5[%c44_511, %c128_512], %270 {strides = array<i32>} : memref<108x1024xbf16, #tpu.memory_space<vmem>>, vector<4x106xbf16>,
    %c0_513 = arith.constant 0 : index
    %c3_514 = arith.constant 3 : index
    %c0_515 = arith.constant 0 : index
    %c2_516 = arith.constant 2 : index
    %272 = vector.load %arg1[%c0_513, %c3_514, %c0_515, %c2_516] : memref<1x10x4x128xbf16, #tpu.memory_space<vmem>>, vector<1x1x4x106xbf16>
    %273 = vector.shape_cast %272 : vector<1x1x4x106xbf16> to vector<4x106xbf16>
    %c44_517 = arith.constant 44 : index
    %c256_518 = arith.constant 256 : index
    %274 = vector.load %arg5[%c44_517, %c256_518] : memref<108x1024xbf16, #tpu.memory_space<vmem>>, vector<4x106xbf16>
    tpu.vector_store %arg5[%c44_517, %c256_518], %273 {strides = array<i32>} : memref<108x1024xbf16, #tpu.memory_space<vmem>>, vector<4x106xbf16>,
    %c0_519 = arith.constant 0 : index
    %c4_520 = arith.constant 4 : index
    %c0_521 = arith.constant 0 : index
    %c2_522 = arith.constant 2 : index
    %275 = vector.load %arg1[%c0_519, %c4_520, %c0_521, %c2_522] : memref<1x10x4x128xbf16, #tpu.memory_space<vmem>>, vector<1x1x4x106xbf16>
    %276 = vector.shape_cast %275 : vector<1x1x4x106xbf16> to vector<4x106xbf16>
    %c44_523 = arith.constant 44 : index
    %c384_524 = arith.constant 384 : index
    %277 = vector.load %arg5[%c44_523, %c384_524] : memref<108x1024xbf16, #tpu.memory_space<vmem>>, vector<4x106xbf16>
    tpu.vector_store %arg5[%c44_523, %c384_524], %276 {strides = array<i32>} : memref<108x1024xbf16, #tpu.memory_space<vmem>>, vector<4x106xbf16>,
    %c0_525 = arith.constant 0 : index
    %c5_526 = arith.constant 5 : index
    %c0_527 = arith.constant 0 : index
    %c2_528 = arith.constant 2 : index
    %278 = vector.load %arg1[%c0_525, %c5_526, %c0_527, %c2_528] : memref<1x10x4x128xbf16, #tpu.memory_space<vmem>>, vector<1x1x4x106xbf16>
    %279 = vector.shape_cast %278 : vector<1x1x4x106xbf16> to vector<4x106xbf16>
    %c44_529 = arith.constant 44 : index
    %c512_530 = arith.constant 512 : index
    %280 = vector.load %arg5[%c44_529, %c512_530] : memref<108x1024xbf16, #tpu.memory_space<vmem>>, vector<4x106xbf16>
    tpu.vector_store %arg5[%c44_529, %c512_530], %279 {strides = array<i32>} : memref<108x1024xbf16, #tpu.memory_space<vmem>>, vector<4x106xbf16>,
    %c0_531 = arith.constant 0 : index
    %c6_532 = arith.constant 6 : index
    %c0_533 = arith.constant 0 : index
    %c2_534 = arith.constant 2 : index
    %281 = vector.load %arg1[%c0_531, %c6_532, %c0_533, %c2_534] : memref<1x10x4x128xbf16, #tpu.memory_space<vmem>>, vector<1x1x4x106xbf16>
    %282 = vector.shape_cast %281 : vector<1x1x4x106xbf16> to vector<4x106xbf16>
    %c44_535 = arith.constant 44 : index
    %c640_536 = arith.constant 640 : index
    %283 = vector.load %arg5[%c44_535, %c640_536] : memref<108x1024xbf16, #tpu.memory_space<vmem>>, vector<4x106xbf16>
    tpu.vector_store %arg5[%c44_535, %c640_536], %282 {strides = array<i32>} : memref<108x1024xbf16, #tpu.memory_space<vmem>>, vector<4x106xbf16>,
    %c0_537 = arith.constant 0 : index
    %c7_538 = arith.constant 7 : index
    %c0_539 = arith.constant 0 : index
    %c2_540 = arith.constant 2 : index
    %284 = vector.load %arg1[%c0_537, %c7_538, %c0_539, %c2_540] : memref<1x10x4x128xbf16, #tpu.memory_space<vmem>>, vector<1x1x4x106xbf16>
    %285 = vector.shape_cast %284 : vector<1x1x4x106xbf16> to vector<4x106xbf16>
    %c44_541 = arith.constant 44 : index
    %c768_542 = arith.constant 768 : index
    %286 = vector.load %arg5[%c44_541, %c768_542] : memref<108x1024xbf16, #tpu.memory_space<vmem>>, vector<4x106xbf16>
    tpu.vector_store %arg5[%c44_541, %c768_542], %285 {strides = array<i32>} : memref<108x1024xbf16, #tpu.memory_space<vmem>>, vector<4x106xbf16>,
    %c0_543 = arith.constant 0 : index
    %c8_544 = arith.constant 8 : index
    %c0_545 = arith.constant 0 : index
    %c2_546 = arith.constant 2 : index
    %287 = vector.load %arg1[%c0_543, %c8_544, %c0_545, %c2_546] : memref<1x10x4x128xbf16, #tpu.memory_space<vmem>>, vector<1x1x4x106xbf16>
    %288 = vector.shape_cast %287 : vector<1x1x4x106xbf16> to vector<4x106xbf16>
    %c44_547 = arith.constant 44 : index
    %c896_548 = arith.constant 896 : index
    %289 = vector.load %arg5[%c44_547, %c896_548] : memref<108x1024xbf16, #tpu.memory_space<vmem>>, vector<4x106xbf16>
    tpu.vector_store %arg5[%c44_547, %c896_548], %288 {strides = array<i32>} : memref<108x1024xbf16, #tpu.memory_space<vmem>>, vector<4x106xbf16>,
    %c0_549 = arith.constant 0 : index
    %c1_550 = arith.constant 1 : index
    %c0_551 = arith.constant 0 : index
    %c10_552 = arith.constant 10 : index
    %290 = vector.load %arg1[%c0_549, %c1_550, %c0_551, %c10_552] : memref<1x10x4x128xbf16, #tpu.memory_space<vmem>>, vector<1x1x4x106xbf16>
    %291 = vector.shape_cast %290 : vector<1x1x4x106xbf16> to vector<4x106xbf16>
    %c48 = arith.constant 48 : index
    %c0_553 = arith.constant 0 : index
    %292 = vector.load %arg5[%c48, %c0_553] : memref<108x1024xbf16, #tpu.memory_space<vmem>>, vector<4x106xbf16>
    tpu.vector_store %arg5[%c48, %c0_553], %291 {strides = array<i32>} : memref<108x1024xbf16, #tpu.memory_space<vmem>>, vector<4x106xbf16>,
    %c0_554 = arith.constant 0 : index
    %c2_555 = arith.constant 2 : index
    %c0_556 = arith.constant 0 : index
    %c10_557 = arith.constant 10 : index
    %293 = vector.load %arg1[%c0_554, %c2_555, %c0_556, %c10_557] : memref<1x10x4x128xbf16, #tpu.memory_space<vmem>>, vector<1x1x4x106xbf16>
    %294 = vector.shape_cast %293 : vector<1x1x4x106xbf16> to vector<4x106xbf16>
    %c48_558 = arith.constant 48 : index
    %c128_559 = arith.constant 128 : index
    %295 = vector.load %arg5[%c48_558, %c128_559] : memref<108x1024xbf16, #tpu.memory_space<vmem>>, vector<4x106xbf16>
    tpu.vector_store %arg5[%c48_558, %c128_559], %294 {strides = array<i32>} : memref<108x1024xbf16, #tpu.memory_space<vmem>>, vector<4x106xbf16>,
    %c0_560 = arith.constant 0 : index
    %c3_561 = arith.constant 3 : index
    %c0_562 = arith.constant 0 : index
    %c10_563 = arith.constant 10 : index
    %296 = vector.load %arg1[%c0_560, %c3_561, %c0_562, %c10_563] : memref<1x10x4x128xbf16, #tpu.memory_space<vmem>>, vector<1x1x4x106xbf16>
    %297 = vector.shape_cast %296 : vector<1x1x4x106xbf16> to vector<4x106xbf16>
    %c48_564 = arith.constant 48 : index
    %c256_565 = arith.constant 256 : index
    %298 = vector.load %arg5[%c48_564, %c256_565] : memref<108x1024xbf16, #tpu.memory_space<vmem>>, vector<4x106xbf16>
    tpu.vector_store %arg5[%c48_564, %c256_565], %297 {strides = array<i32>} : memref<108x1024xbf16, #tpu.memory_space<vmem>>, vector<4x106xbf16>,
    %c0_566 = arith.constant 0 : index
    %c4_567 = arith.constant 4 : index
    %c0_568 = arith.constant 0 : index
    %c10_569 = arith.constant 10 : index
    %299 = vector.load %arg1[%c0_566, %c4_567, %c0_568, %c10_569] : memref<1x10x4x128xbf16, #tpu.memory_space<vmem>>, vector<1x1x4x106xbf16>
    %300 = vector.shape_cast %299 : vector<1x1x4x106xbf16> to vector<4x106xbf16>
    %c48_570 = arith.constant 48 : index
    %c384_571 = arith.constant 384 : index
    %301 = vector.load %arg5[%c48_570, %c384_571] : memref<108x1024xbf16, #tpu.memory_space<vmem>>, vector<4x106xbf16>
    tpu.vector_store %arg5[%c48_570, %c384_571], %300 {strides = array<i32>} : memref<108x1024xbf16, #tpu.memory_space<vmem>>, vector<4x106xbf16>,
    %c0_572 = arith.constant 0 : index
    %c5_573 = arith.constant 5 : index
    %c0_574 = arith.constant 0 : index
    %c10_575 = arith.constant 10 : index
    %302 = vector.load %arg1[%c0_572, %c5_573, %c0_574, %c10_575] : memref<1x10x4x128xbf16, #tpu.memory_space<vmem>>, vector<1x1x4x106xbf16>
    %303 = vector.shape_cast %302 : vector<1x1x4x106xbf16> to vector<4x106xbf16>
    %c48_576 = arith.constant 48 : index
    %c512_577 = arith.constant 512 : index
    %304 = vector.load %arg5[%c48_576, %c512_577] : memref<108x1024xbf16, #tpu.memory_space<vmem>>, vector<4x106xbf16>
    tpu.vector_store %arg5[%c48_576, %c512_577], %303 {strides = array<i32>} : memref<108x1024xbf16, #tpu.memory_space<vmem>>, vector<4x106xbf16>,
    %c0_578 = arith.constant 0 : index
    %c6_579 = arith.constant 6 : index
    %c0_580 = arith.constant 0 : index
    %c10_581 = arith.constant 10 : index
    %305 = vector.load %arg1[%c0_578, %c6_579, %c0_580, %c10_581] : memref<1x10x4x128xbf16, #tpu.memory_space<vmem>>, vector<1x1x4x106xbf16>
    %306 = vector.shape_cast %305 : vector<1x1x4x106xbf16> to vector<4x106xbf16>
    %c48_582 = arith.constant 48 : index
    %c640_583 = arith.constant 640 : index
    %307 = vector.load %arg5[%c48_582, %c640_583] : memref<108x1024xbf16, #tpu.memory_space<vmem>>, vector<4x106xbf16>
    tpu.vector_store %arg5[%c48_582, %c640_583], %306 {strides = array<i32>} : memref<108x1024xbf16, #tpu.memory_space<vmem>>, vector<4x106xbf16>,
    %c0_584 = arith.constant 0 : index
    %c7_585 = arith.constant 7 : index
    %c0_586 = arith.constant 0 : index
    %c10_587 = arith.constant 10 : index
    %308 = vector.load %arg1[%c0_584, %c7_585, %c0_586, %c10_587] : memref<1x10x4x128xbf16, #tpu.memory_space<vmem>>, vector<1x1x4x106xbf16>
    %309 = vector.shape_cast %308 : vector<1x1x4x106xbf16> to vector<4x106xbf16>
    %c48_588 = arith.constant 48 : index
    %c768_589 = arith.constant 768 : index
    %310 = vector.load %arg5[%c48_588, %c768_589] : memref<108x1024xbf16, #tpu.memory_space<vmem>>, vector<4x106xbf16>
    tpu.vector_store %arg5[%c48_588, %c768_589], %309 {strides = array<i32>} : memref<108x1024xbf16, #tpu.memory_space<vmem>>, vector<4x106xbf16>,
    %c0_590 = arith.constant 0 : index
    %c8_591 = arith.constant 8 : index
    %c0_592 = arith.constant 0 : index
    %c10_593 = arith.constant 10 : index
    %311 = vector.load %arg1[%c0_590, %c8_591, %c0_592, %c10_593] : memref<1x10x4x128xbf16, #tpu.memory_space<vmem>>, vector<1x1x4x106xbf16>
    %312 = vector.shape_cast %311 : vector<1x1x4x106xbf16> to vector<4x106xbf16>
    %c48_594 = arith.constant 48 : index
    %c896_595 = arith.constant 896 : index
    %313 = vector.load %arg5[%c48_594, %c896_595] : memref<108x1024xbf16, #tpu.memory_space<vmem>>, vector<4x106xbf16>
    tpu.vector_store %arg5[%c48_594, %c896_595], %312 {strides = array<i32>} : memref<108x1024xbf16, #tpu.memory_space<vmem>>, vector<4x106xbf16>,
    %c0_596 = arith.constant 0 : index
    %c1_597 = arith.constant 1 : index
    %c0_598 = arith.constant 0 : index
    %c11_599 = arith.constant 11 : index
    %314 = vector.load %arg1[%c0_596, %c1_597, %c0_598, %c11_599] : memref<1x10x4x128xbf16, #tpu.memory_space<vmem>>, vector<1x1x4x106xbf16>
    %315 = vector.shape_cast %314 : vector<1x1x4x106xbf16> to vector<4x106xbf16>
    %c52 = arith.constant 52 : index
    %c0_600 = arith.constant 0 : index
    %316 = vector.load %arg5[%c52, %c0_600] : memref<108x1024xbf16, #tpu.memory_space<vmem>>, vector<4x106xbf16>
    tpu.vector_store %arg5[%c52, %c0_600], %315 {strides = array<i32>} : memref<108x1024xbf16, #tpu.memory_space<vmem>>, vector<4x106xbf16>,
    %c0_601 = arith.constant 0 : index
    %c2_602 = arith.constant 2 : index
    %c0_603 = arith.constant 0 : index
    %c11_604 = arith.constant 11 : index
    %317 = vector.load %arg1[%c0_601, %c2_602, %c0_603, %c11_604] : memref<1x10x4x128xbf16, #tpu.memory_space<vmem>>, vector<1x1x4x106xbf16>
    %318 = vector.shape_cast %317 : vector<1x1x4x106xbf16> to vector<4x106xbf16>
    %c52_605 = arith.constant 52 : index
    %c128_606 = arith.constant 128 : index
    %319 = vector.load %arg5[%c52_605, %c128_606] : memref<108x1024xbf16, #tpu.memory_space<vmem>>, vector<4x106xbf16>
    tpu.vector_store %arg5[%c52_605, %c128_606], %318 {strides = array<i32>} : memref<108x1024xbf16, #tpu.memory_space<vmem>>, vector<4x106xbf16>,
    %c0_607 = arith.constant 0 : index
    %c3_608 = arith.constant 3 : index
    %c0_609 = arith.constant 0 : index
    %c11_610 = arith.constant 11 : index
    %320 = vector.load %arg1[%c0_607, %c3_608, %c0_609, %c11_610] : memref<1x10x4x128xbf16, #tpu.memory_space<vmem>>, vector<1x1x4x106xbf16>
    %321 = vector.shape_cast %320 : vector<1x1x4x106xbf16> to vector<4x106xbf16>
    %c52_611 = arith.constant 52 : index
    %c256_612 = arith.constant 256 : index
    %322 = vector.load %arg5[%c52_611, %c256_612] : memref<108x1024xbf16, #tpu.memory_space<vmem>>, vector<4x106xbf16>
    tpu.vector_store %arg5[%c52_611, %c256_612], %321 {strides = array<i32>} : memref<108x1024xbf16, #tpu.memory_space<vmem>>, vector<4x106xbf16>,
    %c0_613 = arith.constant 0 : index
    %c4_614 = arith.constant 4 : index
    %c0_615 = arith.constant 0 : index
    %c11_616 = arith.constant 11 : index
    %323 = vector.load %arg1[%c0_613, %c4_614, %c0_615, %c11_616] : memref<1x10x4x128xbf16, #tpu.memory_space<vmem>>, vector<1x1x4x106xbf16>
    %324 = vector.shape_cast %323 : vector<1x1x4x106xbf16> to vector<4x106xbf16>
    %c52_617 = arith.constant 52 : index
    %c384_618 = arith.constant 384 : index
    %325 = vector.load %arg5[%c52_617, %c384_618] : memref<108x1024xbf16, #tpu.memory_space<vmem>>, vector<4x106xbf16>
    tpu.vector_store %arg5[%c52_617, %c384_618], %324 {strides = array<i32>} : memref<108x1024xbf16, #tpu.memory_space<vmem>>, vector<4x106xbf16>,
    %c0_619 = arith.constant 0 : index
    %c5_620 = arith.constant 5 : index
    %c0_621 = arith.constant 0 : index
    %c11_622 = arith.constant 11 : index
    %326 = vector.load %arg1[%c0_619, %c5_620, %c0_621, %c11_622] : memref<1x10x4x128xbf16, #tpu.memory_space<vmem>>, vector<1x1x4x106xbf16>
    %327 = vector.shape_cast %326 : vector<1x1x4x106xbf16> to vector<4x106xbf16>
    %c52_623 = arith.constant 52 : index
    %c512_624 = arith.constant 512 : index
    %328 = vector.load %arg5[%c52_623, %c512_624] : memref<108x1024xbf16, #tpu.memory_space<vmem>>, vector<4x106xbf16>
    tpu.vector_store %arg5[%c52_623, %c512_624], %327 {strides = array<i32>} : memref<108x1024xbf16, #tpu.memory_space<vmem>>, vector<4x106xbf16>,
    %c0_625 = arith.constant 0 : index
    %c6_626 = arith.constant 6 : index
    %c0_627 = arith.constant 0 : index
    %c11_628 = arith.constant 11 : index
    %329 = vector.load %arg1[%c0_625, %c6_626, %c0_627, %c11_628] : memref<1x10x4x128xbf16, #tpu.memory_space<vmem>>, vector<1x1x4x106xbf16>
    %330 = vector.shape_cast %329 : vector<1x1x4x106xbf16> to vector<4x106xbf16>
    %c52_629 = arith.constant 52 : index
    %c640_630 = arith.constant 640 : index
    %331 = vector.load %arg5[%c52_629, %c640_630] : memref<108x1024xbf16, #tpu.memory_space<vmem>>, vector<4x106xbf16>
    tpu.vector_store %arg5[%c52_629, %c640_630], %330 {strides = array<i32>} : memref<108x1024xbf16, #tpu.memory_space<vmem>>, vector<4x106xbf16>,
    %c0_631 = arith.constant 0 : index
    %c7_632 = arith.constant 7 : index
    %c0_633 = arith.constant 0 : index
    %c11_634 = arith.constant 11 : index
    %332 = vector.load %arg1[%c0_631, %c7_632, %c0_633, %c11_634] : memref<1x10x4x128xbf16, #tpu.memory_space<vmem>>, vector<1x1x4x106xbf16>
    %333 = vector.shape_cast %332 : vector<1x1x4x106xbf16> to vector<4x106xbf16>
    %c52_635 = arith.constant 52 : index
    %c768_636 = arith.constant 768 : index
    %334 = vector.load %arg5[%c52_635, %c768_636] : memref<108x1024xbf16, #tpu.memory_space<vmem>>, vector<4x106xbf16>
    tpu.vector_store %arg5[%c52_635, %c768_636], %333 {strides = array<i32>} : memref<108x1024xbf16, #tpu.memory_space<vmem>>, vector<4x106xbf16>,
    %c0_637 = arith.constant 0 : index
    %c8_638 = arith.constant 8 : index
    %c0_639 = arith.constant 0 : index
    %c11_640 = arith.constant 11 : index
    %335 = vector.load %arg1[%c0_637, %c8_638, %c0_639, %c11_640] : memref<1x10x4x128xbf16, #tpu.memory_space<vmem>>, vector<1x1x4x106xbf16>
    %336 = vector.shape_cast %335 : vector<1x1x4x106xbf16> to vector<4x106xbf16>
    %c52_641 = arith.constant 52 : index
    %c896_642 = arith.constant 896 : index
    %337 = vector.load %arg5[%c52_641, %c896_642] : memref<108x1024xbf16, #tpu.memory_space<vmem>>, vector<4x106xbf16>
    tpu.vector_store %arg5[%c52_641, %c896_642], %336 {strides = array<i32>} : memref<108x1024xbf16, #tpu.memory_space<vmem>>, vector<4x106xbf16>,
    %c0_643 = arith.constant 0 : index
    %c1_644 = arith.constant 1 : index
    %c0_645 = arith.constant 0 : index
    %c12_646 = arith.constant 12 : index
    %338 = vector.load %arg1[%c0_643, %c1_644, %c0_645, %c12_646] : memref<1x10x4x128xbf16, #tpu.memory_space<vmem>>, vector<1x1x4x106xbf16>
    %339 = vector.shape_cast %338 : vector<1x1x4x106xbf16> to vector<4x106xbf16>
    %c56 = arith.constant 56 : index
    %c0_647 = arith.constant 0 : index
    %340 = vector.load %arg5[%c56, %c0_647] : memref<108x1024xbf16, #tpu.memory_space<vmem>>, vector<4x106xbf16>
    tpu.vector_store %arg5[%c56, %c0_647], %339 {strides = array<i32>} : memref<108x1024xbf16, #tpu.memory_space<vmem>>, vector<4x106xbf16>,
    %c0_648 = arith.constant 0 : index
    %c2_649 = arith.constant 2 : index
    %c0_650 = arith.constant 0 : index
    %c12_651 = arith.constant 12 : index
    %341 = vector.load %arg1[%c0_648, %c2_649, %c0_650, %c12_651] : memref<1x10x4x128xbf16, #tpu.memory_space<vmem>>, vector<1x1x4x106xbf16>
    %342 = vector.shape_cast %341 : vector<1x1x4x106xbf16> to vector<4x106xbf16>
    %c56_652 = arith.constant 56 : index
    %c128_653 = arith.constant 128 : index
    %343 = vector.load %arg5[%c56_652, %c128_653] : memref<108x1024xbf16, #tpu.memory_space<vmem>>, vector<4x106xbf16>
    tpu.vector_store %arg5[%c56_652, %c128_653], %342 {strides = array<i32>} : memref<108x1024xbf16, #tpu.memory_space<vmem>>, vector<4x106xbf16>,
    %c0_654 = arith.constant 0 : index
    %c3_655 = arith.constant 3 : index
    %c0_656 = arith.constant 0 : index
    %c12_657 = arith.constant 12 : index
    %344 = vector.load %arg1[%c0_654, %c3_655, %c0_656, %c12_657] : memref<1x10x4x128xbf16, #tpu.memory_space<vmem>>, vector<1x1x4x106xbf16>
    %345 = vector.shape_cast %344 : vector<1x1x4x106xbf16> to vector<4x106xbf16>
    %c56_658 = arith.constant 56 : index
    %c256_659 = arith.constant 256 : index
    %346 = vector.load %arg5[%c56_658, %c256_659] : memref<108x1024xbf16, #tpu.memory_space<vmem>>, vector<4x106xbf16>
    tpu.vector_store %arg5[%c56_658, %c256_659], %345 {strides = array<i32>} : memref<108x1024xbf16, #tpu.memory_space<vmem>>, vector<4x106xbf16>,
    %c0_660 = arith.constant 0 : index
    %c4_661 = arith.constant 4 : index
    %c0_662 = arith.constant 0 : index
    %c12_663 = arith.constant 12 : index
    %347 = vector.load %arg1[%c0_660, %c4_661, %c0_662, %c12_663] : memref<1x10x4x128xbf16, #tpu.memory_space<vmem>>, vector<1x1x4x106xbf16>
    %348 = vector.shape_cast %347 : vector<1x1x4x106xbf16> to vector<4x106xbf16>
    %c56_664 = arith.constant 56 : index
    %c384_665 = arith.constant 384 : index
    %349 = vector.load %arg5[%c56_664, %c384_665] : memref<108x1024xbf16, #tpu.memory_space<vmem>>, vector<4x106xbf16>
    tpu.vector_store %arg5[%c56_664, %c384_665], %348 {strides = array<i32>} : memref<108x1024xbf16, #tpu.memory_space<vmem>>, vector<4x106xbf16>,
    %c0_666 = arith.constant 0 : index
    %c5_667 = arith.constant 5 : index
    %c0_668 = arith.constant 0 : index
    %c12_669 = arith.constant 12 : index
    %350 = vector.load %arg1[%c0_666, %c5_667, %c0_668, %c12_669] : memref<1x10x4x128xbf16, #tpu.memory_space<vmem>>, vector<1x1x4x106xbf16>
    %351 = vector.shape_cast %350 : vector<1x1x4x106xbf16> to vector<4x106xbf16>
    %c56_670 = arith.constant 56 : index
    %c512_671 = arith.constant 512 : index
    %352 = vector.load %arg5[%c56_670, %c512_671] : memref<108x1024xbf16, #tpu.memory_space<vmem>>, vector<4x106xbf16>
    tpu.vector_store %arg5[%c56_670, %c512_671], %351 {strides = array<i32>} : memref<108x1024xbf16, #tpu.memory_space<vmem>>, vector<4x106xbf16>,
    %c0_672 = arith.constant 0 : index
    %c6_673 = arith.constant 6 : index
    %c0_674 = arith.constant 0 : index
    %c12_675 = arith.constant 12 : index
    %353 = vector.load %arg1[%c0_672, %c6_673, %c0_674, %c12_675] : memref<1x10x4x128xbf16, #tpu.memory_space<vmem>>, vector<1x1x4x106xbf16>
    %354 = vector.shape_cast %353 : vector<1x1x4x106xbf16> to vector<4x106xbf16>
    %c56_676 = arith.constant 56 : index
    %c640_677 = arith.constant 640 : index
    %355 = vector.load %arg5[%c56_676, %c640_677] : memref<108x1024xbf16, #tpu.memory_space<vmem>>, vector<4x106xbf16>
    tpu.vector_store %arg5[%c56_676, %c640_677], %354 {strides = array<i32>} : memref<108x1024xbf16, #tpu.memory_space<vmem>>, vector<4x106xbf16>,
    %c0_678 = arith.constant 0 : index
    %c7_679 = arith.constant 7 : index
    %c0_680 = arith.constant 0 : index
    %c12_681 = arith.constant 12 : index
    %356 = vector.load %arg1[%c0_678, %c7_679, %c0_680, %c12_681] : memref<1x10x4x128xbf16, #tpu.memory_space<vmem>>, vector<1x1x4x106xbf16>
    %357 = vector.shape_cast %356 : vector<1x1x4x106xbf16> to vector<4x106xbf16>
    %c56_682 = arith.constant 56 : index
    %c768_683 = arith.constant 768 : index
    %358 = vector.load %arg5[%c56_682, %c768_683] : memref<108x1024xbf16, #tpu.memory_space<vmem>>, vector<4x106xbf16>
    tpu.vector_store %arg5[%c56_682, %c768_683], %357 {strides = array<i32>} : memref<108x1024xbf16, #tpu.memory_space<vmem>>, vector<4x106xbf16>,
    %c0_684 = arith.constant 0 : index
    %c8_685 = arith.constant 8 : index
    %c0_686 = arith.constant 0 : index
    %c12_687 = arith.constant 12 : index
    %359 = vector.load %arg1[%c0_684, %c8_685, %c0_686, %c12_687] : memref<1x10x4x128xbf16, #tpu.memory_space<vmem>>, vector<1x1x4x106xbf16>
    %360 = vector.shape_cast %359 : vector<1x1x4x106xbf16> to vector<4x106xbf16>
    %c56_688 = arith.constant 56 : index
    %c896_689 = arith.constant 896 : index
    %361 = vector.load %arg5[%c56_688, %c896_689] : memref<108x1024xbf16, #tpu.memory_space<vmem>>, vector<4x106xbf16>
    tpu.vector_store %arg5[%c56_688, %c896_689], %360 {strides = array<i32>} : memref<108x1024xbf16, #tpu.memory_space<vmem>>, vector<4x106xbf16>,
    %c0_690 = arith.constant 0 : index
    %c1_691 = arith.constant 1 : index
    %c0_692 = arith.constant 0 : index
    %c20_693 = arith.constant 20 : index
    %362 = vector.load %arg1[%c0_690, %c1_691, %c0_692, %c20_693] : memref<1x10x4x128xbf16, #tpu.memory_space<vmem>>, vector<1x1x4x106xbf16>
    %363 = vector.shape_cast %362 : vector<1x1x4x106xbf16> to vector<4x106xbf16>
    %c60 = arith.constant 60 : index
    %c0_694 = arith.constant 0 : index
    %364 = vector.load %arg5[%c60, %c0_694] : memref<108x1024xbf16, #tpu.memory_space<vmem>>, vector<4x106xbf16>
    tpu.vector_store %arg5[%c60, %c0_694], %363 {strides = array<i32>} : memref<108x1024xbf16, #tpu.memory_space<vmem>>, vector<4x106xbf16>,
    %c0_695 = arith.constant 0 : index
    %c2_696 = arith.constant 2 : index
    %c0_697 = arith.constant 0 : index
    %c20_698 = arith.constant 20 : index
    %365 = vector.load %arg1[%c0_695, %c2_696, %c0_697, %c20_698] : memref<1x10x4x128xbf16, #tpu.memory_space<vmem>>, vector<1x1x4x106xbf16>
    %366 = vector.shape_cast %365 : vector<1x1x4x106xbf16> to vector<4x106xbf16>
    %c60_699 = arith.constant 60 : index
    %c128_700 = arith.constant 128 : index
    %367 = vector.load %arg5[%c60_699, %c128_700] : memref<108x1024xbf16, #tpu.memory_space<vmem>>, vector<4x106xbf16>
    tpu.vector_store %arg5[%c60_699, %c128_700], %366 {strides = array<i32>} : memref<108x1024xbf16, #tpu.memory_space<vmem>>, vector<4x106xbf16>,
    %c0_701 = arith.constant 0 : index
    %c3_702 = arith.constant 3 : index
    %c0_703 = arith.constant 0 : index
    %c20_704 = arith.constant 20 : index
    %368 = vector.load %arg1[%c0_701, %c3_702, %c0_703, %c20_704] : memref<1x10x4x128xbf16, #tpu.memory_space<vmem>>, vector<1x1x4x106xbf16>
    %369 = vector.shape_cast %368 : vector<1x1x4x106xbf16> to vector<4x106xbf16>
    %c60_705 = arith.constant 60 : index
    %c256_706 = arith.constant 256 : index
    %370 = vector.load %arg5[%c60_705, %c256_706] : memref<108x1024xbf16, #tpu.memory_space<vmem>>, vector<4x106xbf16>
    tpu.vector_store %arg5[%c60_705, %c256_706], %369 {strides = array<i32>} : memref<108x1024xbf16, #tpu.memory_space<vmem>>, vector<4x106xbf16>,
    %c0_707 = arith.constant 0 : index
    %c4_708 = arith.constant 4 : index
    %c0_709 = arith.constant 0 : index
    %c20_710 = arith.constant 20 : index
    %371 = vector.load %arg1[%c0_707, %c4_708, %c0_709, %c20_710] : memref<1x10x4x128xbf16, #tpu.memory_space<vmem>>, vector<1x1x4x106xbf16>
    %372 = vector.shape_cast %371 : vector<1x1x4x106xbf16> to vector<4x106xbf16>
    %c60_711 = arith.constant 60 : index
    %c384_712 = arith.constant 384 : index
    %373 = vector.load %arg5[%c60_711, %c384_712] : memref<108x1024xbf16, #tpu.memory_space<vmem>>, vector<4x106xbf16>
    tpu.vector_store %arg5[%c60_711, %c384_712], %372 {strides = array<i32>} : memref<108x1024xbf16, #tpu.memory_space<vmem>>, vector<4x106xbf16>,
    %c0_713 = arith.constant 0 : index
    %c5_714 = arith.constant 5 : index
    %c0_715 = arith.constant 0 : index
    %c20_716 = arith.constant 20 : index
    %374 = vector.load %arg1[%c0_713, %c5_714, %c0_715, %c20_716] : memref<1x10x4x128xbf16, #tpu.memory_space<vmem>>, vector<1x1x4x106xbf16>
    %375 = vector.shape_cast %374 : vector<1x1x4x106xbf16> to vector<4x106xbf16>
    %c60_717 = arith.constant 60 : index
    %c512_718 = arith.constant 512 : index
    %376 = vector.load %arg5[%c60_717, %c512_718] : memref<108x1024xbf16, #tpu.memory_space<vmem>>, vector<4x106xbf16>
    tpu.vector_store %arg5[%c60_717, %c512_718], %375 {strides = array<i32>} : memref<108x1024xbf16, #tpu.memory_space<vmem>>, vector<4x106xbf16>,
    %c0_719 = arith.constant 0 : index
    %c6_720 = arith.constant 6 : index
    %c0_721 = arith.constant 0 : index
    %c20_722 = arith.constant 20 : index
    %377 = vector.load %arg1[%c0_719, %c6_720, %c0_721, %c20_722] : memref<1x10x4x128xbf16, #tpu.memory_space<vmem>>, vector<1x1x4x106xbf16>
    %378 = vector.shape_cast %377 : vector<1x1x4x106xbf16> to vector<4x106xbf16>
    %c60_723 = arith.constant 60 : index
    %c640_724 = arith.constant 640 : index
    %379 = vector.load %arg5[%c60_723, %c640_724] : memref<108x1024xbf16, #tpu.memory_space<vmem>>, vector<4x106xbf16>
    tpu.vector_store %arg5[%c60_723, %c640_724], %378 {strides = array<i32>} : memref<108x1024xbf16, #tpu.memory_space<vmem>>, vector<4x106xbf16>,
    %c0_725 = arith.constant 0 : index
    %c7_726 = arith.constant 7 : index
    %c0_727 = arith.constant 0 : index
    %c20_728 = arith.constant 20 : index
    %380 = vector.load %arg1[%c0_725, %c7_726, %c0_727, %c20_728] : memref<1x10x4x128xbf16, #tpu.memory_space<vmem>>, vector<1x1x4x106xbf16>
    %381 = vector.shape_cast %380 : vector<1x1x4x106xbf16> to vector<4x106xbf16>
    %c60_729 = arith.constant 60 : index
    %c768_730 = arith.constant 768 : index
    %382 = vector.load %arg5[%c60_729, %c768_730] : memref<108x1024xbf16, #tpu.memory_space<vmem>>, vector<4x106xbf16>
    tpu.vector_store %arg5[%c60_729, %c768_730], %381 {strides = array<i32>} : memref<108x1024xbf16, #tpu.memory_space<vmem>>, vector<4x106xbf16>,
    %c0_731 = arith.constant 0 : index
    %c8_732 = arith.constant 8 : index
    %c0_733 = arith.constant 0 : index
    %c20_734 = arith.constant 20 : index
    %383 = vector.load %arg1[%c0_731, %c8_732, %c0_733, %c20_734] : memref<1x10x4x128xbf16, #tpu.memory_space<vmem>>, vector<1x1x4x106xbf16>
    %384 = vector.shape_cast %383 : vector<1x1x4x106xbf16> to vector<4x106xbf16>
    %c60_735 = arith.constant 60 : index
    %c896_736 = arith.constant 896 : index
    %385 = vector.load %arg5[%c60_735, %c896_736] : memref<108x1024xbf16, #tpu.memory_space<vmem>>, vector<4x106xbf16>
    tpu.vector_store %arg5[%c60_735, %c896_736], %384 {strides = array<i32>} : memref<108x1024xbf16, #tpu.memory_space<vmem>>, vector<4x106xbf16>,
    %c0_737 = arith.constant 0 : index
    %c1_738 = arith.constant 1 : index
    %c0_739 = arith.constant 0 : index
    %c21_740 = arith.constant 21 : index
    %386 = vector.load %arg1[%c0_737, %c1_738, %c0_739, %c21_740] : memref<1x10x4x128xbf16, #tpu.memory_space<vmem>>, vector<1x1x4x106xbf16>
    %387 = vector.shape_cast %386 : vector<1x1x4x106xbf16> to vector<4x106xbf16>
    %c64 = arith.constant 64 : index
    %c0_741 = arith.constant 0 : index
    %388 = vector.load %arg5[%c64, %c0_741] : memref<108x1024xbf16, #tpu.memory_space<vmem>>, vector<4x106xbf16>
    tpu.vector_store %arg5[%c64, %c0_741], %387 {strides = array<i32>} : memref<108x1024xbf16, #tpu.memory_space<vmem>>, vector<4x106xbf16>,
    %c0_742 = arith.constant 0 : index
    %c2_743 = arith.constant 2 : index
    %c0_744 = arith.constant 0 : index
    %c21_745 = arith.constant 21 : index
    %389 = vector.load %arg1[%c0_742, %c2_743, %c0_744, %c21_745] : memref<1x10x4x128xbf16, #tpu.memory_space<vmem>>, vector<1x1x4x106xbf16>
    %390 = vector.shape_cast %389 : vector<1x1x4x106xbf16> to vector<4x106xbf16>
    %c64_746 = arith.constant 64 : index
    %c128_747 = arith.constant 128 : index
    %391 = vector.load %arg5[%c64_746, %c128_747] : memref<108x1024xbf16, #tpu.memory_space<vmem>>, vector<4x106xbf16>
    tpu.vector_store %arg5[%c64_746, %c128_747], %390 {strides = array<i32>} : memref<108x1024xbf16, #tpu.memory_space<vmem>>, vector<4x106xbf16>,
    %c0_748 = arith.constant 0 : index
    %c3_749 = arith.constant 3 : index
    %c0_750 = arith.constant 0 : index
    %c21_751 = arith.constant 21 : index
    %392 = vector.load %arg1[%c0_748, %c3_749, %c0_750, %c21_751] : memref<1x10x4x128xbf16, #tpu.memory_space<vmem>>, vector<1x1x4x106xbf16>
    %393 = vector.shape_cast %392 : vector<1x1x4x106xbf16> to vector<4x106xbf16>
    %c64_752 = arith.constant 64 : index
    %c256_753 = arith.constant 256 : index
    %394 = vector.load %arg5[%c64_752, %c256_753] : memref<108x1024xbf16, #tpu.memory_space<vmem>>, vector<4x106xbf16>
    tpu.vector_store %arg5[%c64_752, %c256_753], %393 {strides = array<i32>} : memref<108x1024xbf16, #tpu.memory_space<vmem>>, vector<4x106xbf16>,
    %c0_754 = arith.constant 0 : index
    %c4_755 = arith.constant 4 : index
    %c0_756 = arith.constant 0 : index
    %c21_757 = arith.constant 21 : index
    %395 = vector.load %arg1[%c0_754, %c4_755, %c0_756, %c21_757] : memref<1x10x4x128xbf16, #tpu.memory_space<vmem>>, vector<1x1x4x106xbf16>
    %396 = vector.shape_cast %395 : vector<1x1x4x106xbf16> to vector<4x106xbf16>
    %c64_758 = arith.constant 64 : index
    %c384_759 = arith.constant 384 : index
    %397 = vector.load %arg5[%c64_758, %c384_759] : memref<108x1024xbf16, #tpu.memory_space<vmem>>, vector<4x106xbf16>
    tpu.vector_store %arg5[%c64_758, %c384_759], %396 {strides = array<i32>} : memref<108x1024xbf16, #tpu.memory_space<vmem>>, vector<4x106xbf16>,
    %c0_760 = arith.constant 0 : index
    %c5_761 = arith.constant 5 : index
    %c0_762 = arith.constant 0 : index
    %c21_763 = arith.constant 21 : index
    %398 = vector.load %arg1[%c0_760, %c5_761, %c0_762, %c21_763] : memref<1x10x4x128xbf16, #tpu.memory_space<vmem>>, vector<1x1x4x106xbf16>
    %399 = vector.shape_cast %398 : vector<1x1x4x106xbf16> to vector<4x106xbf16>
    %c64_764 = arith.constant 64 : index
    %c512_765 = arith.constant 512 : index
    %400 = vector.load %arg5[%c64_764, %c512_765] : memref<108x1024xbf16, #tpu.memory_space<vmem>>, vector<4x106xbf16>
    tpu.vector_store %arg5[%c64_764, %c512_765], %399 {strides = array<i32>} : memref<108x1024xbf16, #tpu.memory_space<vmem>>, vector<4x106xbf16>,
    %c0_766 = arith.constant 0 : index
    %c6_767 = arith.constant 6 : index
    %c0_768 = arith.constant 0 : index
    %c21_769 = arith.constant 21 : index
    %401 = vector.load %arg1[%c0_766, %c6_767, %c0_768, %c21_769] : memref<1x10x4x128xbf16, #tpu.memory_space<vmem>>, vector<1x1x4x106xbf16>
    %402 = vector.shape_cast %401 : vector<1x1x4x106xbf16> to vector<4x106xbf16>
    %c64_770 = arith.constant 64 : index
    %c640_771 = arith.constant 640 : index
    %403 = vector.load %arg5[%c64_770, %c640_771] : memref<108x1024xbf16, #tpu.memory_space<vmem>>, vector<4x106xbf16>
    tpu.vector_store %arg5[%c64_770, %c640_771], %402 {strides = array<i32>} : memref<108x1024xbf16, #tpu.memory_space<vmem>>, vector<4x106xbf16>,
    %c0_772 = arith.constant 0 : index
    %c7_773 = arith.constant 7 : index
    %c0_774 = arith.constant 0 : index
    %c21_775 = arith.constant 21 : index
    %404 = vector.load %arg1[%c0_772, %c7_773, %c0_774, %c21_775] : memref<1x10x4x128xbf16, #tpu.memory_space<vmem>>, vector<1x1x4x106xbf16>
    %405 = vector.shape_cast %404 : vector<1x1x4x106xbf16> to vector<4x106xbf16>
    %c64_776 = arith.constant 64 : index
    %c768_777 = arith.constant 768 : index
    %406 = vector.load %arg5[%c64_776, %c768_777] : memref<108x1024xbf16, #tpu.memory_space<vmem>>, vector<4x106xbf16>
    tpu.vector_store %arg5[%c64_776, %c768_777], %405 {strides = array<i32>} : memref<108x1024xbf16, #tpu.memory_space<vmem>>, vector<4x106xbf16>,
    %c0_778 = arith.constant 0 : index
    %c8_779 = arith.constant 8 : index
    %c0_780 = arith.constant 0 : index
    %c21_781 = arith.constant 21 : index
    %407 = vector.load %arg1[%c0_778, %c8_779, %c0_780, %c21_781] : memref<1x10x4x128xbf16, #tpu.memory_space<vmem>>, vector<1x1x4x106xbf16>
    %408 = vector.shape_cast %407 : vector<1x1x4x106xbf16> to vector<4x106xbf16>
    %c64_782 = arith.constant 64 : index
    %c896_783 = arith.constant 896 : index
    %409 = vector.load %arg5[%c64_782, %c896_783] : memref<108x1024xbf16, #tpu.memory_space<vmem>>, vector<4x106xbf16>
    tpu.vector_store %arg5[%c64_782, %c896_783], %408 {strides = array<i32>} : memref<108x1024xbf16, #tpu.memory_space<vmem>>, vector<4x106xbf16>,
    %c0_784 = arith.constant 0 : index
    %c1_785 = arith.constant 1 : index
    %c0_786 = arith.constant 0 : index
    %c22_787 = arith.constant 22 : index
    %410 = vector.load %arg1[%c0_784, %c1_785, %c0_786, %c22_787] : memref<1x10x4x128xbf16, #tpu.memory_space<vmem>>, vector<1x1x4x106xbf16>
    %411 = vector.shape_cast %410 : vector<1x1x4x106xbf16> to vector<4x106xbf16>
    %c68 = arith.constant 68 : index
    %c0_788 = arith.constant 0 : index
    %412 = vector.load %arg5[%c68, %c0_788] : memref<108x1024xbf16, #tpu.memory_space<vmem>>, vector<4x106xbf16>
    tpu.vector_store %arg5[%c68, %c0_788], %411 {strides = array<i32>} : memref<108x1024xbf16, #tpu.memory_space<vmem>>, vector<4x106xbf16>,
    %c0_789 = arith.constant 0 : index
    %c2_790 = arith.constant 2 : index
    %c0_791 = arith.constant 0 : index
    %c22_792 = arith.constant 22 : index
    %413 = vector.load %arg1[%c0_789, %c2_790, %c0_791, %c22_792] : memref<1x10x4x128xbf16, #tpu.memory_space<vmem>>, vector<1x1x4x106xbf16>
    %414 = vector.shape_cast %413 : vector<1x1x4x106xbf16> to vector<4x106xbf16>
    %c68_793 = arith.constant 68 : index
    %c128_794 = arith.constant 128 : index
    %415 = vector.load %arg5[%c68_793, %c128_794] : memref<108x1024xbf16, #tpu.memory_space<vmem>>, vector<4x106xbf16>
    tpu.vector_store %arg5[%c68_793, %c128_794], %414 {strides = array<i32>} : memref<108x1024xbf16, #tpu.memory_space<vmem>>, vector<4x106xbf16>,
    %c0_795 = arith.constant 0 : index
    %c3_796 = arith.constant 3 : index
    %c0_797 = arith.constant 0 : index
    %c22_798 = arith.constant 22 : index
    %416 = vector.load %arg1[%c0_795, %c3_796, %c0_797, %c22_798] : memref<1x10x4x128xbf16, #tpu.memory_space<vmem>>, vector<1x1x4x106xbf16>
    %417 = vector.shape_cast %416 : vector<1x1x4x106xbf16> to vector<4x106xbf16>
    %c68_799 = arith.constant 68 : index
    %c256_800 = arith.constant 256 : index
    %418 = vector.load %arg5[%c68_799, %c256_800] : memref<108x1024xbf16, #tpu.memory_space<vmem>>, vector<4x106xbf16>
    tpu.vector_store %arg5[%c68_799, %c256_800], %417 {strides = array<i32>} : memref<108x1024xbf16, #tpu.memory_space<vmem>>, vector<4x106xbf16>,
    %c0_801 = arith.constant 0 : index
    %c4_802 = arith.constant 4 : index
    %c0_803 = arith.constant 0 : index
    %c22_804 = arith.constant 22 : index
    %419 = vector.load %arg1[%c0_801, %c4_802, %c0_803, %c22_804] : memref<1x10x4x128xbf16, #tpu.memory_space<vmem>>, vector<1x1x4x106xbf16>
    %420 = vector.shape_cast %419 : vector<1x1x4x106xbf16> to vector<4x106xbf16>
    %c68_805 = arith.constant 68 : index
    %c384_806 = arith.constant 384 : index
    %421 = vector.load %arg5[%c68_805, %c384_806] : memref<108x1024xbf16, #tpu.memory_space<vmem>>, vector<4x106xbf16>
    tpu.vector_store %arg5[%c68_805, %c384_806], %420 {strides = array<i32>} : memref<108x1024xbf16, #tpu.memory_space<vmem>>, vector<4x106xbf16>,
    %c0_807 = arith.constant 0 : index
    %c5_808 = arith.constant 5 : index
    %c0_809 = arith.constant 0 : index
    %c22_810 = arith.constant 22 : index
    %422 = vector.load %arg1[%c0_807, %c5_808, %c0_809, %c22_810] : memref<1x10x4x128xbf16, #tpu.memory_space<vmem>>, vector<1x1x4x106xbf16>
    %423 = vector.shape_cast %422 : vector<1x1x4x106xbf16> to vector<4x106xbf16>
    %c68_811 = arith.constant 68 : index
    %c512_812 = arith.constant 512 : index
    %424 = vector.load %arg5[%c68_811, %c512_812] : memref<108x1024xbf16, #tpu.memory_space<vmem>>, vector<4x106xbf16>
    tpu.vector_store %arg5[%c68_811, %c512_812], %423 {strides = array<i32>} : memref<108x1024xbf16, #tpu.memory_space<vmem>>, vector<4x106xbf16>,
    %c0_813 = arith.constant 0 : index
    %c6_814 = arith.constant 6 : index
    %c0_815 = arith.constant 0 : index
    %c22_816 = arith.constant 22 : index
    %425 = vector.load %arg1[%c0_813, %c6_814, %c0_815, %c22_816] : memref<1x10x4x128xbf16, #tpu.memory_space<vmem>>, vector<1x1x4x106xbf16>
    %426 = vector.shape_cast %425 : vector<1x1x4x106xbf16> to vector<4x106xbf16>
    %c68_817 = arith.constant 68 : index
    %c640_818 = arith.constant 640 : index
    %427 = vector.load %arg5[%c68_817, %c640_818] : memref<108x1024xbf16, #tpu.memory_space<vmem>>, vector<4x106xbf16>
    tpu.vector_store %arg5[%c68_817, %c640_818], %426 {strides = array<i32>} : memref<108x1024xbf16, #tpu.memory_space<vmem>>, vector<4x106xbf16>,
    %c0_819 = arith.constant 0 : index
    %c7_820 = arith.constant 7 : index
    %c0_821 = arith.constant 0 : index
    %c22_822 = arith.constant 22 : index
    %428 = vector.load %arg1[%c0_819, %c7_820, %c0_821, %c22_822] : memref<1x10x4x128xbf16, #tpu.memory_space<vmem>>, vector<1x1x4x106xbf16>
    %429 = vector.shape_cast %428 : vector<1x1x4x106xbf16> to vector<4x106xbf16>
    %c68_823 = arith.constant 68 : index
    %c768_824 = arith.constant 768 : index
    %430 = vector.load %arg5[%c68_823, %c768_824] : memref<108x1024xbf16, #tpu.memory_space<vmem>>, vector<4x106xbf16>
    tpu.vector_store %arg5[%c68_823, %c768_824], %429 {strides = array<i32>} : memref<108x1024xbf16, #tpu.memory_space<vmem>>, vector<4x106xbf16>,
    %c0_825 = arith.constant 0 : index
    %c8_826 = arith.constant 8 : index
    %c0_827 = arith.constant 0 : index
    %c22_828 = arith.constant 22 : index
    %431 = vector.load %arg1[%c0_825, %c8_826, %c0_827, %c22_828] : memref<1x10x4x128xbf16, #tpu.memory_space<vmem>>, vector<1x1x4x106xbf16>
    %432 = vector.shape_cast %431 : vector<1x1x4x106xbf16> to vector<4x106xbf16>
    %c68_829 = arith.constant 68 : index
    %c896_830 = arith.constant 896 : index
    %433 = vector.load %arg5[%c68_829, %c896_830] : memref<108x1024xbf16, #tpu.memory_space<vmem>>, vector<4x106xbf16>
    tpu.vector_store %arg5[%c68_829, %c896_830], %432 {strides = array<i32>} : memref<108x1024xbf16, #tpu.memory_space<vmem>>, vector<4x106xbf16>,
    %c0_831 = arith.constant 0 : index
    %c2_832 = arith.constant 2 : index
    %c0_833 = arith.constant 0 : index
    %c0_834 = arith.constant 0 : index
    %434 = vector.load %arg1[%c0_831, %c2_832, %c0_833, %c0_834] : memref<1x10x4x128xbf16, #tpu.memory_space<vmem>>, vector<1x1x4x106xbf16>
    %435 = vector.shape_cast %434 : vector<1x1x4x106xbf16> to vector<4x106xbf16>
    %c72 = arith.constant 72 : index
    %c0_835 = arith.constant 0 : index
    %436 = vector.load %arg5[%c72, %c0_835] : memref<108x1024xbf16, #tpu.memory_space<vmem>>, vector<4x106xbf16>
    tpu.vector_store %arg5[%c72, %c0_835], %435 {strides = array<i32>} : memref<108x1024xbf16, #tpu.memory_space<vmem>>, vector<4x106xbf16>,
    %c0_836 = arith.constant 0 : index
    %c3_837 = arith.constant 3 : index
    %c0_838 = arith.constant 0 : index
    %c0_839 = arith.constant 0 : index
    %437 = vector.load %arg1[%c0_836, %c3_837, %c0_838, %c0_839] : memref<1x10x4x128xbf16, #tpu.memory_space<vmem>>, vector<1x1x4x106xbf16>
    %438 = vector.shape_cast %437 : vector<1x1x4x106xbf16> to vector<4x106xbf16>
    %c72_840 = arith.constant 72 : index
    %c128_841 = arith.constant 128 : index
    %439 = vector.load %arg5[%c72_840, %c128_841] : memref<108x1024xbf16, #tpu.memory_space<vmem>>, vector<4x106xbf16>
    tpu.vector_store %arg5[%c72_840, %c128_841], %438 {strides = array<i32>} : memref<108x1024xbf16, #tpu.memory_space<vmem>>, vector<4x106xbf16>,
    %c0_842 = arith.constant 0 : index
    %c4_843 = arith.constant 4 : index
    %c0_844 = arith.constant 0 : index
    %c0_845 = arith.constant 0 : index
    %440 = vector.load %arg1[%c0_842, %c4_843, %c0_844, %c0_845] : memref<1x10x4x128xbf16, #tpu.memory_space<vmem>>, vector<1x1x4x106xbf16>
    %441 = vector.shape_cast %440 : vector<1x1x4x106xbf16> to vector<4x106xbf16>
    %c72_846 = arith.constant 72 : index
    %c256_847 = arith.constant 256 : index
    %442 = vector.load %arg5[%c72_846, %c256_847] : memref<108x1024xbf16, #tpu.memory_space<vmem>>, vector<4x106xbf16>
    tpu.vector_store %arg5[%c72_846, %c256_847], %441 {strides = array<i32>} : memref<108x1024xbf16, #tpu.memory_space<vmem>>, vector<4x106xbf16>,
    %c0_848 = arith.constant 0 : index
    %c5_849 = arith.constant 5 : index
    %c0_850 = arith.constant 0 : index
    %c0_851 = arith.constant 0 : index
    %443 = vector.load %arg1[%c0_848, %c5_849, %c0_850, %c0_851] : memref<1x10x4x128xbf16, #tpu.memory_space<vmem>>, vector<1x1x4x106xbf16>
    %444 = vector.shape_cast %443 : vector<1x1x4x106xbf16> to vector<4x106xbf16>
    %c72_852 = arith.constant 72 : index
    %c384_853 = arith.constant 384 : index
    %445 = vector.load %arg5[%c72_852, %c384_853] : memref<108x1024xbf16, #tpu.memory_space<vmem>>, vector<4x106xbf16>
    tpu.vector_store %arg5[%c72_852, %c384_853], %444 {strides = array<i32>} : memref<108x1024xbf16, #tpu.memory_space<vmem>>, vector<4x106xbf16>,
    %c0_854 = arith.constant 0 : index
    %c6_855 = arith.constant 6 : index
    %c0_856 = arith.constant 0 : index
    %c0_857 = arith.constant 0 : index
    %446 = vector.load %arg1[%c0_854, %c6_855, %c0_856, %c0_857] : memref<1x10x4x128xbf16, #tpu.memory_space<vmem>>, vector<1x1x4x106xbf16>
    %447 = vector.shape_cast %446 : vector<1x1x4x106xbf16> to vector<4x106xbf16>
    %c72_858 = arith.constant 72 : index
    %c512_859 = arith.constant 512 : index
    %448 = vector.load %arg5[%c72_858, %c512_859] : memref<108x1024xbf16, #tpu.memory_space<vmem>>, vector<4x106xbf16>
    tpu.vector_store %arg5[%c72_858, %c512_859], %447 {strides = array<i32>} : memref<108x1024xbf16, #tpu.memory_space<vmem>>, vector<4x106xbf16>,
    %c0_860 = arith.constant 0 : index
    %c7_861 = arith.constant 7 : index
    %c0_862 = arith.constant 0 : index
    %c0_863 = arith.constant 0 : index
    %449 = vector.load %arg1[%c0_860, %c7_861, %c0_862, %c0_863] : memref<1x10x4x128xbf16, #tpu.memory_space<vmem>>, vector<1x1x4x106xbf16>
    %450 = vector.shape_cast %449 : vector<1x1x4x106xbf16> to vector<4x106xbf16>
    %c72_864 = arith.constant 72 : index
    %c640_865 = arith.constant 640 : index
    %451 = vector.load %arg5[%c72_864, %c640_865] : memref<108x1024xbf16, #tpu.memory_space<vmem>>, vector<4x106xbf16>
    tpu.vector_store %arg5[%c72_864, %c640_865], %450 {strides = array<i32>} : memref<108x1024xbf16, #tpu.memory_space<vmem>>, vector<4x106xbf16>,
    %c0_866 = arith.constant 0 : index
    %c8_867 = arith.constant 8 : index
    %c0_868 = arith.constant 0 : index
    %c0_869 = arith.constant 0 : index
    %452 = vector.load %arg1[%c0_866, %c8_867, %c0_868, %c0_869] : memref<1x10x4x128xbf16, #tpu.memory_space<vmem>>, vector<1x1x4x106xbf16>
    %453 = vector.shape_cast %452 : vector<1x1x4x106xbf16> to vector<4x106xbf16>
    %c72_870 = arith.constant 72 : index
    %c768_871 = arith.constant 768 : index
    %454 = vector.load %arg5[%c72_870, %c768_871] : memref<108x1024xbf16, #tpu.memory_space<vmem>>, vector<4x106xbf16>
    tpu.vector_store %arg5[%c72_870, %c768_871], %453 {strides = array<i32>} : memref<108x1024xbf16, #tpu.memory_space<vmem>>, vector<4x106xbf16>,
    %c0_872 = arith.constant 0 : index
    %c9 = arith.constant 9 : index
    %c0_873 = arith.constant 0 : index
    %c0_874 = arith.constant 0 : index
    %455 = vector.load %arg1[%c0_872, %c9, %c0_873, %c0_874] : memref<1x10x4x128xbf16, #tpu.memory_space<vmem>>, vector<1x1x4x106xbf16>
    %456 = vector.shape_cast %455 : vector<1x1x4x106xbf16> to vector<4x106xbf16>
    %c72_875 = arith.constant 72 : index
    %c896_876 = arith.constant 896 : index
    %457 = vector.load %arg5[%c72_875, %c896_876] : memref<108x1024xbf16, #tpu.memory_space<vmem>>, vector<4x106xbf16>
    tpu.vector_store %arg5[%c72_875, %c896_876], %456 {strides = array<i32>} : memref<108x1024xbf16, #tpu.memory_space<vmem>>, vector<4x106xbf16>,
    %c0_877 = arith.constant 0 : index
    %c2_878 = arith.constant 2 : index
    %c0_879 = arith.constant 0 : index
    %c1_880 = arith.constant 1 : index
    %458 = vector.load %arg1[%c0_877, %c2_878, %c0_879, %c1_880] : memref<1x10x4x128xbf16, #tpu.memory_space<vmem>>, vector<1x1x4x106xbf16>
    %459 = vector.shape_cast %458 : vector<1x1x4x106xbf16> to vector<4x106xbf16>
    %c76 = arith.constant 76 : index
    %c0_881 = arith.constant 0 : index
    %460 = vector.load %arg5[%c76, %c0_881] : memref<108x1024xbf16, #tpu.memory_space<vmem>>, vector<4x106xbf16>
    tpu.vector_store %arg5[%c76, %c0_881], %459 {strides = array<i32>} : memref<108x1024xbf16, #tpu.memory_space<vmem>>, vector<4x106xbf16>,
    %c0_882 = arith.constant 0 : index
    %c3_883 = arith.constant 3 : index
    %c0_884 = arith.constant 0 : index
    %c1_885 = arith.constant 1 : index
    %461 = vector.load %arg1[%c0_882, %c3_883, %c0_884, %c1_885] : memref<1x10x4x128xbf16, #tpu.memory_space<vmem>>, vector<1x1x4x106xbf16>
    %462 = vector.shape_cast %461 : vector<1x1x4x106xbf16> to vector<4x106xbf16>
    %c76_886 = arith.constant 76 : index
    %c128_887 = arith.constant 128 : index
    %463 = vector.load %arg5[%c76_886, %c128_887] : memref<108x1024xbf16, #tpu.memory_space<vmem>>, vector<4x106xbf16>
    tpu.vector_store %arg5[%c76_886, %c128_887], %462 {strides = array<i32>} : memref<108x1024xbf16, #tpu.memory_space<vmem>>, vector<4x106xbf16>,
    %c0_888 = arith.constant 0 : index
    %c4_889 = arith.constant 4 : index
    %c0_890 = arith.constant 0 : index
    %c1_891 = arith.constant 1 : index
    %464 = vector.load %arg1[%c0_888, %c4_889, %c0_890, %c1_891] : memref<1x10x4x128xbf16, #tpu.memory_space<vmem>>, vector<1x1x4x106xbf16>
    %465 = vector.shape_cast %464 : vector<1x1x4x106xbf16> to vector<4x106xbf16>
    %c76_892 = arith.constant 76 : index
    %c256_893 = arith.constant 256 : index
    %466 = vector.load %arg5[%c76_892, %c256_893] : memref<108x1024xbf16, #tpu.memory_space<vmem>>, vector<4x106xbf16>
    tpu.vector_store %arg5[%c76_892, %c256_893], %465 {strides = array<i32>} : memref<108x1024xbf16, #tpu.memory_space<vmem>>, vector<4x106xbf16>,
    %c0_894 = arith.constant 0 : index
    %c5_895 = arith.constant 5 : index
    %c0_896 = arith.constant 0 : index
    %c1_897 = arith.constant 1 : index
    %467 = vector.load %arg1[%c0_894, %c5_895, %c0_896, %c1_897] : memref<1x10x4x128xbf16, #tpu.memory_space<vmem>>, vector<1x1x4x106xbf16>
    %468 = vector.shape_cast %467 : vector<1x1x4x106xbf16> to vector<4x106xbf16>
    %c76_898 = arith.constant 76 : index
    %c384_899 = arith.constant 384 : index
    %469 = vector.load %arg5[%c76_898, %c384_899] : memref<108x1024xbf16, #tpu.memory_space<vmem>>, vector<4x106xbf16>
    tpu.vector_store %arg5[%c76_898, %c384_899], %468 {strides = array<i32>} : memref<108x1024xbf16, #tpu.memory_space<vmem>>, vector<4x106xbf16>,
    %c0_900 = arith.constant 0 : index
    %c6_901 = arith.constant 6 : index
    %c0_902 = arith.constant 0 : index
    %c1_903 = arith.constant 1 : index
    %470 = vector.load %arg1[%c0_900, %c6_901, %c0_902, %c1_903] : memref<1x10x4x128xbf16, #tpu.memory_space<vmem>>, vector<1x1x4x106xbf16>
    %471 = vector.shape_cast %470 : vector<1x1x4x106xbf16> to vector<4x106xbf16>
    %c76_904 = arith.constant 76 : index
    %c512_905 = arith.constant 512 : index
    %472 = vector.load %arg5[%c76_904, %c512_905] : memref<108x1024xbf16, #tpu.memory_space<vmem>>, vector<4x106xbf16>
    tpu.vector_store %arg5[%c76_904, %c512_905], %471 {strides = array<i32>} : memref<108x1024xbf16, #tpu.memory_space<vmem>>, vector<4x106xbf16>,
    %c0_906 = arith.constant 0 : index
    %c7_907 = arith.constant 7 : index
    %c0_908 = arith.constant 0 : index
    %c1_909 = arith.constant 1 : index
    %473 = vector.load %arg1[%c0_906, %c7_907, %c0_908, %c1_909] : memref<1x10x4x128xbf16, #tpu.memory_space<vmem>>, vector<1x1x4x106xbf16>
    %474 = vector.shape_cast %473 : vector<1x1x4x106xbf16> to vector<4x106xbf16>
    %c76_910 = arith.constant 76 : index
    %c640_911 = arith.constant 640 : index
    %475 = vector.load %arg5[%c76_910, %c640_911] : memref<108x1024xbf16, #tpu.memory_space<vmem>>, vector<4x106xbf16>
    tpu.vector_store %arg5[%c76_910, %c640_911], %474 {strides = array<i32>} : memref<108x1024xbf16, #tpu.memory_space<vmem>>, vector<4x106xbf16>,
    %c0_912 = arith.constant 0 : index
    %c8_913 = arith.constant 8 : index
    %c0_914 = arith.constant 0 : index
    %c1_915 = arith.constant 1 : index
    %476 = vector.load %arg1[%c0_912, %c8_913, %c0_914, %c1_915] : memref<1x10x4x128xbf16, #tpu.memory_space<vmem>>, vector<1x1x4x106xbf16>
    %477 = vector.shape_cast %476 : vector<1x1x4x106xbf16> to vector<4x106xbf16>
    %c76_916 = arith.constant 76 : index
    %c768_917 = arith.constant 768 : index
    %478 = vector.load %arg5[%c76_916, %c768_917] : memref<108x1024xbf16, #tpu.memory_space<vmem>>, vector<4x106xbf16>
    tpu.vector_store %arg5[%c76_916, %c768_917], %477 {strides = array<i32>} : memref<108x1024xbf16, #tpu.memory_space<vmem>>, vector<4x106xbf16>,
    %c0_918 = arith.constant 0 : index
    %c9_919 = arith.constant 9 : index
    %c0_920 = arith.constant 0 : index
    %c1_921 = arith.constant 1 : index
    %479 = vector.load %arg1[%c0_918, %c9_919, %c0_920, %c1_921] : memref<1x10x4x128xbf16, #tpu.memory_space<vmem>>, vector<1x1x4x106xbf16>
    %480 = vector.shape_cast %479 : vector<1x1x4x106xbf16> to vector<4x106xbf16>
    %c76_922 = arith.constant 76 : index
    %c896_923 = arith.constant 896 : index
    %481 = vector.load %arg5[%c76_922, %c896_923] : memref<108x1024xbf16, #tpu.memory_space<vmem>>, vector<4x106xbf16>
    tpu.vector_store %arg5[%c76_922, %c896_923], %480 {strides = array<i32>} : memref<108x1024xbf16, #tpu.memory_space<vmem>>, vector<4x106xbf16>,
    %c0_924 = arith.constant 0 : index
    %c2_925 = arith.constant 2 : index
    %c0_926 = arith.constant 0 : index
    %c2_927 = arith.constant 2 : index
    %482 = vector.load %arg1[%c0_924, %c2_925, %c0_926, %c2_927] : memref<1x10x4x128xbf16, #tpu.memory_space<vmem>>, vector<1x1x4x106xbf16>
    %483 = vector.shape_cast %482 : vector<1x1x4x106xbf16> to vector<4x106xbf16>
    %c80 = arith.constant 80 : index
    %c0_928 = arith.constant 0 : index
    %484 = vector.load %arg5[%c80, %c0_928] : memref<108x1024xbf16, #tpu.memory_space<vmem>>, vector<4x106xbf16>
    tpu.vector_store %arg5[%c80, %c0_928], %483 {strides = array<i32>} : memref<108x1024xbf16, #tpu.memory_space<vmem>>, vector<4x106xbf16>,
    %c0_929 = arith.constant 0 : index
    %c3_930 = arith.constant 3 : index
    %c0_931 = arith.constant 0 : index
    %c2_932 = arith.constant 2 : index
    %485 = vector.load %arg1[%c0_929, %c3_930, %c0_931, %c2_932] : memref<1x10x4x128xbf16, #tpu.memory_space<vmem>>, vector<1x1x4x106xbf16>
    %486 = vector.shape_cast %485 : vector<1x1x4x106xbf16> to vector<4x106xbf16>
    %c80_933 = arith.constant 80 : index
    %c128_934 = arith.constant 128 : index
    %487 = vector.load %arg5[%c80_933, %c128_934] : memref<108x1024xbf16, #tpu.memory_space<vmem>>, vector<4x106xbf16>
    tpu.vector_store %arg5[%c80_933, %c128_934], %486 {strides = array<i32>} : memref<108x1024xbf16, #tpu.memory_space<vmem>>, vector<4x106xbf16>,
    %c0_935 = arith.constant 0 : index
    %c4_936 = arith.constant 4 : index
    %c0_937 = arith.constant 0 : index
    %c2_938 = arith.constant 2 : index
    %488 = vector.load %arg1[%c0_935, %c4_936, %c0_937, %c2_938] : memref<1x10x4x128xbf16, #tpu.memory_space<vmem>>, vector<1x1x4x106xbf16>
    %489 = vector.shape_cast %488 : vector<1x1x4x106xbf16> to vector<4x106xbf16>
    %c80_939 = arith.constant 80 : index
    %c256_940 = arith.constant 256 : index
    %490 = vector.load %arg5[%c80_939, %c256_940] : memref<108x1024xbf16, #tpu.memory_space<vmem>>, vector<4x106xbf16>
    tpu.vector_store %arg5[%c80_939, %c256_940], %489 {strides = array<i32>} : memref<108x1024xbf16, #tpu.memory_space<vmem>>, vector<4x106xbf16>,
    %c0_941 = arith.constant 0 : index
    %c5_942 = arith.constant 5 : index
    %c0_943 = arith.constant 0 : index
    %c2_944 = arith.constant 2 : index
    %491 = vector.load %arg1[%c0_941, %c5_942, %c0_943, %c2_944] : memref<1x10x4x128xbf16, #tpu.memory_space<vmem>>, vector<1x1x4x106xbf16>
    %492 = vector.shape_cast %491 : vector<1x1x4x106xbf16> to vector<4x106xbf16>
    %c80_945 = arith.constant 80 : index
    %c384_946 = arith.constant 384 : index
    %493 = vector.load %arg5[%c80_945, %c384_946] : memref<108x1024xbf16, #tpu.memory_space<vmem>>, vector<4x106xbf16>
    tpu.vector_store %arg5[%c80_945, %c384_946], %492 {strides = array<i32>} : memref<108x1024xbf16, #tpu.memory_space<vmem>>, vector<4x106xbf16>,
    %c0_947 = arith.constant 0 : index
    %c6_948 = arith.constant 6 : index
    %c0_949 = arith.constant 0 : index
    %c2_950 = arith.constant 2 : index
    %494 = vector.load %arg1[%c0_947, %c6_948, %c0_949, %c2_950] : memref<1x10x4x128xbf16, #tpu.memory_space<vmem>>, vector<1x1x4x106xbf16>
    %495 = vector.shape_cast %494 : vector<1x1x4x106xbf16> to vector<4x106xbf16>
    %c80_951 = arith.constant 80 : index
    %c512_952 = arith.constant 512 : index
    %496 = vector.load %arg5[%c80_951, %c512_952] : memref<108x1024xbf16, #tpu.memory_space<vmem>>, vector<4x106xbf16>
    tpu.vector_store %arg5[%c80_951, %c512_952], %495 {strides = array<i32>} : memref<108x1024xbf16, #tpu.memory_space<vmem>>, vector<4x106xbf16>,
    %c0_953 = arith.constant 0 : index
    %c7_954 = arith.constant 7 : index
    %c0_955 = arith.constant 0 : index
    %c2_956 = arith.constant 2 : index
    %497 = vector.load %arg1[%c0_953, %c7_954, %c0_955, %c2_956] : memref<1x10x4x128xbf16, #tpu.memory_space<vmem>>, vector<1x1x4x106xbf16>
    %498 = vector.shape_cast %497 : vector<1x1x4x106xbf16> to vector<4x106xbf16>
    %c80_957 = arith.constant 80 : index
    %c640_958 = arith.constant 640 : index
    %499 = vector.load %arg5[%c80_957, %c640_958] : memref<108x1024xbf16, #tpu.memory_space<vmem>>, vector<4x106xbf16>
    tpu.vector_store %arg5[%c80_957, %c640_958], %498 {strides = array<i32>} : memref<108x1024xbf16, #tpu.memory_space<vmem>>, vector<4x106xbf16>,
    %c0_959 = arith.constant 0 : index
    %c8_960 = arith.constant 8 : index
    %c0_961 = arith.constant 0 : index
    %c2_962 = arith.constant 2 : index
    %500 = vector.load %arg1[%c0_959, %c8_960, %c0_961, %c2_962] : memref<1x10x4x128xbf16, #tpu.memory_space<vmem>>, vector<1x1x4x106xbf16>
    %501 = vector.shape_cast %500 : vector<1x1x4x106xbf16> to vector<4x106xbf16>
    %c80_963 = arith.constant 80 : index
    %c768_964 = arith.constant 768 : index
    %502 = vector.load %arg5[%c80_963, %c768_964] : memref<108x1024xbf16, #tpu.memory_space<vmem>>, vector<4x106xbf16>
    tpu.vector_store %arg5[%c80_963, %c768_964], %501 {strides = array<i32>} : memref<108x1024xbf16, #tpu.memory_space<vmem>>, vector<4x106xbf16>,
    %c0_965 = arith.constant 0 : index
    %c9_966 = arith.constant 9 : index
    %c0_967 = arith.constant 0 : index
    %c2_968 = arith.constant 2 : index
    %503 = vector.load %arg1[%c0_965, %c9_966, %c0_967, %c2_968] : memref<1x10x4x128xbf16, #tpu.memory_space<vmem>>, vector<1x1x4x106xbf16>
    %504 = vector.shape_cast %503 : vector<1x1x4x106xbf16> to vector<4x106xbf16>
    %c80_969 = arith.constant 80 : index
    %c896_970 = arith.constant 896 : index
    %505 = vector.load %arg5[%c80_969, %c896_970] : memref<108x1024xbf16, #tpu.memory_space<vmem>>, vector<4x106xbf16>
    tpu.vector_store %arg5[%c80_969, %c896_970], %504 {strides = array<i32>} : memref<108x1024xbf16, #tpu.memory_space<vmem>>, vector<4x106xbf16>,
    %c0_971 = arith.constant 0 : index
    %c2_972 = arith.constant 2 : index
    %c0_973 = arith.constant 0 : index
    %c10_974 = arith.constant 10 : index
    %506 = vector.load %arg1[%c0_971, %c2_972, %c0_973, %c10_974] : memref<1x10x4x128xbf16, #tpu.memory_space<vmem>>, vector<1x1x4x106xbf16>
    %507 = vector.shape_cast %506 : vector<1x1x4x106xbf16> to vector<4x106xbf16>
    %c84 = arith.constant 84 : index
    %c0_975 = arith.constant 0 : index
    %508 = vector.load %arg5[%c84, %c0_975] : memref<108x1024xbf16, #tpu.memory_space<vmem>>, vector<4x106xbf16>
    tpu.vector_store %arg5[%c84, %c0_975], %507 {strides = array<i32>} : memref<108x1024xbf16, #tpu.memory_space<vmem>>, vector<4x106xbf16>,
    %c0_976 = arith.constant 0 : index
    %c3_977 = arith.constant 3 : index
    %c0_978 = arith.constant 0 : index
    %c10_979 = arith.constant 10 : index
    %509 = vector.load %arg1[%c0_976, %c3_977, %c0_978, %c10_979] : memref<1x10x4x128xbf16, #tpu.memory_space<vmem>>, vector<1x1x4x106xbf16>
    %510 = vector.shape_cast %509 : vector<1x1x4x106xbf16> to vector<4x106xbf16>
    %c84_980 = arith.constant 84 : index
    %c128_981 = arith.constant 128 : index
    %511 = vector.load %arg5[%c84_980, %c128_981] : memref<108x1024xbf16, #tpu.memory_space<vmem>>, vector<4x106xbf16>
    tpu.vector_store %arg5[%c84_980, %c128_981], %510 {strides = array<i32>} : memref<108x1024xbf16, #tpu.memory_space<vmem>>, vector<4x106xbf16>,
    %c0_982 = arith.constant 0 : index
    %c4_983 = arith.constant 4 : index
    %c0_984 = arith.constant 0 : index
    %c10_985 = arith.constant 10 : index
    %512 = vector.load %arg1[%c0_982, %c4_983, %c0_984, %c10_985] : memref<1x10x4x128xbf16, #tpu.memory_space<vmem>>, vector<1x1x4x106xbf16>
    %513 = vector.shape_cast %512 : vector<1x1x4x106xbf16> to vector<4x106xbf16>
    %c84_986 = arith.constant 84 : index
    %c256_987 = arith.constant 256 : index
    %514 = vector.load %arg5[%c84_986, %c256_987] : memref<108x1024xbf16, #tpu.memory_space<vmem>>, vector<4x106xbf16>
    tpu.vector_store %arg5[%c84_986, %c256_987], %513 {strides = array<i32>} : memref<108x1024xbf16, #tpu.memory_space<vmem>>, vector<4x106xbf16>,
    %c0_988 = arith.constant 0 : index
    %c5_989 = arith.constant 5 : index
    %c0_990 = arith.constant 0 : index
    %c10_991 = arith.constant 10 : index
    %515 = vector.load %arg1[%c0_988, %c5_989, %c0_990, %c10_991] : memref<1x10x4x128xbf16, #tpu.memory_space<vmem>>, vector<1x1x4x106xbf16>
    %516 = vector.shape_cast %515 : vector<1x1x4x106xbf16> to vector<4x106xbf16>
    %c84_992 = arith.constant 84 : index
    %c384_993 = arith.constant 384 : index
    %517 = vector.load %arg5[%c84_992, %c384_993] : memref<108x1024xbf16, #tpu.memory_space<vmem>>, vector<4x106xbf16>
    tpu.vector_store %arg5[%c84_992, %c384_993], %516 {strides = array<i32>} : memref<108x1024xbf16, #tpu.memory_space<vmem>>, vector<4x106xbf16>,
    %c0_994 = arith.constant 0 : index
    %c6_995 = arith.constant 6 : index
    %c0_996 = arith.constant 0 : index
    %c10_997 = arith.constant 10 : index
    %518 = vector.load %arg1[%c0_994, %c6_995, %c0_996, %c10_997] : memref<1x10x4x128xbf16, #tpu.memory_space<vmem>>, vector<1x1x4x106xbf16>
    %519 = vector.shape_cast %518 : vector<1x1x4x106xbf16> to vector<4x106xbf16>
    %c84_998 = arith.constant 84 : index
    %c512_999 = arith.constant 512 : index
    %520 = vector.load %arg5[%c84_998, %c512_999] : memref<108x1024xbf16, #tpu.memory_space<vmem>>, vector<4x106xbf16>
    tpu.vector_store %arg5[%c84_998, %c512_999], %519 {strides = array<i32>} : memref<108x1024xbf16, #tpu.memory_space<vmem>>, vector<4x106xbf16>,
    %c0_1000 = arith.constant 0 : index
    %c7_1001 = arith.constant 7 : index
    %c0_1002 = arith.constant 0 : index
    %c10_1003 = arith.constant 10 : index
    %521 = vector.load %arg1[%c0_1000, %c7_1001, %c0_1002, %c10_1003] : memref<1x10x4x128xbf16, #tpu.memory_space<vmem>>, vector<1x1x4x106xbf16>
    %522 = vector.shape_cast %521 : vector<1x1x4x106xbf16> to vector<4x106xbf16>
    %c84_1004 = arith.constant 84 : index
    %c640_1005 = arith.constant 640 : index
    %523 = vector.load %arg5[%c84_1004, %c640_1005] : memref<108x1024xbf16, #tpu.memory_space<vmem>>, vector<4x106xbf16>
    tpu.vector_store %arg5[%c84_1004, %c640_1005], %522 {strides = array<i32>} : memref<108x1024xbf16, #tpu.memory_space<vmem>>, vector<4x106xbf16>,
    %c0_1006 = arith.constant 0 : index
    %c8_1007 = arith.constant 8 : index
    %c0_1008 = arith.constant 0 : index
    %c10_1009 = arith.constant 10 : index
    %524 = vector.load %arg1[%c0_1006, %c8_1007, %c0_1008, %c10_1009] : memref<1x10x4x128xbf16, #tpu.memory_space<vmem>>, vector<1x1x4x106xbf16>
    %525 = vector.shape_cast %524 : vector<1x1x4x106xbf16> to vector<4x106xbf16>
    %c84_1010 = arith.constant 84 : index
    %c768_1011 = arith.constant 768 : index
    %526 = vector.load %arg5[%c84_1010, %c768_1011] : memref<108x1024xbf16, #tpu.memory_space<vmem>>, vector<4x106xbf16>
    tpu.vector_store %arg5[%c84_1010, %c768_1011], %525 {strides = array<i32>} : memref<108x1024xbf16, #tpu.memory_space<vmem>>, vector<4x106xbf16>,
    %c0_1012 = arith.constant 0 : index
    %c9_1013 = arith.constant 9 : index
    %c0_1014 = arith.constant 0 : index
    %c10_1015 = arith.constant 10 : index
    %527 = vector.load %arg1[%c0_1012, %c9_1013, %c0_1014, %c10_1015] : memref<1x10x4x128xbf16, #tpu.memory_space<vmem>>, vector<1x1x4x106xbf16>
    %528 = vector.shape_cast %527 : vector<1x1x4x106xbf16> to vector<4x106xbf16>
    %c84_1016 = arith.constant 84 : index
    %c896_1017 = arith.constant 896 : index
    %529 = vector.load %arg5[%c84_1016, %c896_1017] : memref<108x1024xbf16, #tpu.memory_space<vmem>>, vector<4x106xbf16>
    tpu.vector_store %arg5[%c84_1016, %c896_1017], %528 {strides = array<i32>} : memref<108x1024xbf16, #tpu.memory_space<vmem>>, vector<4x106xbf16>,
    %c0_1018 = arith.constant 0 : index
    %c2_1019 = arith.constant 2 : index
    %c0_1020 = arith.constant 0 : index
    %c11_1021 = arith.constant 11 : index
    %530 = vector.load %arg1[%c0_1018, %c2_1019, %c0_1020, %c11_1021] : memref<1x10x4x128xbf16, #tpu.memory_space<vmem>>, vector<1x1x4x106xbf16>
    %531 = vector.shape_cast %530 : vector<1x1x4x106xbf16> to vector<4x106xbf16>
    %c88 = arith.constant 88 : index
    %c0_1022 = arith.constant 0 : index
    %532 = vector.load %arg5[%c88, %c0_1022] : memref<108x1024xbf16, #tpu.memory_space<vmem>>, vector<4x106xbf16>
    tpu.vector_store %arg5[%c88, %c0_1022], %531 {strides = array<i32>} : memref<108x1024xbf16, #tpu.memory_space<vmem>>, vector<4x106xbf16>,
    %c0_1023 = arith.constant 0 : index
    %c3_1024 = arith.constant 3 : index
    %c0_1025 = arith.constant 0 : index
    %c11_1026 = arith.constant 11 : index
    %533 = vector.load %arg1[%c0_1023, %c3_1024, %c0_1025, %c11_1026] : memref<1x10x4x128xbf16, #tpu.memory_space<vmem>>, vector<1x1x4x106xbf16>
    %534 = vector.shape_cast %533 : vector<1x1x4x106xbf16> to vector<4x106xbf16>
    %c88_1027 = arith.constant 88 : index
    %c128_1028 = arith.constant 128 : index
    %535 = vector.load %arg5[%c88_1027, %c128_1028] : memref<108x1024xbf16, #tpu.memory_space<vmem>>, vector<4x106xbf16>
    tpu.vector_store %arg5[%c88_1027, %c128_1028], %534 {strides = array<i32>} : memref<108x1024xbf16, #tpu.memory_space<vmem>>, vector<4x106xbf16>,
    %c0_1029 = arith.constant 0 : index
    %c4_1030 = arith.constant 4 : index
    %c0_1031 = arith.constant 0 : index
    %c11_1032 = arith.constant 11 : index
    %536 = vector.load %arg1[%c0_1029, %c4_1030, %c0_1031, %c11_1032] : memref<1x10x4x128xbf16, #tpu.memory_space<vmem>>, vector<1x1x4x106xbf16>
    %537 = vector.shape_cast %536 : vector<1x1x4x106xbf16> to vector<4x106xbf16>
    %c88_1033 = arith.constant 88 : index
    %c256_1034 = arith.constant 256 : index
    %538 = vector.load %arg5[%c88_1033, %c256_1034] : memref<108x1024xbf16, #tpu.memory_space<vmem>>, vector<4x106xbf16>
    tpu.vector_store %arg5[%c88_1033, %c256_1034], %537 {strides = array<i32>} : memref<108x1024xbf16, #tpu.memory_space<vmem>>, vector<4x106xbf16>,
    %c0_1035 = arith.constant 0 : index
    %c5_1036 = arith.constant 5 : index
    %c0_1037 = arith.constant 0 : index
    %c11_1038 = arith.constant 11 : index
    %539 = vector.load %arg1[%c0_1035, %c5_1036, %c0_1037, %c11_1038] : memref<1x10x4x128xbf16, #tpu.memory_space<vmem>>, vector<1x1x4x106xbf16>
    %540 = vector.shape_cast %539 : vector<1x1x4x106xbf16> to vector<4x106xbf16>
    %c88_1039 = arith.constant 88 : index
    %c384_1040 = arith.constant 384 : index
    %541 = vector.load %arg5[%c88_1039, %c384_1040] : memref<108x1024xbf16, #tpu.memory_space<vmem>>, vector<4x106xbf16>
    tpu.vector_store %arg5[%c88_1039, %c384_1040], %540 {strides = array<i32>} : memref<108x1024xbf16, #tpu.memory_space<vmem>>, vector<4x106xbf16>,
    %c0_1041 = arith.constant 0 : index
    %c6_1042 = arith.constant 6 : index
    %c0_1043 = arith.constant 0 : index
    %c11_1044 = arith.constant 11 : index
    %542 = vector.load %arg1[%c0_1041, %c6_1042, %c0_1043, %c11_1044] : memref<1x10x4x128xbf16, #tpu.memory_space<vmem>>, vector<1x1x4x106xbf16>
    %543 = vector.shape_cast %542 : vector<1x1x4x106xbf16> to vector<4x106xbf16>
    %c88_1045 = arith.constant 88 : index
    %c512_1046 = arith.constant 512 : index
    %544 = vector.load %arg5[%c88_1045, %c512_1046] : memref<108x1024xbf16, #tpu.memory_space<vmem>>, vector<4x106xbf16>
    tpu.vector_store %arg5[%c88_1045, %c512_1046], %543 {strides = array<i32>} : memref<108x1024xbf16, #tpu.memory_space<vmem>>, vector<4x106xbf16>,
    %c0_1047 = arith.constant 0 : index
    %c7_1048 = arith.constant 7 : index
    %c0_1049 = arith.constant 0 : index
    %c11_1050 = arith.constant 11 : index
    %545 = vector.load %arg1[%c0_1047, %c7_1048, %c0_1049, %c11_1050] : memref<1x10x4x128xbf16, #tpu.memory_space<vmem>>, vector<1x1x4x106xbf16>
    %546 = vector.shape_cast %545 : vector<1x1x4x106xbf16> to vector<4x106xbf16>
    %c88_1051 = arith.constant 88 : index
    %c640_1052 = arith.constant 640 : index
    %547 = vector.load %arg5[%c88_1051, %c640_1052] : memref<108x1024xbf16, #tpu.memory_space<vmem>>, vector<4x106xbf16>
    tpu.vector_store %arg5[%c88_1051, %c640_1052], %546 {strides = array<i32>} : memref<108x1024xbf16, #tpu.memory_space<vmem>>, vector<4x106xbf16>,
    %c0_1053 = arith.constant 0 : index
    %c8_1054 = arith.constant 8 : index
    %c0_1055 = arith.constant 0 : index
    %c11_1056 = arith.constant 11 : index
    %548 = vector.load %arg1[%c0_1053, %c8_1054, %c0_1055, %c11_1056] : memref<1x10x4x128xbf16, #tpu.memory_space<vmem>>, vector<1x1x4x106xbf16>
    %549 = vector.shape_cast %548 : vector<1x1x4x106xbf16> to vector<4x106xbf16>
    %c88_1057 = arith.constant 88 : index
    %c768_1058 = arith.constant 768 : index
    %550 = vector.load %arg5[%c88_1057, %c768_1058] : memref<108x1024xbf16, #tpu.memory_space<vmem>>, vector<4x106xbf16>
    tpu.vector_store %arg5[%c88_1057, %c768_1058], %549 {strides = array<i32>} : memref<108x1024xbf16, #tpu.memory_space<vmem>>, vector<4x106xbf16>,
    %c0_1059 = arith.constant 0 : index
    %c9_1060 = arith.constant 9 : index
    %c0_1061 = arith.constant 0 : index
    %c11_1062 = arith.constant 11 : index
    %551 = vector.load %arg1[%c0_1059, %c9_1060, %c0_1061, %c11_1062] : memref<1x10x4x128xbf16, #tpu.memory_space<vmem>>, vector<1x1x4x106xbf16>
    %552 = vector.shape_cast %551 : vector<1x1x4x106xbf16> to vector<4x106xbf16>
    %c88_1063 = arith.constant 88 : index
    %c896_1064 = arith.constant 896 : index
    %553 = vector.load %arg5[%c88_1063, %c896_1064] : memref<108x1024xbf16, #tpu.memory_space<vmem>>, vector<4x106xbf16>
    tpu.vector_store %arg5[%c88_1063, %c896_1064], %552 {strides = array<i32>} : memref<108x1024xbf16, #tpu.memory_space<vmem>>, vector<4x106xbf16>,
    %c0_1065 = arith.constant 0 : index
    %c2_1066 = arith.constant 2 : index
    %c0_1067 = arith.constant 0 : index
    %c12_1068 = arith.constant 12 : index
    %554 = vector.load %arg1[%c0_1065, %c2_1066, %c0_1067, %c12_1068] : memref<1x10x4x128xbf16, #tpu.memory_space<vmem>>, vector<1x1x4x106xbf16>
    %555 = vector.shape_cast %554 : vector<1x1x4x106xbf16> to vector<4x106xbf16>
    %c92 = arith.constant 92 : index
    %c0_1069 = arith.constant 0 : index
    %556 = vector.load %arg5[%c92, %c0_1069] : memref<108x1024xbf16, #tpu.memory_space<vmem>>, vector<4x106xbf16>
    tpu.vector_store %arg5[%c92, %c0_1069], %555 {strides = array<i32>} : memref<108x1024xbf16, #tpu.memory_space<vmem>>, vector<4x106xbf16>,
    %c0_1070 = arith.constant 0 : index
    %c3_1071 = arith.constant 3 : index
    %c0_1072 = arith.constant 0 : index
    %c12_1073 = arith.constant 12 : index
    %557 = vector.load %arg1[%c0_1070, %c3_1071, %c0_1072, %c12_1073] : memref<1x10x4x128xbf16, #tpu.memory_space<vmem>>, vector<1x1x4x106xbf16>
    %558 = vector.shape_cast %557 : vector<1x1x4x106xbf16> to vector<4x106xbf16>
    %c92_1074 = arith.constant 92 : index
    %c128_1075 = arith.constant 128 : index
    %559 = vector.load %arg5[%c92_1074, %c128_1075] : memref<108x1024xbf16, #tpu.memory_space<vmem>>, vector<4x106xbf16>
    tpu.vector_store %arg5[%c92_1074, %c128_1075], %558 {strides = array<i32>} : memref<108x1024xbf16, #tpu.memory_space<vmem>>, vector<4x106xbf16>,
    %c0_1076 = arith.constant 0 : index
    %c4_1077 = arith.constant 4 : index
    %c0_1078 = arith.constant 0 : index
    %c12_1079 = arith.constant 12 : index
    %560 = vector.load %arg1[%c0_1076, %c4_1077, %c0_1078, %c12_1079] : memref<1x10x4x128xbf16, #tpu.memory_space<vmem>>, vector<1x1x4x106xbf16>
    %561 = vector.shape_cast %560 : vector<1x1x4x106xbf16> to vector<4x106xbf16>
    %c92_1080 = arith.constant 92 : index
    %c256_1081 = arith.constant 256 : index
    %562 = vector.load %arg5[%c92_1080, %c256_1081] : memref<108x1024xbf16, #tpu.memory_space<vmem>>, vector<4x106xbf16>
    tpu.vector_store %arg5[%c92_1080, %c256_1081], %561 {strides = array<i32>} : memref<108x1024xbf16, #tpu.memory_space<vmem>>, vector<4x106xbf16>,
    %c0_1082 = arith.constant 0 : index
    %c5_1083 = arith.constant 5 : index
    %c0_1084 = arith.constant 0 : index
    %c12_1085 = arith.constant 12 : index
    %563 = vector.load %arg1[%c0_1082, %c5_1083, %c0_1084, %c12_1085] : memref<1x10x4x128xbf16, #tpu.memory_space<vmem>>, vector<1x1x4x106xbf16>
    %564 = vector.shape_cast %563 : vector<1x1x4x106xbf16> to vector<4x106xbf16>
    %c92_1086 = arith.constant 92 : index
    %c384_1087 = arith.constant 384 : index
    %565 = vector.load %arg5[%c92_1086, %c384_1087] : memref<108x1024xbf16, #tpu.memory_space<vmem>>, vector<4x106xbf16>
    tpu.vector_store %arg5[%c92_1086, %c384_1087], %564 {strides = array<i32>} : memref<108x1024xbf16, #tpu.memory_space<vmem>>, vector<4x106xbf16>,
    %c0_1088 = arith.constant 0 : index
    %c6_1089 = arith.constant 6 : index
    %c0_1090 = arith.constant 0 : index
    %c12_1091 = arith.constant 12 : index
    %566 = vector.load %arg1[%c0_1088, %c6_1089, %c0_1090, %c12_1091] : memref<1x10x4x128xbf16, #tpu.memory_space<vmem>>, vector<1x1x4x106xbf16>
    %567 = vector.shape_cast %566 : vector<1x1x4x106xbf16> to vector<4x106xbf16>
    %c92_1092 = arith.constant 92 : index
    %c512_1093 = arith.constant 512 : index
    %568 = vector.load %arg5[%c92_1092, %c512_1093] : memref<108x1024xbf16, #tpu.memory_space<vmem>>, vector<4x106xbf16>
    tpu.vector_store %arg5[%c92_1092, %c512_1093], %567 {strides = array<i32>} : memref<108x1024xbf16, #tpu.memory_space<vmem>>, vector<4x106xbf16>,
    %c0_1094 = arith.constant 0 : index
    %c7_1095 = arith.constant 7 : index
    %c0_1096 = arith.constant 0 : index
    %c12_1097 = arith.constant 12 : index
    %569 = vector.load %arg1[%c0_1094, %c7_1095, %c0_1096, %c12_1097] : memref<1x10x4x128xbf16, #tpu.memory_space<vmem>>, vector<1x1x4x106xbf16>
    %570 = vector.shape_cast %569 : vector<1x1x4x106xbf16> to vector<4x106xbf16>
    %c92_1098 = arith.constant 92 : index
    %c640_1099 = arith.constant 640 : index
    %571 = vector.load %arg5[%c92_1098, %c640_1099] : memref<108x1024xbf16, #tpu.memory_space<vmem>>, vector<4x106xbf16>
    tpu.vector_store %arg5[%c92_1098, %c640_1099], %570 {strides = array<i32>} : memref<108x1024xbf16, #tpu.memory_space<vmem>>, vector<4x106xbf16>,
    %c0_1100 = arith.constant 0 : index
    %c8_1101 = arith.constant 8 : index
    %c0_1102 = arith.constant 0 : index
    %c12_1103 = arith.constant 12 : index
    %572 = vector.load %arg1[%c0_1100, %c8_1101, %c0_1102, %c12_1103] : memref<1x10x4x128xbf16, #tpu.memory_space<vmem>>, vector<1x1x4x106xbf16>
    %573 = vector.shape_cast %572 : vector<1x1x4x106xbf16> to vector<4x106xbf16>
    %c92_1104 = arith.constant 92 : index
    %c768_1105 = arith.constant 768 : index
    %574 = vector.load %arg5[%c92_1104, %c768_1105] : memref<108x1024xbf16, #tpu.memory_space<vmem>>, vector<4x106xbf16>
    tpu.vector_store %arg5[%c92_1104, %c768_1105], %573 {strides = array<i32>} : memref<108x1024xbf16, #tpu.memory_space<vmem>>, vector<4x106xbf16>,
    %c0_1106 = arith.constant 0 : index
    %c9_1107 = arith.constant 9 : index
    %c0_1108 = arith.constant 0 : index
    %c12_1109 = arith.constant 12 : index
    %575 = vector.load %arg1[%c0_1106, %c9_1107, %c0_1108, %c12_1109] : memref<1x10x4x128xbf16, #tpu.memory_space<vmem>>, vector<1x1x4x106xbf16>
    %576 = vector.shape_cast %575 : vector<1x1x4x106xbf16> to vector<4x106xbf16>
    %c92_1110 = arith.constant 92 : index
    %c896_1111 = arith.constant 896 : index
    %577 = vector.load %arg5[%c92_1110, %c896_1111] : memref<108x1024xbf16, #tpu.memory_space<vmem>>, vector<4x106xbf16>
    tpu.vector_store %arg5[%c92_1110, %c896_1111], %576 {strides = array<i32>} : memref<108x1024xbf16, #tpu.memory_space<vmem>>, vector<4x106xbf16>,
    %c0_1112 = arith.constant 0 : index
    %c2_1113 = arith.constant 2 : index
    %c0_1114 = arith.constant 0 : index
    %c20_1115 = arith.constant 20 : index
    %578 = vector.load %arg1[%c0_1112, %c2_1113, %c0_1114, %c20_1115] : memref<1x10x4x128xbf16, #tpu.memory_space<vmem>>, vector<1x1x4x106xbf16>
    %579 = vector.shape_cast %578 : vector<1x1x4x106xbf16> to vector<4x106xbf16>
    %c96 = arith.constant 96 : index
    %c0_1116 = arith.constant 0 : index
    %580 = vector.load %arg5[%c96, %c0_1116] : memref<108x1024xbf16, #tpu.memory_space<vmem>>, vector<4x106xbf16>
    tpu.vector_store %arg5[%c96, %c0_1116], %579 {strides = array<i32>} : memref<108x1024xbf16, #tpu.memory_space<vmem>>, vector<4x106xbf16>,
    %c0_1117 = arith.constant 0 : index
    %c3_1118 = arith.constant 3 : index
    %c0_1119 = arith.constant 0 : index
    %c20_1120 = arith.constant 20 : index
    %581 = vector.load %arg1[%c0_1117, %c3_1118, %c0_1119, %c20_1120] : memref<1x10x4x128xbf16, #tpu.memory_space<vmem>>, vector<1x1x4x106xbf16>
    %582 = vector.shape_cast %581 : vector<1x1x4x106xbf16> to vector<4x106xbf16>
    %c96_1121 = arith.constant 96 : index
    %c128_1122 = arith.constant 128 : index
    %583 = vector.load %arg5[%c96_1121, %c128_1122] : memref<108x1024xbf16, #tpu.memory_space<vmem>>, vector<4x106xbf16>
    tpu.vector_store %arg5[%c96_1121, %c128_1122], %582 {strides = array<i32>} : memref<108x1024xbf16, #tpu.memory_space<vmem>>, vector<4x106xbf16>,
    %c0_1123 = arith.constant 0 : index
    %c4_1124 = arith.constant 4 : index
    %c0_1125 = arith.constant 0 : index
    %c20_1126 = arith.constant 20 : index
    %584 = vector.load %arg1[%c0_1123, %c4_1124, %c0_1125, %c20_1126] : memref<1x10x4x128xbf16, #tpu.memory_space<vmem>>, vector<1x1x4x106xbf16>
    %585 = vector.shape_cast %584 : vector<1x1x4x106xbf16> to vector<4x106xbf16>
    %c96_1127 = arith.constant 96 : index
    %c256_1128 = arith.constant 256 : index
    %586 = vector.load %arg5[%c96_1127, %c256_1128] : memref<108x1024xbf16, #tpu.memory_space<vmem>>, vector<4x106xbf16>
    tpu.vector_store %arg5[%c96_1127, %c256_1128], %585 {strides = array<i32>} : memref<108x1024xbf16, #tpu.memory_space<vmem>>, vector<4x106xbf16>,
    %c0_1129 = arith.constant 0 : index
    %c5_1130 = arith.constant 5 : index
    %c0_1131 = arith.constant 0 : index
    %c20_1132 = arith.constant 20 : index
    %587 = vector.load %arg1[%c0_1129, %c5_1130, %c0_1131, %c20_1132] : memref<1x10x4x128xbf16, #tpu.memory_space<vmem>>, vector<1x1x4x106xbf16>
    %588 = vector.shape_cast %587 : vector<1x1x4x106xbf16> to vector<4x106xbf16>
    %c96_1133 = arith.constant 96 : index
    %c384_1134 = arith.constant 384 : index
    %589 = vector.load %arg5[%c96_1133, %c384_1134] : memref<108x1024xbf16, #tpu.memory_space<vmem>>, vector<4x106xbf16>
    tpu.vector_store %arg5[%c96_1133, %c384_1134], %588 {strides = array<i32>} : memref<108x1024xbf16, #tpu.memory_space<vmem>>, vector<4x106xbf16>,
    %c0_1135 = arith.constant 0 : index
    %c6_1136 = arith.constant 6 : index
    %c0_1137 = arith.constant 0 : index
    %c20_1138 = arith.constant 20 : index
    %590 = vector.load %arg1[%c0_1135, %c6_1136, %c0_1137, %c20_1138] : memref<1x10x4x128xbf16, #tpu.memory_space<vmem>>, vector<1x1x4x106xbf16>
    %591 = vector.shape_cast %590 : vector<1x1x4x106xbf16> to vector<4x106xbf16>
    %c96_1139 = arith.constant 96 : index
    %c512_1140 = arith.constant 512 : index
    %592 = vector.load %arg5[%c96_1139, %c512_1140] : memref<108x1024xbf16, #tpu.memory_space<vmem>>, vector<4x106xbf16>
    tpu.vector_store %arg5[%c96_1139, %c512_1140], %591 {strides = array<i32>} : memref<108x1024xbf16, #tpu.memory_space<vmem>>, vector<4x106xbf16>,
    %c0_1141 = arith.constant 0 : index
    %c7_1142 = arith.constant 7 : index
    %c0_1143 = arith.constant 0 : index
    %c20_1144 = arith.constant 20 : index
    %593 = vector.load %arg1[%c0_1141, %c7_1142, %c0_1143, %c20_1144] : memref<1x10x4x128xbf16, #tpu.memory_space<vmem>>, vector<1x1x4x106xbf16>
    %594 = vector.shape_cast %593 : vector<1x1x4x106xbf16> to vector<4x106xbf16>
    %c96_1145 = arith.constant 96 : index
    %c640_1146 = arith.constant 640 : index
    %595 = vector.load %arg5[%c96_1145, %c640_1146] : memref<108x1024xbf16, #tpu.memory_space<vmem>>, vector<4x106xbf16>
    tpu.vector_store %arg5[%c96_1145, %c640_1146], %594 {strides = array<i32>} : memref<108x1024xbf16, #tpu.memory_space<vmem>>, vector<4x106xbf16>,
    %c0_1147 = arith.constant 0 : index
    %c8_1148 = arith.constant 8 : index
    %c0_1149 = arith.constant 0 : index
    %c20_1150 = arith.constant 20 : index
    %596 = vector.load %arg1[%c0_1147, %c8_1148, %c0_1149, %c20_1150] : memref<1x10x4x128xbf16, #tpu.memory_space<vmem>>, vector<1x1x4x106xbf16>
    %597 = vector.shape_cast %596 : vector<1x1x4x106xbf16> to vector<4x106xbf16>
    %c96_1151 = arith.constant 96 : index
    %c768_1152 = arith.constant 768 : index
    %598 = vector.load %arg5[%c96_1151, %c768_1152] : memref<108x1024xbf16, #tpu.memory_space<vmem>>, vector<4x106xbf16>
    tpu.vector_store %arg5[%c96_1151, %c768_1152], %597 {strides = array<i32>} : memref<108x1024xbf16, #tpu.memory_space<vmem>>, vector<4x106xbf16>,
    %c0_1153 = arith.constant 0 : index
    %c9_1154 = arith.constant 9 : index
    %c0_1155 = arith.constant 0 : index
    %c20_1156 = arith.constant 20 : index
    %599 = vector.load %arg1[%c0_1153, %c9_1154, %c0_1155, %c20_1156] : memref<1x10x4x128xbf16, #tpu.memory_space<vmem>>, vector<1x1x4x106xbf16>
    %600 = vector.shape_cast %599 : vector<1x1x4x106xbf16> to vector<4x106xbf16>
    %c96_1157 = arith.constant 96 : index
    %c896_1158 = arith.constant 896 : index
    %601 = vector.load %arg5[%c96_1157, %c896_1158] : memref<108x1024xbf16, #tpu.memory_space<vmem>>, vector<4x106xbf16>
    tpu.vector_store %arg5[%c96_1157, %c896_1158], %600 {strides = array<i32>} : memref<108x1024xbf16, #tpu.memory_space<vmem>>, vector<4x106xbf16>,
    %c0_1159 = arith.constant 0 : index
    %c2_1160 = arith.constant 2 : index
    %c0_1161 = arith.constant 0 : index
    %c21_1162 = arith.constant 21 : index
    %602 = vector.load %arg1[%c0_1159, %c2_1160, %c0_1161, %c21_1162] : memref<1x10x4x128xbf16, #tpu.memory_space<vmem>>, vector<1x1x4x106xbf16>
    %603 = vector.shape_cast %602 : vector<1x1x4x106xbf16> to vector<4x106xbf16>
    %c100 = arith.constant 100 : index
    %c0_1163 = arith.constant 0 : index
    %604 = vector.load %arg5[%c100, %c0_1163] : memref<108x1024xbf16, #tpu.memory_space<vmem>>, vector<4x106xbf16>
    tpu.vector_store %arg5[%c100, %c0_1163], %603 {strides = array<i32>} : memref<108x1024xbf16, #tpu.memory_space<vmem>>, vector<4x106xbf16>,
    %c0_1164 = arith.constant 0 : index
    %c3_1165 = arith.constant 3 : index
    %c0_1166 = arith.constant 0 : index
    %c21_1167 = arith.constant 21 : index
    %605 = vector.load %arg1[%c0_1164, %c3_1165, %c0_1166, %c21_1167] : memref<1x10x4x128xbf16, #tpu.memory_space<vmem>>, vector<1x1x4x106xbf16>
    %606 = vector.shape_cast %605 : vector<1x1x4x106xbf16> to vector<4x106xbf16>
    %c100_1168 = arith.constant 100 : index
    %c128_1169 = arith.constant 128 : index
    %607 = vector.load %arg5[%c100_1168, %c128_1169] : memref<108x1024xbf16, #tpu.memory_space<vmem>>, vector<4x106xbf16>
    tpu.vector_store %arg5[%c100_1168, %c128_1169], %606 {strides = array<i32>} : memref<108x1024xbf16, #tpu.memory_space<vmem>>, vector<4x106xbf16>,
    %c0_1170 = arith.constant 0 : index
    %c4_1171 = arith.constant 4 : index
    %c0_1172 = arith.constant 0 : index
    %c21_1173 = arith.constant 21 : index
    %608 = vector.load %arg1[%c0_1170, %c4_1171, %c0_1172, %c21_1173] : memref<1x10x4x128xbf16, #tpu.memory_space<vmem>>, vector<1x1x4x106xbf16>
    %609 = vector.shape_cast %608 : vector<1x1x4x106xbf16> to vector<4x106xbf16>
    %c100_1174 = arith.constant 100 : index
    %c256_1175 = arith.constant 256 : index
    %610 = vector.load %arg5[%c100_1174, %c256_1175] : memref<108x1024xbf16, #tpu.memory_space<vmem>>, vector<4x106xbf16>
    tpu.vector_store %arg5[%c100_1174, %c256_1175], %609 {strides = array<i32>} : memref<108x1024xbf16, #tpu.memory_space<vmem>>, vector<4x106xbf16>,
    %c0_1176 = arith.constant 0 : index
    %c5_1177 = arith.constant 5 : index
    %c0_1178 = arith.constant 0 : index
    %c21_1179 = arith.constant 21 : index
    %611 = vector.load %arg1[%c0_1176, %c5_1177, %c0_1178, %c21_1179] : memref<1x10x4x128xbf16, #tpu.memory_space<vmem>>, vector<1x1x4x106xbf16>
    %612 = vector.shape_cast %611 : vector<1x1x4x106xbf16> to vector<4x106xbf16>
    %c100_1180 = arith.constant 100 : index
    %c384_1181 = arith.constant 384 : index
    %613 = vector.load %arg5[%c100_1180, %c384_1181] : memref<108x1024xbf16, #tpu.memory_space<vmem>>, vector<4x106xbf16>
    tpu.vector_store %arg5[%c100_1180, %c384_1181], %612 {strides = array<i32>} : memref<108x1024xbf16, #tpu.memory_space<vmem>>, vector<4x106xbf16>,
    %c0_1182 = arith.constant 0 : index
    %c6_1183 = arith.constant 6 : index
    %c0_1184 = arith.constant 0 : index
    %c21_1185 = arith.constant 21 : index
    %614 = vector.load %arg1[%c0_1182, %c6_1183, %c0_1184, %c21_1185] : memref<1x10x4x128xbf16, #tpu.memory_space<vmem>>, vector<1x1x4x106xbf16>
    %615 = vector.shape_cast %614 : vector<1x1x4x106xbf16> to vector<4x106xbf16>
    %c100_1186 = arith.constant 100 : index
    %c512_1187 = arith.constant 512 : index
    %616 = vector.load %arg5[%c100_1186, %c512_1187] : memref<108x1024xbf16, #tpu.memory_space<vmem>>, vector<4x106xbf16>
    tpu.vector_store %arg5[%c100_1186, %c512_1187], %615 {strides = array<i32>} : memref<108x1024xbf16, #tpu.memory_space<vmem>>, vector<4x106xbf16>,
    %c0_1188 = arith.constant 0 : index
    %c7_1189 = arith.constant 7 : index
    %c0_1190 = arith.constant 0 : index
    %c21_1191 = arith.constant 21 : index
    %617 = vector.load %arg1[%c0_1188, %c7_1189, %c0_1190, %c21_1191] : memref<1x10x4x128xbf16, #tpu.memory_space<vmem>>, vector<1x1x4x106xbf16>
    %618 = vector.shape_cast %617 : vector<1x1x4x106xbf16> to vector<4x106xbf16>
    %c100_1192 = arith.constant 100 : index
    %c640_1193 = arith.constant 640 : index
    %619 = vector.load %arg5[%c100_1192, %c640_1193] : memref<108x1024xbf16, #tpu.memory_space<vmem>>, vector<4x106xbf16>
    tpu.vector_store %arg5[%c100_1192, %c640_1193], %618 {strides = array<i32>} : memref<108x1024xbf16, #tpu.memory_space<vmem>>, vector<4x106xbf16>,
    %c0_1194 = arith.constant 0 : index
    %c8_1195 = arith.constant 8 : index
    %c0_1196 = arith.constant 0 : index
    %c21_1197 = arith.constant 21 : index
    %620 = vector.load %arg1[%c0_1194, %c8_1195, %c0_1196, %c21_1197] : memref<1x10x4x128xbf16, #tpu.memory_space<vmem>>, vector<1x1x4x106xbf16>
    %621 = vector.shape_cast %620 : vector<1x1x4x106xbf16> to vector<4x106xbf16>
    %c100_1198 = arith.constant 100 : index
    %c768_1199 = arith.constant 768 : index
    %622 = vector.load %arg5[%c100_1198, %c768_1199] : memref<108x1024xbf16, #tpu.memory_space<vmem>>, vector<4x106xbf16>
    tpu.vector_store %arg5[%c100_1198, %c768_1199], %621 {strides = array<i32>} : memref<108x1024xbf16, #tpu.memory_space<vmem>>, vector<4x106xbf16>,
    %c0_1200 = arith.constant 0 : index
    %c9_1201 = arith.constant 9 : index
    %c0_1202 = arith.constant 0 : index
    %c21_1203 = arith.constant 21 : index
    %623 = vector.load %arg1[%c0_1200, %c9_1201, %c0_1202, %c21_1203] : memref<1x10x4x128xbf16, #tpu.memory_space<vmem>>, vector<1x1x4x106xbf16>
    %624 = vector.shape_cast %623 : vector<1x1x4x106xbf16> to vector<4x106xbf16>
    %c100_1204 = arith.constant 100 : index
    %c896_1205 = arith.constant 896 : index
    %625 = vector.load %arg5[%c100_1204, %c896_1205] : memref<108x1024xbf16, #tpu.memory_space<vmem>>, vector<4x106xbf16>
    tpu.vector_store %arg5[%c100_1204, %c896_1205], %624 {strides = array<i32>} : memref<108x1024xbf16, #tpu.memory_space<vmem>>, vector<4x106xbf16>,
    %c0_1206 = arith.constant 0 : index
    %c2_1207 = arith.constant 2 : index
    %c0_1208 = arith.constant 0 : index
    %c22_1209 = arith.constant 22 : index
    %626 = vector.load %arg1[%c0_1206, %c2_1207, %c0_1208, %c22_1209] : memref<1x10x4x128xbf16, #tpu.memory_space<vmem>>, vector<1x1x4x106xbf16>
    %627 = vector.shape_cast %626 : vector<1x1x4x106xbf16> to vector<4x106xbf16>
    %c104 = arith.constant 104 : index
    %c0_1210 = arith.constant 0 : index
    %628 = vector.load %arg5[%c104, %c0_1210] : memref<108x1024xbf16, #tpu.memory_space<vmem>>, vector<4x106xbf16>
    tpu.vector_store %arg5[%c104, %c0_1210], %627 {strides = array<i32>} : memref<108x1024xbf16, #tpu.memory_space<vmem>>, vector<4x106xbf16>,
    %c0_1211 = arith.constant 0 : index
    %c3_1212 = arith.constant 3 : index
    %c0_1213 = arith.constant 0 : index
    %c22_1214 = arith.constant 22 : index
    %629 = vector.load %arg1[%c0_1211, %c3_1212, %c0_1213, %c22_1214] : memref<1x10x4x128xbf16, #tpu.memory_space<vmem>>, vector<1x1x4x106xbf16>
    %630 = vector.shape_cast %629 : vector<1x1x4x106xbf16> to vector<4x106xbf16>
    %c104_1215 = arith.constant 104 : index
    %c128_1216 = arith.constant 128 : index
    %631 = vector.load %arg5[%c104_1215, %c128_1216] : memref<108x1024xbf16, #tpu.memory_space<vmem>>, vector<4x106xbf16>
    tpu.vector_store %arg5[%c104_1215, %c128_1216], %630 {strides = array<i32>} : memref<108x1024xbf16, #tpu.memory_space<vmem>>, vector<4x106xbf16>,
    %c0_1217 = arith.constant 0 : index
    %c4_1218 = arith.constant 4 : index
    %c0_1219 = arith.constant 0 : index
    %c22_1220 = arith.constant 22 : index
    %632 = vector.load %arg1[%c0_1217, %c4_1218, %c0_1219, %c22_1220] : memref<1x10x4x128xbf16, #tpu.memory_space<vmem>>, vector<1x1x4x106xbf16>
    %633 = vector.shape_cast %632 : vector<1x1x4x106xbf16> to vector<4x106xbf16>
    %c104_1221 = arith.constant 104 : index
    %c256_1222 = arith.constant 256 : index
    %634 = vector.load %arg5[%c104_1221, %c256_1222] : memref<108x1024xbf16, #tpu.memory_space<vmem>>, vector<4x106xbf16>
    tpu.vector_store %arg5[%c104_1221, %c256_1222], %633 {strides = array<i32>} : memref<108x1024xbf16, #tpu.memory_space<vmem>>, vector<4x106xbf16>,
    %c0_1223 = arith.constant 0 : index
    %c5_1224 = arith.constant 5 : index
    %c0_1225 = arith.constant 0 : index
    %c22_1226 = arith.constant 22 : index
    %635 = vector.load %arg1[%c0_1223, %c5_1224, %c0_1225, %c22_1226] : memref<1x10x4x128xbf16, #tpu.memory_space<vmem>>, vector<1x1x4x106xbf16>
    %636 = vector.shape_cast %635 : vector<1x1x4x106xbf16> to vector<4x106xbf16>
    %c104_1227 = arith.constant 104 : index
    %c384_1228 = arith.constant 384 : index
    %637 = vector.load %arg5[%c104_1227, %c384_1228] : memref<108x1024xbf16, #tpu.memory_space<vmem>>, vector<4x106xbf16>
    tpu.vector_store %arg5[%c104_1227, %c384_1228], %636 {strides = array<i32>} : memref<108x1024xbf16, #tpu.memory_space<vmem>>, vector<4x106xbf16>,
    %c0_1229 = arith.constant 0 : index
    %c6_1230 = arith.constant 6 : index
    %c0_1231 = arith.constant 0 : index
    %c22_1232 = arith.constant 22 : index
    %638 = vector.load %arg1[%c0_1229, %c6_1230, %c0_1231, %c22_1232] : memref<1x10x4x128xbf16, #tpu.memory_space<vmem>>, vector<1x1x4x106xbf16>
    %639 = vector.shape_cast %638 : vector<1x1x4x106xbf16> to vector<4x106xbf16>
    %c104_1233 = arith.constant 104 : index
    %c512_1234 = arith.constant 512 : index
    %640 = vector.load %arg5[%c104_1233, %c512_1234] : memref<108x1024xbf16, #tpu.memory_space<vmem>>, vector<4x106xbf16>
    tpu.vector_store %arg5[%c104_1233, %c512_1234], %639 {strides = array<i32>} : memref<108x1024xbf16, #tpu.memory_space<vmem>>, vector<4x106xbf16>,
    %c0_1235 = arith.constant 0 : index
    %c7_1236 = arith.constant 7 : index
    %c0_1237 = arith.constant 0 : index
    %c22_1238 = arith.constant 22 : index
    %641 = vector.load %arg1[%c0_1235, %c7_1236, %c0_1237, %c22_1238] : memref<1x10x4x128xbf16, #tpu.memory_space<vmem>>, vector<1x1x4x106xbf16>
    %642 = vector.shape_cast %641 : vector<1x1x4x106xbf16> to vector<4x106xbf16>
    %c104_1239 = arith.constant 104 : index
    %c640_1240 = arith.constant 640 : index
    %643 = vector.load %arg5[%c104_1239, %c640_1240] : memref<108x1024xbf16, #tpu.memory_space<vmem>>, vector<4x106xbf16>
    tpu.vector_store %arg5[%c104_1239, %c640_1240], %642 {strides = array<i32>} : memref<108x1024xbf16, #tpu.memory_space<vmem>>, vector<4x106xbf16>,
    %c0_1241 = arith.constant 0 : index
    %c8_1242 = arith.constant 8 : index
    %c0_1243 = arith.constant 0 : index
    %c22_1244 = arith.constant 22 : index
    %644 = vector.load %arg1[%c0_1241, %c8_1242, %c0_1243, %c22_1244] : memref<1x10x4x128xbf16, #tpu.memory_space<vmem>>, vector<1x1x4x106xbf16>
    %645 = vector.shape_cast %644 : vector<1x1x4x106xbf16> to vector<4x106xbf16>
    %c104_1245 = arith.constant 104 : index
    %c768_1246 = arith.constant 768 : index
    %646 = vector.load %arg5[%c104_1245, %c768_1246] : memref<108x1024xbf16, #tpu.memory_space<vmem>>, vector<4x106xbf16>
    tpu.vector_store %arg5[%c104_1245, %c768_1246], %645 {strides = array<i32>} : memref<108x1024xbf16, #tpu.memory_space<vmem>>, vector<4x106xbf16>,
    %c0_1247 = arith.constant 0 : index
    %c9_1248 = arith.constant 9 : index
    %c0_1249 = arith.constant 0 : index
    %c22_1250 = arith.constant 22 : index
    %647 = vector.load %arg1[%c0_1247, %c9_1248, %c0_1249, %c22_1250] : memref<1x10x4x128xbf16, #tpu.memory_space<vmem>>, vector<1x1x4x106xbf16>
    %648 = vector.shape_cast %647 : vector<1x1x4x106xbf16> to vector<4x106xbf16>
    %c104_1251 = arith.constant 104 : index
    %c896_1252 = arith.constant 896 : index
    %649 = vector.load %arg5[%c104_1251, %c896_1252] : memref<108x1024xbf16, #tpu.memory_space<vmem>>, vector<4x106xbf16>
    tpu.vector_store %arg5[%c104_1251, %c896_1252], %648 {strides = array<i32>} : memref<108x1024xbf16, #tpu.memory_space<vmem>>, vector<4x106xbf16>,
    %c0_1253 = arith.constant 0 : index
    %c0_1254 = arith.constant 0 : index
    %650 = vector.load %arg2[%c0_1253, %c0_1254] : memref<8x108xbf16, #tpu.memory_space<vmem>>, vector<8x108xbf16>
    %c0_1255 = arith.constant 0 : index
    %c0_1256 = arith.constant 0 : index
    %651 = vector.load %arg5[%c0_1255, %c0_1256] : memref<108x1024xbf16, #tpu.memory_space<vmem>>, vector<108x1024xbf16>
    %cst_1257 = arith.constant dense<0.000000e+00> : vector<8x1024xf32>
    %652 = tpu.matmul %650, %651, %cst_1257 {dimension_numbers = #tpu.dot_dimension_numbers<[1], [0], [0], [1], [0, 0, 1, 1], [], []>} : vector<8x108xbf16>, vector<108x1024xbf16>, vector<8x1024xf32> -> vector<8x1024xf32>
    %c0_1258 = arith.constant 0 : index
    %c0_1259 = arith.constant 0 : index
    %653 = vector.load %arg3[%c0_1258, %c0_1259] : memref<8x1xf32, #tpu.memory_space<vmem>>, vector<8x1xf32>
    %654 = vector.broadcast %653 : vector<8x1xf32> to vector<8x1024xf32>
    %655 = arith.addf %652, %654 : vector<8x1024xf32>
    %cst_1260 = arith.constant 0.000000e+00 : f32
    %656 = vector.broadcast %cst_1260 : f32 to vector<8x1024xf32>
    %657 = arith.maximumf %655, %656 : vector<8x1024xf32>
    %c0_1261 = arith.constant 0 : index
    %c0_1262 = arith.constant 0 : index
    %c0_1263 = arith.constant 0 : index
    %658 = vector.load %arg4[%c0_1261, %c0_1262, %c0_1263] : memref<1x8x1024xf32, #tpu.memory_space<vmem>>, vector<1x8x1024xf32>
    %659 = vector.shape_cast %658 : vector<1x8x1024xf32> to vector<8x1024xf32>
    %660 = vector.shape_cast %657 : vector<8x1024xf32> to vector<1x8x1024xf32>
    tpu.vector_store %arg4[%c0_1261, %c0_1262, %c0_1263], %660 {strides = array<i32>} : memref<1x8x1024xf32, #tpu.memory_space<vmem>>, vector<1x8x1024xf32>,
    return
  }
  func.func @transform_0(%arg0: i32) -> (i32, i32, i32, i32) {
    %c0_i32 = arith.constant 0 : i32
    %c0_i32_0 = arith.constant 0 : i32
    %c0_i32_1 = arith.constant 0 : i32
    %c0_i32_2 = arith.constant 0 : i32
    return %arg0, %c0_i32, %c0_i32_0, %c0_i32_1 : i32, i32, i32, i32
  }
  func.func @transform_1(%arg0: i32) -> (i32, i32) {
    %c0_i32 = arith.constant 0 : i32
    %c0_i32_0 = arith.constant 0 : i32
    %c0_i32_1 = arith.constant 0 : i32
    return %c0_i32, %c0_i32_0 : i32, i32
  }
  func.func @transform_2(%arg0: i32) -> (i32, i32) {
    %c0_i32 = arith.constant 0 : i32
    %c0_i32_0 = arith.constant 0 : i32
    %c0_i32_1 = arith.constant 0 : i32
    return %c0_i32, %c0_i32_0 : i32, i32
  }
  func.func @transform_3(%arg0: i32) -> (i32, i32, i32) {
    %c0_i32 = arith.constant 0 : i32
    %c0_i32_0 = arith.constant 0 : i32
    %c0_i32_1 = arith.constant 0 : i32
    return %arg0, %c0_i32, %c0_i32_0 : i32, i32, i32
  }
}

</mosaic_0001>

<llo_original>
// kernel: _cr_forward.1
$region0: #{_cr_forward.1}
  #allocation0 [shape = 'u32[]', space=smem, size = 0x4, offset = 0x4, fixed_abs, tag = 'smem constant byte address 0x4 - core index']
  #allocation1 [shape = 'u32[144,128]{1,0:T(1,128)}', space=vmem, size = 0x12000, scoped, tag = 'internal scratch']
  #allocation2 [shape = 'bf16[108,1024]{1,0:T(8,128)(2,1)}', space=vmem, size = 0x38000, scoped, tag = 'scratch operand']
  %s0 = inlined_call_operand.vmem [shape: bf16[2,10,4,128], index: 0, kind: input, shape index: {}]
  %s1 = inlined_call_operand.vmem [shape: bf16[8,108], index: 1, kind: input, shape index: {}]
  %s2 = inlined_call_operand.vmem [shape: f32[8,1], index: 2, kind: input, shape index: {}]
  %s3 = inlined_call_operand.vmem [shape: f32[2,8,1024], index: 3, kind: output, shape index: {}]
  %s4 = sld [smem:[#allocation0]]
  $region45: #{_cr_forward.1} parent=0
    _
  %s6 = ssub.s32 1, %s4
  %s7 = scalar_select 0, %s6, %s4
  loop: start=0, step=1, limit=4
  $region2: #{_cr_forward.1} parent=0 // loop_pre_header
    _
  $region3: #{_cr_forward.1} parent=0 // loop_header
    %s9 = sphi 0, %s13
    %p10 = scmp.ge.s32.totalorder %s9, 4
    %s19 = sphi 0, %s21
    %s22 = sphi 0, %s19
    %s23 = sphi 0, %s22
    %s39 = sphi 0, %s23
    %s43 = sphi 0, %s43
    %s45 = sphi 0, %s43
    %s46 = sphi 0, %s45
    %s60 = sphi 0, %s46
    %s64 = sphi 0, %s64
    %s66 = sphi 0, %s64
    %s67 = sphi 0, %s66
    %s81 = sphi 0, %s67
    %s87 = sphi 0, %s89
    %s90 = sphi 0, %s87
    %s91 = sphi 0, %s90
    %s107 = sphi 0, %s91
  $region4: #{_cr_forward.1} parent=0 // loop_header_branch
    %12 = sbr.rel (%p10) target = $region8
  $region5: #{_cr_forward.1} parent=0 // loop_body
    %s14 = ssub.s32 %s9, 1
    %s15 = ssub.s32 %s9, 2
    %s16 = sadd.s32 %s9, 1
    %s17 = ssub.s32 %s9, %s16
    %p18 = scmp.eq.s32.totalorder %s17, 0
    %s20 = sadd.s32 %s19, 1
    %s21 = scalar_select %p18, %s19, %s20
    %p24 = pneg %p18
    %p25 = scmp.eq.s32.totalorder %s9, 1
    %p26 = por %p24, %p25
    %p27 = scmp.ne.s32.totalorder %s19, %s22
    %p28 = scmp.eq.s32.totalorder %s9, 0
    %p29 = por %p27, %p28
    %p30 = scmp.ne.s32.totalorder %s19, %s22
    %p31 = scmp.eq.s32.totalorder %s14, 1
    %p32 = por %p30, %p31
    %p33 = scmp.ne.s32.totalorder %s22, %s23
    %p34 = scmp.eq.s32.totalorder %s14, 0
    %p35 = por %p33, %p34
    %p36 = scmp.ne.s32.totalorder %s22, %s23
    %p37 = scmp.eq.s32.totalorder %s15, 1
    %p38 = por %p36, %p37
    %p40 = scmp.ne.s32.totalorder %s23, %s39
    %p41 = scmp.eq.s32.totalorder %s15, 0
    %p42 = por %p40, %p41
    %s44 = sadd.s32 %s43, 1
    %p47 = scmp.eq.s32.totalorder %s9, 1
    %p48 = scmp.ne.s32.totalorder %s43, %s45
    %p49 = scmp.eq.s32.totalorder %s9, 0
    %p50 = por %p48, %p49
    %p51 = scmp.ne.s32.totalorder %s43, %s45
    %p52 = scmp.eq.s32.totalorder %s14, 1
    %p53 = por %p51, %p52
    %p54 = scmp.ne.s32.totalorder %s45, %s46
    %p55 = scmp.eq.s32.totalorder %s14, 0
    %p56 = por %p54, %p55
    %p57 = scmp.ne.s32.totalorder %s45, %s46
    %p58 = scmp.eq.s32.totalorder %s15, 1
    %p59 = por %p57, %p58
    %p61 = scmp.ne.s32.totalorder %s46, %s60
    %p62 = scmp.eq.s32.totalorder %s15, 0
    %p63 = por %p61, %p62
    %s65 = sadd.s32 %s64, 1
    %p68 = scmp.eq.s32.totalorder %s9, 1
    %p69 = scmp.ne.s32.totalorder %s64, %s66
    %p70 = scmp.eq.s32.totalorder %s9, 0
    %p71 = por %p69, %p70
    %p72 = scmp.ne.s32.totalorder %s64, %s66
    %p73 = scmp.eq.s32.totalorder %s14, 1
    %p74 = por %p72, %p73
    %p75 = scmp.ne.s32.totalorder %s66, %s67
    %p76 = scmp.eq.s32.totalorder %s14, 0
    %p77 = por %p75, %p76
    %p78 = scmp.ne.s32.totalorder %s66, %s67
    %p79 = scmp.eq.s32.totalorder %s15, 1
    %p80 = por %p78, %p79
    %p82 = scmp.ne.s32.totalorder %s67, %s81
    %p83 = scmp.eq.s32.totalorder %s15, 0
    %p84 = por %p82, %p83
    %s85 = ssub.s32 %s9, %s16
    %p86 = scmp.eq.s32.totalorder %s85, 0
    %s88 = sadd.s32 %s87, 1
    %s89 = scalar_select %p86, %s87, %s88
    %p92 = pneg %p86
    %p93 = scmp.eq.s32.totalorder %s9, 1
    %p94 = por %p92, %p93
    %p95 = scmp.ne.s32.totalorder %s87, %s90
    %p96 = scmp.eq.s32.totalorder %s9, 0
    %p97 = por %p95, %p96
    %p98 = scmp.ne.s32.totalorder %s87, %s90
    %p99 = scmp.eq.s32.totalorder %s14, 1
    %p100 = por %p98, %p99
    %p101 = scmp.ne.s32.totalorder %s90, %s91
    %p102 = scmp.eq.s32.totalorder %s14, 0
    %p103 = por %p101, %p102
    %p104 = scmp.ne.s32.totalorder %s90, %s91
    %p105 = scmp.eq.s32.totalorder %s15, 1
    %p106 = por %p104, %p105
    %p108 = scmp.ne.s32.totalorder %s91, %s107
    %p109 = scmp.eq.s32.totalorder %s15, 0
    %p110 = por %p108, %p109
    %p111 = scmp.le.s32.totalorder 1, %s9
    %p112 = scmp.lt.s32.totalorder %s9, 3
    %p113 = pnand %p111, %p112
    %p114 = pneg %p113
    // Predicated region
    $region9: #{_cr_forward.1} parent=5 // pred_check
      _
    $region10: #{_cr_forward.1} parent=5 // pred_check_branch
      %116 = sbr.rel (%p113) target = $region12
    $region11: #{_cr_forward.1} parent=5 // pred_region
      %s117 = ssub.s32 %s9, 1
      // Predicated region
      $region13: #{_cr_forward.1} parent=11 // pred_check
        %p118 = pneg %p56
      $region14: #{_cr_forward.1} parent=11 // pred_check_branch
        %120 = sbr.rel (%p118) target = $region16
      $region15: #{_cr_forward.1} parent=11 // pred_region
        _
      $region16: #{_cr_forward.1} parent=11 // pred_fallthru
        _
      // Predicated region
      $region17: #{_cr_forward.1} parent=11 // pred_check
        %p121 = pneg %p77
      $region18: #{_cr_forward.1} parent=11 // pred_check_branch
        %123 = sbr.rel (%p121) target = $region20
      $region19: #{_cr_forward.1} parent=11 // pred_region
        _
      $region20: #{_cr_forward.1} parent=11 // pred_fallthru
        _
    $region12: #{_cr_forward.1} parent=5 // pred_fallthru
      _
    %p124 = scmp.lt.s32.totalorder %s9, 2
    // Predicated region
    $region21: #{_cr_forward.1} parent=5 // pred_check
      %p125 = pneg %p124
    $region22: #{_cr_forward.1} parent=5 // pred_check_branch
      %127 = sbr.rel (%p125) target = $region24
    $region23: #{_cr_forward.1} parent=5 // pred_region
      // Predicated region
      $region25: #{_cr_forward.1} parent=23 // pred_check
        %p128 = pneg %p29
      $region26: #{_cr_forward.1} parent=23 // pred_check_branch
        %130 = sbr.rel (%p128) target = $region28
      $region27: #{_cr_forward.1} parent=23 // pred_region
        %p131 = scmp.lt.s32.totalorder %s9, 1
        %s132 = scalar_select %p131, %s9, 1
        %s133 = smul.addr %s132, 10
        %s134 = smul.addr %s133, 2
        %s135 = scalar_lea.vmem %s0, %s134
      $region28: #{_cr_forward.1} parent=23 // pred_fallthru
        _
    $region24: #{_cr_forward.1} parent=5 // pred_fallthru
      _
    %p136 = scmp.le.s32.totalorder 1, %s9
    %p137 = scmp.lt.s32.totalorder %s9, 3
    %p138 = pnand %p136, %p137
    %p139 = pneg %p138
    // Predicated region
    $region29: #{_cr_forward.1} parent=5 // pred_check
      _
    $region30: #{_cr_forward.1} parent=5 // pred_check_branch
      %141 = sbr.rel (%p138) target = $region32
    $region31: #{_cr_forward.1} parent=5 // pred_region
      %s142 = ssub.s32 %s9, 1
      %p143 = scmp.lt.s32.totalorder %s14, 1
      %s144 = scalar_select %p143, %s14, 1
      %s145 = smul.addr %s144, 10
      %s146 = smul.addr %s145, 2
      %s147 = scalar_lea.vmem %s0, %s146
      %p148 = pneg %p35
      %p149 = pneg %p32
      %p150 = pneg %p56
      %p151 = pneg %p53
      %p152 = pneg %p77
      %p153 = pneg %p74
      %p154 = pneg %p103
      %p155 = pneg %p100
      %p156 = scmp.lt.s32.totalorder %s14, 1
      %s157 = scalar_select %p156, %s14, 1
      %s158 = smul.addr %s157, 8
      %s159 = smul.addr %s158, 8
      %s160 = scalar_lea.vmem %s3, %s159
      %p161 = scmp.lt.s32.totalorder %s14, 1
      %s162 = scalar_select %p161, %s14, 1
      %s163 = smul.addr %s162, 10
      %s164 = smul.addr %s163, 2
      %s165 = scalar_lea.vmem %s0, %s164
      %p166 = scmp.lt.s32.totalorder %s14, 1
      %s167 = scalar_select %p166, %s14, 1
      %s168 = smul.addr %s167, 8
      %s169 = smul.addr %s168, 8
      %s170 = scalar_lea.vmem %s3, %s169
      %172 = vst [vmem:[#allocation2] sm:$0xff] 0
      %173 = vst [vmem:[#allocation2 + $0x8] sm:$0xff] 0
      %174 = vst [vmem:[#allocation2 + $0x10] sm:$0xff] 0
      %175 = vst [vmem:[#allocation2 + $0x18] sm:$0xff] 0
      %176 = vst [vmem:[#allocation2 + $0x20] sm:$0xff] 0
      %177 = vst [vmem:[#allocation2 + $0x28] sm:$0xff] 0
      %178 = vst [vmem:[#allocation2 + $0x30] sm:$0xff] 0
      %179 = vst [vmem:[#allocation2 + $0x38] sm:$0xff] 0
      %180 = vst [vmem:[#allocation2 + $0x40] sm:$0xff] 0
      %181 = vst [vmem:[#allocation2 + $0x48] sm:$0xff] 0
      %182 = vst [vmem:[#allocation2 + $0x50] sm:$0xff] 0
      %183 = vst [vmem:[#allocation2 + $0x58] sm:$0xff] 0
      %184 = vst [vmem:[#allocation2 + $0x60] sm:$0xff] 0
      %185 = vst [vmem:[#allocation2 + $0x68] sm:$0xff] 0
      %186 = vst [vmem:[#allocation2 + $0x70] sm:$0xff] 0
      %187 = vst [vmem:[#allocation2 + $0x78] sm:$0xff] 0
      %188 = vst [vmem:[#allocation2 + $0x80] sm:$0xff] 0
      %189 = vst [vmem:[#allocation2 + $0x88] sm:$0xff] 0
      %190 = vst [vmem:[#allocation2 + $0x90] sm:$0xff] 0
      %191 = vst [vmem:[#allocation2 + $0x98] sm:$0xff] 0
      %192 = vst [vmem:[#allocation2 + $0xa0] sm:$0xff] 0
      %193 = vst [vmem:[#allocation2 + $0xa8] sm:$0xff] 0
      %194 = vst [vmem:[#allocation2 + $0xb0] sm:$0xff] 0
      %195 = vst [vmem:[#allocation2 + $0xb8] sm:$0xff] 0
      %196 = vst [vmem:[#allocation2 + $0xc0] sm:$0xff] 0
      %197 = vst [vmem:[#allocation2 + $0xc8] sm:$0xff] 0
      %198 = vst [vmem:[#allocation2 + $0xd0] sm:$0xff] 0
      %199 = vst [vmem:[#allocation2 + $0xd8] sm:$0xff] 0
      %200 = vst [vmem:[#allocation2 + $0xe0] sm:$0xff] 0
      %201 = vst [vmem:[#allocation2 + $0xe8] sm:$0xff] 0
      %202 = vst [vmem:[#allocation2 + $0xf0] sm:$0xff] 0
      %203 = vst [vmem:[#allocation2 + $0xf8] sm:$0xff] 0
      %204 = vst [vmem:[#allocation2 + $0x100] sm:$0xff] 0
      %205 = vst [vmem:[#allocation2 + $0x108] sm:$0xff] 0
      %206 = vst [vmem:[#allocation2 + $0x110] sm:$0xff] 0
      %207 = vst [vmem:[#allocation2 + $0x118] sm:$0xff] 0
      %208 = vst [vmem:[#allocation2 + $0x120] sm:$0xff] 0
      %209 = vst [vmem:[#allocation2 + $0x128] sm:$0xff] 0
      %210 = vst [vmem:[#allocation2 + $0x130] sm:$0xff] 0
      %211 = vst [vmem:[#allocation2 + $0x138] sm:$0xff] 0
      %212 = vst [vmem:[#allocation2 + $0x140] sm:$0xff] 0
      %213 = vst [vmem:[#allocation2 + $0x148] sm:$0xff] 0
      %214 = vst [vmem:[#allocation2 + $0x150] sm:$0xff] 0
      %215 = vst [vmem:[#allocation2 + $0x158] sm:$0xff] 0
      %216 = vst [vmem:[#allocation2 + $0x160] sm:$0xff] 0
      %217 = vst [vmem:[#allocation2 + $0x168] sm:$0xff] 0
      %218 = vst [vmem:[#allocation2 + $0x170] sm:$0xff] 0
      %219 = vst [vmem:[#allocation2 + $0x178] sm:$0xff] 0
      %220 = vst [vmem:[#allocation2 + $0x180] sm:$0xff] 0
      %221 = vst [vmem:[#allocation2 + $0x188] sm:$0xff] 0
      %222 = vst [vmem:[#allocation2 + $0x190] sm:$0xff] 0
      %223 = vst [vmem:[#allocation2 + $0x198] sm:$0xff] 0
      %224 = vst [vmem:[#allocation2 + $0x1a0] sm:$0x33] 0
      %225 = vst [vmem:[#allocation2 + $0x1a8] sm:$0x33] 0
      %226 = vst [vmem:[#allocation2 + $0x1b0] sm:$0x33] 0
      %227 = vst [vmem:[#allocation2 + $0x1b8] sm:$0x33] 0
      %v228 = vld [vmem:[%s165] sm:$0x3]
      %vm229 = vcmask 861184
      %230 = vst.msk [vmem:[#allocation2] sm:$0x3] %vm229, %v228
      %s231 = scalar_lea.vmem %s165, 2
      %v232 = vld [vmem:[%s231] sm:$0x3]
      %233 = vst.msk [vmem:[#allocation2 + $0x4] sm:$0x3] %vm229, %v232
      %s234 = scalar_lea.vmem %s165, 4
      %v235 = vld [vmem:[%s234] sm:$0x3]
      %236 = vst.msk [vmem:[#allocation2 + $0x8] sm:$0x3] %vm229, %v235
      %s237 = scalar_lea.vmem %s165, 6
      %v238 = vld [vmem:[%s237] sm:$0x3]
      %239 = vst.msk [vmem:[#allocation2 + $0xc] sm:$0x3] %vm229, %v238
      %s240 = scalar_lea.vmem %s165, 8
      %v241 = vld [vmem:[%s240] sm:$0x3]
      %242 = vst.msk [vmem:[#allocation2 + $0x10] sm:$0x3] %vm229, %v241
      %s243 = scalar_lea.vmem %s165, 10
      %v244 = vld [vmem:[%s243] sm:$0x3]
      %245 = vst.msk [vmem:[#allocation2 + $0x14] sm:$0x3] %vm229, %v244
      %s246 = scalar_lea.vmem %s165, 12
      %v247 = vld [vmem:[%s246] sm:$0x3]
      %248 = vst.msk [vmem:[#allocation2 + $0x18] sm:$0x3] %vm229, %v247
      %s249 = scalar_lea.vmem %s165, 14
      %v250 = vld [vmem:[%s249] sm:$0x3]
      %251 = vst.msk [vmem:[#allocation2 + $0x1c] sm:$0x3] %vm229, %v250
      %v252 = vld [vmem:[%s165] sm:$0x3]
      %v254 = vcombine.low %v252, %v252
      %v256 = vunpack.c.l.s4 1983009808
      %v257 = vunpack.c.0.s8 %v256
      %v258 = vlaneseq
      %v259 = vshrl.u32 %v258, 7
      %v260 = vsub.s32 %v257, %v259
      %v261 = vrot.slane %v254, %v260
      %262 = vrot.lane.b32.xlu0 %v261, 127
      %v263 = vpop.permute.xlu0 %262
      %vm265 = vcmask 863234
      %266 = vst.msk [vmem:[#allocation2] sm:$0xc] %vm265, %v263
      %v267 = vld [vmem:[%s231] sm:$0x3]
      %v269 = vcombine.low %v267, %v267
      %v271 = vunpack.c.l.s4 1983009808
      %v272 = vunpack.c.0.s8 %v271
      %v273 = vlaneseq
      %v274 = vshrl.u32 %v273, 7
      %v275 = vsub.s32 %v272, %v274
      %v276 = vrot.slane %v269, %v275
      %277 = vrot.lane.b32.xlu0 %v276, 127
      %v278 = vpop.permute.xlu0 %277
      %280 = vst.msk [vmem:[#allocation2 + $0x4] sm:$0xc] %vm265, %v278
      %v281 = vld [vmem:[%s234] sm:$0x3]
      %v283 = vcombine.low %v281, %v281
      %v285 = vunpack.c.l.s4 1983009808
      %v286 = vunpack.c.0.s8 %v285
      %v287 = vlaneseq
      %v288 = vshrl.u32 %v287, 7
      %v289 = vsub.s32 %v286, %v288
      %v290 = vrot.slane %v283, %v289
      %291 = vrot.lane.b32.xlu0 %v290, 127
      %v292 = vpop.permute.xlu0 %291
      %294 = vst.msk [vmem:[#allocation2 + $0x8] sm:$0xc] %vm265, %v292
      %v295 = vld [vmem:[%s237] sm:$0x3]
      %v297 = vcombine.low %v295, %v295
      %v299 = vunpack.c.l.s4 1983009808
      %v300 = vunpack.c.0.s8 %v299
      %v301 = vlaneseq
      %v302 = vshrl.u32 %v301, 7
      %v303 = vsub.s32 %v300, %v302
      %v304 = vrot.slane %v297, %v303
      %305 = vrot.lane.b32.xlu0 %v304, 127
      %v306 = vpop.permute.xlu0 %305
      %308 = vst.msk [vmem:[#allocation2 + $0xc] sm:$0xc] %vm265, %v306
      %v309 = vld [vmem:[%s240] sm:$0x3]
      %v311 = vcombine.low %v309, %v309
      %v313 = vunpack.c.l.s4 1983009808
      %v314 = vunpack.c.0.s8 %v313
      %v315 = vlaneseq
      %v316 = vshrl.u32 %v315, 7
      %v317 = vsub.s32 %v314, %v316
      %v318 = vrot.slane %v311, %v317
      %319 = vrot.lane.b32.xlu0 %v318, 127
      %v320 = vpop.permute.xlu0 %319
      %322 = vst.msk [vmem:[#allocation2 + $0x10] sm:$0xc] %vm265, %v320
      %v323 = vld [vmem:[%s243] sm:$0x3]
      %v325 = vcombine.low %v323, %v323
      %v327 = vunpack.c.l.s4 1983009808
      %v328 = vunpack.c.0.s8 %v327
      %v329 = vlaneseq
      %v330 = vshrl.u32 %v329, 7
      %v331 = vsub.s32 %v328, %v330
      %v332 = vrot.slane %v325, %v331
      %333 = vrot.lane.b32.xlu0 %v332, 127
      %v334 = vpop.permute.xlu0 %333
      %336 = vst.msk [vmem:[#allocation2 + $0x14] sm:$0xc] %vm265, %v334
      %v337 = vld [vmem:[%s246] sm:$0x3]
      %v339 = vcombine.low %v337, %v337
      %v341 = vunpack.c.l.s4 1983009808
      %v342 = vunpack.c.0.s8 %v341
      %v343 = vlaneseq
      %v344 = vshrl.u32 %v343, 7
      %v345 = vsub.s32 %v342, %v344
      %v346 = vrot.slane %v339, %v345
      %347 = vrot.lane.b32.xlu0 %v346, 127
      %v348 = vpop.permute.xlu0 %347
      %350 = vst.msk [vmem:[#allocation2 + $0x18] sm:$0xc] %vm265, %v348
      %v351 = vld [vmem:[%s249] sm:$0x3]
      %v353 = vcombine.low %v351, %v351
      %v355 = vunpack.c.l.s4 1983009808
      %v356 = vunpack.c.0.s8 %v355
      %v357 = vlaneseq
      %v358 = vshrl.u32 %v357, 7
      %v359 = vsub.s32 %v356, %v358
      %v360 = vrot.slane %v353, %v359
      %361 = vrot.lane.b32.xlu0 %v360, 127
      %v362 = vpop.permute.xlu0 %361
      %364 = vst.msk [vmem:[#allocation2 + $0x1c] sm:$0xc] %vm265, %v362
      %v365 = vld [vmem:[%s165] sm:$0x3]
      %v368 = vunpack.c.l.s4 1983009808
      %v369 = vunpack.c.0.s8 %v368
      %v370 = vlaneseq
      %v371 = vshrl.u32 %v370, 7
      %v372 = vsub.s32 %v369, %v371
      %v373 = vrot.slane %v365, %v372
      %374 = vrot.lane.b32.xlu0 %v373, 126
      %v375 = vpop.permute.xlu0 %374
      %377 = vst.msk [vmem:[#allocation2 + $0x20] sm:$0x3] %vm229, %v375
      %v378 = vld [vmem:[%s231] sm:$0x3]
      %v381 = vunpack.c.l.s4 1983009808
      %v382 = vunpack.c.0.s8 %v381
      %v383 = vlaneseq
      %v384 = vshrl.u32 %v383, 7
      %v385 = vsub.s32 %v382, %v384
      %v386 = vrot.slane %v378, %v385
      %387 = vrot.lane.b32.xlu0 %v386, 126
      %v388 = vpop.permute.xlu0 %387
      %390 = vst.msk [vmem:[#allocation2 + $0x24] sm:$0x3] %vm229, %v388
      %v391 = vld [vmem:[%s234] sm:$0x3]
      %v394 = vunpack.c.l.s4 1983009808
      %v395 = vunpack.c.0.s8 %v394
      %v396 = vlaneseq
      %v397 = vshrl.u32 %v396, 7
      %v398 = vsub.s32 %v395, %v397
      %v399 = vrot.slane %v391, %v398
      %400 = vrot.lane.b32.xlu0 %v399, 126
      %v401 = vpop.permute.xlu0 %400
      %403 = vst.msk [vmem:[#allocation2 + $0x28] sm:$0x3] %vm229, %v401
      %v404 = vld [vmem:[%s237] sm:$0x3]
      %v407 = vunpack.c.l.s4 1983009808
      %v408 = vunpack.c.0.s8 %v407
      %v409 = vlaneseq
      %v410 = vshrl.u32 %v409, 7
      %v411 = vsub.s32 %v408, %v410
      %v412 = vrot.slane %v404, %v411
      %413 = vrot.lane.b32.xlu0 %v412, 126
      %v414 = vpop.permute.xlu0 %413
      %416 = vst.msk [vmem:[#allocation2 + $0x2c] sm:$0x3] %vm229, %v414
      %v417 = vld [vmem:[%s240] sm:$0x3]
      %v420 = vunpack.c.l.s4 1983009808
      %v421 = vunpack.c.0.s8 %v420
      %v422 = vlaneseq
      %v423 = vshrl.u32 %v422, 7
      %v424 = vsub.s32 %v421, %v423
      %v425 = vrot.slane %v417, %v424
      %426 = vrot.lane.b32.xlu0 %v425, 126
      %v427 = vpop.permute.xlu0 %426
      %429 = vst.msk [vmem:[#allocation2 + $0x30] sm:$0x3] %vm229, %v427
      %v430 = vld [vmem:[%s243] sm:$0x3]
      %v433 = vunpack.c.l.s4 1983009808
      %v434 = vunpack.c.0.s8 %v433
      %v435 = vlaneseq
      %v436 = vshrl.u32 %v435, 7
      %v437 = vsub.s32 %v434, %v436
      %v438 = vrot.slane %v430, %v437
      %439 = vrot.lane.b32.xlu0 %v438, 126
      %v440 = vpop.permute.xlu0 %439
      %442 = vst.msk [vmem:[#allocation2 + $0x34] sm:$0x3] %vm229, %v440
      %v443 = vld [vmem:[%s246] sm:$0x3]
      %v446 = vunpack.c.l.s4 1983009808
      %v447 = vunpack.c.0.s8 %v446
      %v448 = vlaneseq
      %v449 = vshrl.u32 %v448, 7
      %v450 = vsub.s32 %v447, %v449
      %v451 = vrot.slane %v443, %v450
      %452 = vrot.lane.b32.xlu0 %v451, 126
      %v453 = vpop.permute.xlu0 %452
      %455 = vst.msk [vmem:[#allocation2 + $0x38] sm:$0x3] %vm229, %v453
      %v456 = vld [vmem:[%s249] sm:$0x3]
      %v459 = vunpack.c.l.s4 1983009808
      %v460 = vunpack.c.0.s8 %v459
      %v461 = vlaneseq
      %v462 = vshrl.u32 %v461, 7
      %v463 = vsub.s32 %v460, %v462
      %v464 = vrot.slane %v456, %v463
      %465 = vrot.lane.b32.xlu0 %v464, 126
      %v466 = vpop.permute.xlu0 %465
      %468 = vst.msk [vmem:[#allocation2 + $0x3c] sm:$0x3] %vm229, %v466
      %v469 = vld [vmem:[%s165] sm:$0x3]
      %v471 = vcombine.low %v469, %v469
      %v473 = vunpack.c.l.s4 1983009808
      %v474 = vunpack.c.0.s8 %v473
      %v475 = vlaneseq
      %v476 = vshrl.u32 %v475, 7
      %v477 = vsub.s32 %v474, %v476
      %v478 = vrot.slane %v471, %v477
      %479 = vrot.lane.b32.xlu0 %v478, 118
      %v480 = vpop.permute.xlu0 %479
      %482 = vst.msk [vmem:[#allocation2 + $0x20] sm:$0xc] %vm265, %v480
      %v483 = vld [vmem:[%s231] sm:$0x3]
      %v485 = vcombine.low %v483, %v483
      %v487 = vunpack.c.l.s4 1983009808
      %v488 = vunpack.c.0.s8 %v487
      %v489 = vlaneseq
      %v490 = vshrl.u32 %v489, 7
      %v491 = vsub.s32 %v488, %v490
      %v492 = vrot.slane %v485, %v491
      %493 = vrot.lane.b32.xlu0 %v492, 118
      %v494 = vpop.permute.xlu0 %493
      %496 = vst.msk [vmem:[#allocation2 + $0x24] sm:$0xc] %vm265, %v494
      %v497 = vld [vmem:[%s234] sm:$0x3]
      %v499 = vcombine.low %v497, %v497
      %v501 = vunpack.c.l.s4 1983009808
      %v502 = vunpack.c.0.s8 %v501
      %v503 = vlaneseq
      %v504 = vshrl.u32 %v503, 7
      %v505 = vsub.s32 %v502, %v504
      %v506 = vrot.slane %v499, %v505
      %507 = vrot.lane.b32.xlu0 %v506, 118
      %v508 = vpop.permute.xlu0 %507
      %510 = vst.msk [vmem:[#allocation2 + $0x28] sm:$0xc] %vm265, %v508
      %v511 = vld [vmem:[%s237] sm:$0x3]
      %v513 = vcombine.low %v511, %v511
      %v515 = vunpack.c.l.s4 1983009808
      %v516 = vunpack.c.0.s8 %v515
      %v517 = vlaneseq
      %v518 = vshrl.u32 %v517, 7
      %v519 = vsub.s32 %v516, %v518
      %v520 = vrot.slane %v513, %v519
      %521 = vrot.lane.b32.xlu0 %v520, 118
      %v522 = vpop.permute.xlu0 %521
      %524 = vst.msk [vmem:[#allocation2 + $0x2c] sm:$0xc] %vm265, %v522
      %v525 = vld [vmem:[%s240] sm:$0x3]
      %v527 = vcombine.low %v525, %v525
      %v529 = vunpack.c.l.s4 1983009808
      %v530 = vunpack.c.0.s8 %v529
      %v531 = vlaneseq
      %v532 = vshrl.u32 %v531, 7
      %v533 = vsub.s32 %v530, %v532
      %v534 = vrot.slane %v527, %v533
      %535 = vrot.lane.b32.xlu0 %v534, 118
      %v536 = vpop.permute.xlu0 %535
      %538 = vst.msk [vmem:[#allocation2 + $0x30] sm:$0xc] %vm265, %v536
      %v539 = vld [vmem:[%s243] sm:$0x3]
      %v541 = vcombine.low %v539, %v539
      %v543 = vunpack.c.l.s4 1983009808
      %v544 = vunpack.c.0.s8 %v543
      %v545 = vlaneseq
      %v546 = vshrl.u32 %v545, 7
      %v547 = vsub.s32 %v544, %v546
      %v548 = vrot.slane %v541, %v547
      %549 = vrot.lane.b32.xlu0 %v548, 118
      %v550 = vpop.permute.xlu0 %549
      %552 = vst.msk [vmem:[#allocation2 + $0x34] sm:$0xc] %vm265, %v550
      %v553 = vld [vmem:[%s246] sm:$0x3]
      %v555 = vcombine.low %v553, %v553
      %v557 = vunpack.c.l.s4 1983009808
      %v558 = vunpack.c.0.s8 %v557
      %v559 = vlaneseq
      %v560 = vshrl.u32 %v559, 7
      %v561 = vsub.s32 %v558, %v560
      %v562 = vrot.slane %v555, %v561
      %563 = vrot.lane.b32.xlu0 %v562, 118
      %v564 = vpop.permute.xlu0 %563
      %566 = vst.msk [vmem:[#allocation2 + $0x38] sm:$0xc] %vm265, %v564
      %v567 = vld [vmem:[%s249] sm:$0x3]
      %v569 = vcombine.low %v567, %v567
      %v571 = vunpack.c.l.s4 1983009808
      %v572 = vunpack.c.0.s8 %v571
      %v573 = vlaneseq
      %v574 = vshrl.u32 %v573, 7
      %v575 = vsub.s32 %v572, %v574
      %v576 = vrot.slane %v569, %v575
      %577 = vrot.lane.b32.xlu0 %v576, 118
      %v578 = vpop.permute.xlu0 %577
      %580 = vst.msk [vmem:[#allocation2 + $0x3c] sm:$0xc] %vm265, %v578
      %v581 = vld [vmem:[%s165] sm:$0x3]
      %v584 = vunpack.c.l.s4 1983009808
      %v585 = vunpack.c.0.s8 %v584
      %v586 = vlaneseq
      %v587 = vshrl.u32 %v586, 7
      %v588 = vsub.s32 %v585, %v587
      %v589 = vrot.slane %v581, %v588
      %590 = vrot.lane.b32.xlu0 %v589, 117
      %v591 = vpop.permute.xlu0 %590
      %593 = vst.msk [vmem:[#allocation2 + $0x40] sm:$0x3] %vm229, %v591
      %v594 = vld [vmem:[%s231] sm:$0x3]
      %v597 = vunpack.c.l.s4 1983009808
      %v598 = vunpack.c.0.s8 %v597
      %v599 = vlaneseq
      %v600 = vshrl.u32 %v599, 7
      %v601 = vsub.s32 %v598, %v600
      %v602 = vrot.slane %v594, %v601
      %603 = vrot.lane.b32.xlu0 %v602, 117
      %v604 = vpop.permute.xlu0 %603
      %606 = vst.msk [vmem:[#allocation2 + $0x44] sm:$0x3] %vm229, %v604
      %v607 = vld [vmem:[%s234] sm:$0x3]
      %v610 = vunpack.c.l.s4 1983009808
      %v611 = vunpack.c.0.s8 %v610
      %v612 = vlaneseq
      %v613 = vshrl.u32 %v612, 7
      %v614 = vsub.s32 %v611, %v613
      %v615 = vrot.slane %v607, %v614
      %616 = vrot.lane.b32.xlu0 %v615, 117
      %v617 = vpop.permute.xlu0 %616
      %619 = vst.msk [vmem:[#allocation2 + $0x48] sm:$0x3] %vm229, %v617
      %v620 = vld [vmem:[%s237] sm:$0x3]
      %v623 = vunpack.c.l.s4 1983009808
      %v624 = vunpack.c.0.s8 %v623
      %v625 = vlaneseq
      %v626 = vshrl.u32 %v625, 7
      %v627 = vsub.s32 %v624, %v626
      %v628 = vrot.slane %v620, %v627
      %629 = vrot.lane.b32.xlu0 %v628, 117
      %v630 = vpop.permute.xlu0 %629
      %632 = vst.msk [vmem:[#allocation2 + $0x4c] sm:$0x3] %vm229, %v630
      %v633 = vld [vmem:[%s240] sm:$0x3]
      %v636 = vunpack.c.l.s4 1983009808
      %v637 = vunpack.c.0.s8 %v636
      %v638 = vlaneseq
      %v639 = vshrl.u32 %v638, 7
      %v640 = vsub.s32 %v637, %v639
      %v641 = vrot.slane %v633, %v640
      %642 = vrot.lane.b32.xlu0 %v641, 117
      %v643 = vpop.permute.xlu0 %642
      %645 = vst.msk [vmem:[#allocation2 + $0x50] sm:$0x3] %vm229, %v643
      %v646 = vld [vmem:[%s243] sm:$0x3]
      %v649 = vunpack.c.l.s4 1983009808
      %v650 = vunpack.c.0.s8 %v649
      %v651 = vlaneseq
      %v652 = vshrl.u32 %v651, 7
      %v653 = vsub.s32 %v650, %v652
      %v654 = vrot.slane %v646, %v653
      %655 = vrot.lane.b32.xlu0 %v654, 117
      %v656 = vpop.permute.xlu0 %655
      %658 = vst.msk [vmem:[#allocation2 + $0x54] sm:$0x3] %vm229, %v656
      %v659 = vld [vmem:[%s246] sm:$0x3]
      %v662 = vunpack.c.l.s4 1983009808
      %v663 = vunpack.c.0.s8 %v662
      %v664 = vlaneseq
      %v665 = vshrl.u32 %v664, 7
      %v666 = vsub.s32 %v663, %v665
      %v667 = vrot.slane %v659, %v666
      %668 = vrot.lane.b32.xlu0 %v667, 117
      %v669 = vpop.permute.xlu0 %668
      %671 = vst.msk [vmem:[#allocation2 + $0x58] sm:$0x3] %vm229, %v669
      %v672 = vld [vmem:[%s249] sm:$0x3]
      %v675 = vunpack.c.l.s4 1983009808
      %v676 = vunpack.c.0.s8 %v675
      %v677 = vlaneseq
      %v678 = vshrl.u32 %v677, 7
      %v679 = vsub.s32 %v676, %v678
      %v680 = vrot.slane %v672, %v679
      %681 = vrot.lane.b32.xlu0 %v680, 117
      %v682 = vpop.permute.xlu0 %681
      %684 = vst.msk [vmem:[#allocation2 + $0x5c] sm:$0x3] %vm229, %v682
      %v685 = vld [vmem:[%s165] sm:$0x3]
      %v687 = vcombine.low %v685, %v685
      %v689 = vunpack.c.l.s4 1983009808
      %v690 = vunpack.c.0.s8 %v689
      %v691 = vlaneseq
      %v692 = vshrl.u32 %v691, 7
      %v693 = vsub.s32 %v690, %v692
      %v694 = vrot.slane %v687, %v693
      %695 = vrot.lane.b32.xlu0 %v694, 116
      %v696 = vpop.permute.xlu0 %695
      %698 = vst.msk [vmem:[#allocation2 + $0x40] sm:$0xc] %vm265, %v696
      %v699 = vld [vmem:[%s231] sm:$0x3]
      %v701 = vcombine.low %v699, %v699
      %v703 = vunpack.c.l.s4 1983009808
      %v704 = vunpack.c.0.s8 %v703
      %v705 = vlaneseq
      %v706 = vshrl.u32 %v705, 7
      %v707 = vsub.s32 %v704, %v706
      %v708 = vrot.slane %v701, %v707
      %709 = vrot.lane.b32.xlu0 %v708, 116
      %v710 = vpop.permute.xlu0 %709
      %712 = vst.msk [vmem:[#allocation2 + $0x44] sm:$0xc] %vm265, %v710
      %v713 = vld [vmem:[%s234] sm:$0x3]
      %v715 = vcombine.low %v713, %v713
      %v717 = vunpack.c.l.s4 1983009808
      %v718 = vunpack.c.0.s8 %v717
      %v719 = vlaneseq
      %v720 = vshrl.u32 %v719, 7
      %v721 = vsub.s32 %v718, %v720
      %v722 = vrot.slane %v715, %v721
      %723 = vrot.lane.b32.xlu0 %v722, 116
      %v724 = vpop.permute.xlu0 %723
      %726 = vst.msk [vmem:[#allocation2 + $0x48] sm:$0xc] %vm265, %v724
      %v727 = vld [vmem:[%s237] sm:$0x3]
      %v729 = vcombine.low %v727, %v727
      %v731 = vunpack.c.l.s4 1983009808
      %v732 = vunpack.c.0.s8 %v731
      %v733 = vlaneseq
      %v734 = vshrl.u32 %v733, 7
      %v735 = vsub.s32 %v732, %v734
      %v736 = vrot.slane %v729, %v735
      %737 = vrot.lane.b32.xlu0 %v736, 116
      %v738 = vpop.permute.xlu0 %737
      %740 = vst.msk [vmem:[#allocation2 + $0x4c] sm:$0xc] %vm265, %v738
      %v741 = vld [vmem:[%s240] sm:$0x3]
      %v743 = vcombine.low %v741, %v741
      %v745 = vunpack.c.l.s4 1983009808
      %v746 = vunpack.c.0.s8 %v745
      %v747 = vlaneseq
      %v748 = vshrl.u32 %v747, 7
      %v749 = vsub.s32 %v746, %v748
      %v750 = vrot.slane %v743, %v749
      %751 = vrot.lane.b32.xlu0 %v750, 116
      %v752 = vpop.permute.xlu0 %751
      %754 = vst.msk [vmem:[#allocation2 + $0x50] sm:$0xc] %vm265, %v752
      %v755 = vld [vmem:[%s243] sm:$0x3]
      %v757 = vcombine.low %v755, %v755
      %v759 = vunpack.c.l.s4 1983009808
      %v760 = vunpack.c.0.s8 %v759
      %v761 = vlaneseq
      %v762 = vshrl.u32 %v761, 7
      %v763 = vsub.s32 %v760, %v762
      %v764 = vrot.slane %v757, %v763
      %765 = vrot.lane.b32.xlu0 %v764, 116
      %v766 = vpop.permute.xlu0 %765
      %768 = vst.msk [vmem:[#allocation2 + $0x54] sm:$0xc] %vm265, %v766
      %v769 = vld [vmem:[%s246] sm:$0x3]
      %v771 = vcombine.low %v769, %v769
      %v773 = vunpack.c.l.s4 1983009808
      %v774 = vunpack.c.0.s8 %v773
      %v775 = vlaneseq
      %v776 = vshrl.u32 %v775, 7
      %v777 = vsub.s32 %v774, %v776
      %v778 = vrot.slane %v771, %v777
      %779 = vrot.lane.b32.xlu0 %v778, 116
      %v780 = vpop.permute.xlu0 %779
      %782 = vst.msk [vmem:[#allocation2 + $0x58] sm:$0xc] %vm265, %v780
      %v783 = vld [vmem:[%s249] sm:$0x3]
      %v785 = vcombine.low %v783, %v783
      %v787 = vunpack.c.l.s4 1983009808
      %v788 = vunpack.c.0.s8 %v787
      %v789 = vlaneseq
      %v790 = vshrl.u32 %v789, 7
      %v791 = vsub.s32 %v788, %v790
      %v792 = vrot.slane %v785, %v791
      %793 = vrot.lane.b32.xlu0 %v792, 116
      %v794 = vpop.permute.xlu0 %793
      %796 = vst.msk [vmem:[#allocation2 + $0x5c] sm:$0xc] %vm265, %v794
      %v797 = vld [vmem:[%s165] sm:$0x3]
      %v800 = vunpack.c.l.s4 1983009808
      %v801 = vunpack.c.0.s8 %v800
      %v802 = vlaneseq
      %v803 = vshrl.u32 %v802, 7
      %v804 = vsub.s32 %v801, %v803
      %v805 = vrot.slane %v797, %v804
      %806 = vrot.lane.b32.xlu0 %v805, 108
      %v807 = vpop.permute.xlu0 %806
      %809 = vst.msk [vmem:[#allocation2 + $0x60] sm:$0x3] %vm229, %v807
      %v810 = vld [vmem:[%s231] sm:$0x3]
      %v813 = vunpack.c.l.s4 1983009808
      %v814 = vunpack.c.0.s8 %v813
      %v815 = vlaneseq
      %v816 = vshrl.u32 %v815, 7
      %v817 = vsub.s32 %v814, %v816
      %v818 = vrot.slane %v810, %v817
      %819 = vrot.lane.b32.xlu0 %v818, 108
      %v820 = vpop.permute.xlu0 %819
      %822 = vst.msk [vmem:[#allocation2 + $0x64] sm:$0x3] %vm229, %v820
      %v823 = vld [vmem:[%s234] sm:$0x3]
      %v826 = vunpack.c.l.s4 1983009808
      %v827 = vunpack.c.0.s8 %v826
      %v828 = vlaneseq
      %v829 = vshrl.u32 %v828, 7
      %v830 = vsub.s32 %v827, %v829
      %v831 = vrot.slane %v823, %v830
      %832 = vrot.lane.b32.xlu0 %v831, 108
      %v833 = vpop.permute.xlu0 %832
      %835 = vst.msk [vmem:[#allocation2 + $0x68] sm:$0x3] %vm229, %v833
      %v836 = vld [vmem:[%s237] sm:$0x3]
      %v839 = vunpack.c.l.s4 1983009808
      %v840 = vunpack.c.0.s8 %v839
      %v841 = vlaneseq
      %v842 = vshrl.u32 %v841, 7
      %v843 = vsub.s32 %v840, %v842
      %v844 = vrot.slane %v836, %v843
      %845 = vrot.lane.b32.xlu0 %v844, 108
      %v846 = vpop.permute.xlu0 %845
      %848 = vst.msk [vmem:[#allocation2 + $0x6c] sm:$0x3] %vm229, %v846
      %v849 = vld [vmem:[%s240] sm:$0x3]
      %v852 = vunpack.c.l.s4 1983009808
      %v853 = vunpack.c.0.s8 %v852
      %v854 = vlaneseq
      %v855 = vshrl.u32 %v854, 7
      %v856 = vsub.s32 %v853, %v855
      %v857 = vrot.slane %v849, %v856
      %858 = vrot.lane.b32.xlu0 %v857, 108
      %v859 = vpop.permute.xlu0 %858
      %861 = vst.msk [vmem:[#allocation2 + $0x70] sm:$0x3] %vm229, %v859
      %v862 = vld [vmem:[%s243] sm:$0x3]
      %v865 = vunpack.c.l.s4 1983009808
      %v866 = vunpack.c.0.s8 %v865
      %v867 = vlaneseq
      %v868 = vshrl.u32 %v867, 7
      %v869 = vsub.s32 %v866, %v868
      %v870 = vrot.slane %v862, %v869
      %871 = vrot.lane.b32.xlu0 %v870, 108
      %v872 = vpop.permute.xlu0 %871
      %874 = vst.msk [vmem:[#allocation2 + $0x74] sm:$0x3] %vm229, %v872
      %v875 = vld [vmem:[%s246] sm:$0x3]
      %v878 = vunpack.c.l.s4 1983009808
      %v879 = vunpack.c.0.s8 %v878
      %v880 = vlaneseq
      %v881 = vshrl.u32 %v880, 7
      %v882 = vsub.s32 %v879, %v881
      %v883 = vrot.slane %v875, %v882
      %884 = vrot.lane.b32.xlu0 %v883, 108
      %v885 = vpop.permute.xlu0 %884
      %887 = vst.msk [vmem:[#allocation2 + $0x78] sm:$0x3] %vm229, %v885
      %v888 = vld [vmem:[%s249] sm:$0x3]
      %v891 = vunpack.c.l.s4 1983009808
      %v892 = vunpack.c.0.s8 %v891
      %v893 = vlaneseq
      %v894 = vshrl.u32 %v893, 7
      %v895 = vsub.s32 %v892, %v894
      %v896 = vrot.slane %v888, %v895
      %897 = vrot.lane.b32.xlu0 %v896, 108
      %v898 = vpop.permute.xlu0 %897
      %900 = vst.msk [vmem:[#allocation2 + $0x7c] sm:$0x3] %vm229, %v898
      %v901 = vld [vmem:[%s165] sm:$0x3]
      %v903 = vcombine.low %v901, %v901
      %v905 = vunpack.c.l.s4 1983009808
      %v906 = vunpack.c.0.s8 %v905
      %v907 = vlaneseq
      %v908 = vshrl.u32 %v907, 7
      %v909 = vsub.s32 %v906, %v908
      %v910 = vrot.slane %v903, %v909
      %911 = vrot.lane.b32.xlu0 %v910, 107
      %v912 = vpop.permute.xlu0 %911
      %914 = vst.msk [vmem:[#allocation2 + $0x60] sm:$0xc] %vm265, %v912
      %v915 = vld [vmem:[%s231] sm:$0x3]
      %v917 = vcombine.low %v915, %v915
      %v919 = vunpack.c.l.s4 1983009808
      %v920 = vunpack.c.0.s8 %v919
      %v921 = vlaneseq
      %v922 = vshrl.u32 %v921, 7
      %v923 = vsub.s32 %v920, %v922
      %v924 = vrot.slane %v917, %v923
      %925 = vrot.lane.b32.xlu0 %v924, 107
      %v926 = vpop.permute.xlu0 %925
      %928 = vst.msk [vmem:[#allocation2 + $0x64] sm:$0xc] %vm265, %v926
      %v929 = vld [vmem:[%s234] sm:$0x3]
      %v931 = vcombine.low %v929, %v929
      %v933 = vunpack.c.l.s4 1983009808
      %v934 = vunpack.c.0.s8 %v933
      %v935 = vlaneseq
      %v936 = vshrl.u32 %v935, 7
      %v937 = vsub.s32 %v934, %v936
      %v938 = vrot.slane %v931, %v937
      %939 = vrot.lane.b32.xlu0 %v938, 107
      %v940 = vpop.permute.xlu0 %939
      %942 = vst.msk [vmem:[#allocation2 + $0x68] sm:$0xc] %vm265, %v940
      %v943 = vld [vmem:[%s237] sm:$0x3]
      %v945 = vcombine.low %v943, %v943
      %v947 = vunpack.c.l.s4 1983009808
      %v948 = vunpack.c.0.s8 %v947
      %v949 = vlaneseq
      %v950 = vshrl.u32 %v949, 7
      %v951 = vsub.s32 %v948, %v950
      %v952 = vrot.slane %v945, %v951
      %953 = vrot.lane.b32.xlu0 %v952, 107
      %v954 = vpop.permute.xlu0 %953
      %956 = vst.msk [vmem:[#allocation2 + $0x6c] sm:$0xc] %vm265, %v954
      %v957 = vld [vmem:[%s240] sm:$0x3]
      %v959 = vcombine.low %v957, %v957
      %v961 = vunpack.c.l.s4 1983009808
      %v962 = vunpack.c.0.s8 %v961
      %v963 = vlaneseq
      %v964 = vshrl.u32 %v963, 7
      %v965 = vsub.s32 %v962, %v964
      %v966 = vrot.slane %v959, %v965
      %967 = vrot.lane.b32.xlu0 %v966, 107
      %v968 = vpop.permute.xlu0 %967
      %970 = vst.msk [vmem:[#allocation2 + $0x70] sm:$0xc] %vm265, %v968
      %v971 = vld [vmem:[%s243] sm:$0x3]
      %v973 = vcombine.low %v971, %v971
      %v975 = vunpack.c.l.s4 1983009808
      %v976 = vunpack.c.0.s8 %v975
      %v977 = vlaneseq
      %v978 = vshrl.u32 %v977, 7
      %v979 = vsub.s32 %v976, %v978
      %v980 = vrot.slane %v973, %v979
      %981 = vrot.lane.b32.xlu0 %v980, 107
      %v982 = vpop.permute.xlu0 %981
      %984 = vst.msk [vmem:[#allocation2 + $0x74] sm:$0xc] %vm265, %v982
      %v985 = vld [vmem:[%s246] sm:$0x3]
      %v987 = vcombine.low %v985, %v985
      %v989 = vunpack.c.l.s4 1983009808
      %v990 = vunpack.c.0.s8 %v989
      %v991 = vlaneseq
      %v992 = vshrl.u32 %v991, 7
      %v993 = vsub.s32 %v990, %v992
      %v994 = vrot.slane %v987, %v993
      %995 = vrot.lane.b32.xlu0 %v994, 107
      %v996 = vpop.permute.xlu0 %995
      %998 = vst.msk [vmem:[#allocation2 + $0x78] sm:$0xc] %vm265, %v996
      %v999 = vld [vmem:[%s249] sm:$0x3]
      %v1001 = vcombine.low %v999, %v999
      %v1003 = vunpack.c.l.s4 1983009808
      %v1004 = vunpack.c.0.s8 %v1003
      %v1005 = vlaneseq
      %v1006 = vshrl.u32 %v1005, 7
      %v1007 = vsub.s32 %v1004, %v1006
      %v1008 = vrot.slane %v1001, %v1007
      %1009 = vrot.lane.b32.xlu0 %v1008, 107
      %v1010 = vpop.permute.xlu0 %1009
      %1012 = vst.msk [vmem:[#allocation2 + $0x7c] sm:$0xc] %vm265, %v1010
      %v1013 = vld [vmem:[%s165] sm:$0x3]
      %v1016 = vunpack.c.l.s4 1983009808
      %v1017 = vunpack.c.0.s8 %v1016
      %v1018 = vlaneseq
      %v1019 = vshrl.u32 %v1018, 7
      %v1020 = vsub.s32 %v1017, %v1019
      %v1021 = vrot.slane %v1013, %v1020
      %1022 = vrot.lane.b32.xlu0 %v1021, 106
      %v1023 = vpop.permute.xlu0 %1022
      %1025 = vst.msk [vmem:[#allocation2 + $0x80] sm:$0x3] %vm229, %v1023
      %v1026 = vld [vmem:[%s231] sm:$0x3]
      %v1029 = vunpack.c.l.s4 1983009808
      %v1030 = vunpack.c.0.s8 %v1029
      %v1031 = vlaneseq
      %v1032 = vshrl.u32 %v1031, 7
      %v1033 = vsub.s32 %v1030, %v1032
      %v1034 = vrot.slane %v1026, %v1033
      %1035 = vrot.lane.b32.xlu0 %v1034, 106
      %v1036 = vpop.permute.xlu0 %1035
      %1038 = vst.msk [vmem:[#allocation2 + $0x84] sm:$0x3] %vm229, %v1036
      %v1039 = vld [vmem:[%s234] sm:$0x3]
      %v1042 = vunpack.c.l.s4 1983009808
      %v1043 = vunpack.c.0.s8 %v1042
      %v1044 = vlaneseq
      %v1045 = vshrl.u32 %v1044, 7
      %v1046 = vsub.s32 %v1043, %v1045
      %v1047 = vrot.slane %v1039, %v1046
      %1048 = vrot.lane.b32.xlu0 %v1047, 106
      %v1049 = vpop.permute.xlu0 %1048
      %1051 = vst.msk [vmem:[#allocation2 + $0x88] sm:$0x3] %vm229, %v1049
      %v1052 = vld [vmem:[%s237] sm:$0x3]
      %v1055 = vunpack.c.l.s4 1983009808
      %v1056 = vunpack.c.0.s8 %v1055
      %v1057 = vlaneseq
      %v1058 = vshrl.u32 %v1057, 7
      %v1059 = vsub.s32 %v1056, %v1058
      %v1060 = vrot.slane %v1052, %v1059
      %1061 = vrot.lane.b32.xlu0 %v1060, 106
      %v1062 = vpop.permute.xlu0 %1061
      %1064 = vst.msk [vmem:[#allocation2 + $0x8c] sm:$0x3] %vm229, %v1062
      %v1065 = vld [vmem:[%s240] sm:$0x3]
      %v1068 = vunpack.c.l.s4 1983009808
      %v1069 = vunpack.c.0.s8 %v1068
      %v1070 = vlaneseq
      %v1071 = vshrl.u32 %v1070, 7
      %v1072 = vsub.s32 %v1069, %v1071
      %v1073 = vrot.slane %v1065, %v1072
      %1074 = vrot.lane.b32.xlu0 %v1073, 106
      %v1075 = vpop.permute.xlu0 %1074
      %1077 = vst.msk [vmem:[#allocation2 + $0x90] sm:$0x3] %vm229, %v1075
      %v1078 = vld [vmem:[%s243] sm:$0x3]
      %v1081 = vunpack.c.l.s4 1983009808
      %v1082 = vunpack.c.0.s8 %v1081
      %v1083 = vlaneseq
      %v1084 = vshrl.u32 %v1083, 7
      %v1085 = vsub.s32 %v1082, %v1084
      %v1086 = vrot.slane %v1078, %v1085
      %1087 = vrot.lane.b32.xlu0 %v1086, 106
      %v1088 = vpop.permute.xlu0 %1087
      %1090 = vst.msk [vmem:[#allocation2 + $0x94] sm:$0x3] %vm229, %v1088
      %v1091 = vld [vmem:[%s246] sm:$0x3]
      %v1094 = vunpack.c.l.s4 1983009808
      %v1095 = vunpack.c.0.s8 %v1094
      %v1096 = vlaneseq
      %v1097 = vshrl.u32 %v1096, 7
      %v1098 = vsub.s32 %v1095, %v1097
      %v1099 = vrot.slane %v1091, %v1098
      %1100 = vrot.lane.b32.xlu0 %v1099, 106
      %v1101 = vpop.permute.xlu0 %1100
      %1103 = vst.msk [vmem:[#allocation2 + $0x98] sm:$0x3] %vm229, %v1101
      %v1104 = vld [vmem:[%s249] sm:$0x3]
      %v1107 = vunpack.c.l.s4 1983009808
      %v1108 = vunpack.c.0.s8 %v1107
      %v1109 = vlaneseq
      %v1110 = vshrl.u32 %v1109, 7
      %v1111 = vsub.s32 %v1108, %v1110
      %v1112 = vrot.slane %v1104, %v1111
      %1113 = vrot.lane.b32.xlu0 %v1112, 106
      %v1114 = vpop.permute.xlu0 %1113
      %1116 = vst.msk [vmem:[#allocation2 + $0x9c] sm:$0x3] %vm229, %v1114
      %v1117 = vld [vmem:[%s231] sm:$0x3]
      %v1119 = vcombine.low %v1117, %v1117
      %v1121 = vunpack.c.l.s4 1983009808
      %v1122 = vunpack.c.0.s8 %v1121
      %v1123 = vlaneseq
      %v1124 = vshrl.u32 %v1123, 7
      %v1125 = vsub.s32 %v1122, %v1124
      %v1126 = vrot.slane %v1119, %v1125
      %1128 = vst.msk [vmem:[#allocation2 + $0x80] sm:$0xc] %vm265, %v1126
      %v1129 = vld [vmem:[%s234] sm:$0x3]
      %v1131 = vcombine.low %v1129, %v1129
      %v1133 = vunpack.c.l.s4 1983009808
      %v1134 = vunpack.c.0.s8 %v1133
      %v1135 = vlaneseq
      %v1136 = vshrl.u32 %v1135, 7
      %v1137 = vsub.s32 %v1134, %v1136
      %v1138 = vrot.slane %v1131, %v1137
      %1140 = vst.msk [vmem:[#allocation2 + $0x84] sm:$0xc] %vm265, %v1138
      %v1141 = vld [vmem:[%s237] sm:$0x3]
      %v1143 = vcombine.low %v1141, %v1141
      %v1145 = vunpack.c.l.s4 1983009808
      %v1146 = vunpack.c.0.s8 %v1145
      %v1147 = vlaneseq
      %v1148 = vshrl.u32 %v1147, 7
      %v1149 = vsub.s32 %v1146, %v1148
      %v1150 = vrot.slane %v1143, %v1149
      %1152 = vst.msk [vmem:[#allocation2 + $0x88] sm:$0xc] %vm265, %v1150
      %v1153 = vld [vmem:[%s240] sm:$0x3]
      %v1155 = vcombine.low %v1153, %v1153
      %v1157 = vunpack.c.l.s4 1983009808
      %v1158 = vunpack.c.0.s8 %v1157
      %v1159 = vlaneseq
      %v1160 = vshrl.u32 %v1159, 7
      %v1161 = vsub.s32 %v1158, %v1160
      %v1162 = vrot.slane %v1155, %v1161
      %1164 = vst.msk [vmem:[#allocation2 + $0x8c] sm:$0xc] %vm265, %v1162
      %v1165 = vld [vmem:[%s243] sm:$0x3]
      %v1167 = vcombine.low %v1165, %v1165
      %v1169 = vunpack.c.l.s4 1983009808
      %v1170 = vunpack.c.0.s8 %v1169
      %v1171 = vlaneseq
      %v1172 = vshrl.u32 %v1171, 7
      %v1173 = vsub.s32 %v1170, %v1172
      %v1174 = vrot.slane %v1167, %v1173
      %1176 = vst.msk [vmem:[#allocation2 + $0x90] sm:$0xc] %vm265, %v1174
      %v1177 = vld [vmem:[%s246] sm:$0x3]
      %v1179 = vcombine.low %v1177, %v1177
      %v1181 = vunpack.c.l.s4 1983009808
      %v1182 = vunpack.c.0.s8 %v1181
      %v1183 = vlaneseq
      %v1184 = vshrl.u32 %v1183, 7
      %v1185 = vsub.s32 %v1182, %v1184
      %v1186 = vrot.slane %v1179, %v1185
      %1188 = vst.msk [vmem:[#allocation2 + $0x94] sm:$0xc] %vm265, %v1186
      %v1189 = vld [vmem:[%s249] sm:$0x3]
      %v1191 = vcombine.low %v1189, %v1189
      %v1193 = vunpack.c.l.s4 1983009808
      %v1194 = vunpack.c.0.s8 %v1193
      %v1195 = vlaneseq
      %v1196 = vshrl.u32 %v1195, 7
      %v1197 = vsub.s32 %v1194, %v1196
      %v1198 = vrot.slane %v1191, %v1197
      %1200 = vst.msk [vmem:[#allocation2 + $0x98] sm:$0xc] %vm265, %v1198
      %s1201 = scalar_lea.vmem %s165, 16
      %v1202 = vld [vmem:[%s1201] sm:$0x3]
      %v1204 = vcombine.low %v1202, %v1202
      %v1206 = vunpack.c.l.s4 1983009808
      %v1207 = vunpack.c.0.s8 %v1206
      %v1208 = vlaneseq
      %v1209 = vshrl.u32 %v1208, 7
      %v1210 = vsub.s32 %v1207, %v1209
      %v1211 = vrot.slane %v1204, %v1210
      %1213 = vst.msk [vmem:[#allocation2 + $0x9c] sm:$0xc] %vm265, %v1211
      %v1214 = vld [vmem:[%s231] sm:$0x3]
      %v1217 = vunpack.c.l.s4 1983009808
      %v1218 = vunpack.c.0.s8 %v1217
      %v1219 = vlaneseq
      %v1220 = vshrl.u32 %v1219, 7
      %v1221 = vsub.s32 %v1218, %v1220
      %v1222 = vrot.slane %v1214, %v1221
      %1223 = vrot.lane.b32.xlu0 %v1222, 127
      %v1224 = vpop.permute.xlu0 %1223
      %1226 = vst.msk [vmem:[#allocation2 + $0xa0] sm:$0x3] %vm229, %v1224
      %v1227 = vld [vmem:[%s234] sm:$0x3]
      %v1230 = vunpack.c.l.s4 1983009808
      %v1231 = vunpack.c.0.s8 %v1230
      %v1232 = vlaneseq
      %v1233 = vshrl.u32 %v1232, 7
      %v1234 = vsub.s32 %v1231, %v1233
      %v1235 = vrot.slane %v1227, %v1234
      %1236 = vrot.lane.b32.xlu0 %v1235, 127
      %v1237 = vpop.permute.xlu0 %1236
      %1239 = vst.msk [vmem:[#allocation2 + $0xa4] sm:$0x3] %vm229, %v1237
      %v1240 = vld [vmem:[%s237] sm:$0x3]
      %v1243 = vunpack.c.l.s4 1983009808
      %v1244 = vunpack.c.0.s8 %v1243
      %v1245 = vlaneseq
      %v1246 = vshrl.u32 %v1245, 7
      %v1247 = vsub.s32 %v1244, %v1246
      %v1248 = vrot.slane %v1240, %v1247
      %1249 = vrot.lane.b32.xlu0 %v1248, 127
      %v1250 = vpop.permute.xlu0 %1249
      %1252 = vst.msk [vmem:[#allocation2 + $0xa8] sm:$0x3] %vm229, %v1250
      %v1253 = vld [vmem:[%s240] sm:$0x3]
      %v1256 = vunpack.c.l.s4 1983009808
      %v1257 = vunpack.c.0.s8 %v1256
      %v1258 = vlaneseq
      %v1259 = vshrl.u32 %v1258, 7
      %v1260 = vsub.s32 %v1257, %v1259
      %v1261 = vrot.slane %v1253, %v1260
      %1262 = vrot.lane.b32.xlu0 %v1261, 127
      %v1263 = vpop.permute.xlu0 %1262
      %1265 = vst.msk [vmem:[#allocation2 + $0xac] sm:$0x3] %vm229, %v1263
      %v1266 = vld [vmem:[%s243] sm:$0x3]
      %v1269 = vunpack.c.l.s4 1983009808
      %v1270 = vunpack.c.0.s8 %v1269
      %v1271 = vlaneseq
      %v1272 = vshrl.u32 %v1271, 7
      %v1273 = vsub.s32 %v1270, %v1272
      %v1274 = vrot.slane %v1266, %v1273
      %1275 = vrot.lane.b32.xlu0 %v1274, 127
      %v1276 = vpop.permute.xlu0 %1275
      %1278 = vst.msk [vmem:[#allocation2 + $0xb0] sm:$0x3] %vm229, %v1276
      %v1279 = vld [vmem:[%s246] sm:$0x3]
      %v1282 = vunpack.c.l.s4 1983009808
      %v1283 = vunpack.c.0.s8 %v1282
      %v1284 = vlaneseq
      %v1285 = vshrl.u32 %v1284, 7
      %v1286 = vsub.s32 %v1283, %v1285
      %v1287 = vrot.slane %v1279, %v1286
      %1288 = vrot.lane.b32.xlu0 %v1287, 127
      %v1289 = vpop.permute.xlu0 %1288
      %1291 = vst.msk [vmem:[#allocation2 + $0xb4] sm:$0x3] %vm229, %v1289
      %v1292 = vld [vmem:[%s249] sm:$0x3]
      %v1295 = vunpack.c.l.s4 1983009808
      %v1296 = vunpack.c.0.s8 %v1295
      %v1297 = vlaneseq
      %v1298 = vshrl.u32 %v1297, 7
      %v1299 = vsub.s32 %v1296, %v1298
      %v1300 = vrot.slane %v1292, %v1299
      %1301 = vrot.lane.b32.xlu0 %v1300, 127
      %v1302 = vpop.permute.xlu0 %1301
      %1304 = vst.msk [vmem:[#allocation2 + $0xb8] sm:$0x3] %vm229, %v1302
      %v1305 = vld [vmem:[%s1201] sm:$0x3]
      %v1308 = vunpack.c.l.s4 1983009808
      %v1309 = vunpack.c.0.s8 %v1308
      %v1310 = vlaneseq
      %v1311 = vshrl.u32 %v1310, 7
      %v1312 = vsub.s32 %v1309, %v1311
      %v1313 = vrot.slane %v1305, %v1312
      %1314 = vrot.lane.b32.xlu0 %v1313, 127
      %v1315 = vpop.permute.xlu0 %1314
      %1317 = vst.msk [vmem:[#allocation2 + $0xbc] sm:$0x3] %vm229, %v1315
      %v1318 = vld [vmem:[%s231] sm:$0x3]
      %v1320 = vcombine.low %v1318, %v1318
      %v1322 = vunpack.c.l.s4 1983009808
      %v1323 = vunpack.c.0.s8 %v1322
      %v1324 = vlaneseq
      %v1325 = vshrl.u32 %v1324, 7
      %v1326 = vsub.s32 %v1323, %v1325
      %v1327 = vrot.slane %v1320, %v1326
      %1328 = vrot.lane.b32.xlu0 %v1327, 126
      %v1329 = vpop.permute.xlu0 %1328
      %1331 = vst.msk [vmem:[#allocation2 + $0xa0] sm:$0xc] %vm265, %v1329
      %v1332 = vld [vmem:[%s234] sm:$0x3]
      %v1334 = vcombine.low %v1332, %v1332
      %v1336 = vunpack.c.l.s4 1983009808
      %v1337 = vunpack.c.0.s8 %v1336
      %v1338 = vlaneseq
      %v1339 = vshrl.u32 %v1338, 7
      %v1340 = vsub.s32 %v1337, %v1339
      %v1341 = vrot.slane %v1334, %v1340
      %1342 = vrot.lane.b32.xlu0 %v1341, 126
      %v1343 = vpop.permute.xlu0 %1342
      %1345 = vst.msk [vmem:[#allocation2 + $0xa4] sm:$0xc] %vm265, %v1343
      %v1346 = vld [vmem:[%s237] sm:$0x3]
      %v1348 = vcombine.low %v1346, %v1346
      %v1350 = vunpack.c.l.s4 1983009808
      %v1351 = vunpack.c.0.s8 %v1350
      %v1352 = vlaneseq
      %v1353 = vshrl.u32 %v1352, 7
      %v1354 = vsub.s32 %v1351, %v1353
      %v1355 = vrot.slane %v1348, %v1354
      %1356 = vrot.lane.b32.xlu0 %v1355, 126
      %v1357 = vpop.permute.xlu0 %1356
      %1359 = vst.msk [vmem:[#allocation2 + $0xa8] sm:$0xc] %vm265, %v1357
      %v1360 = vld [vmem:[%s240] sm:$0x3]
      %v1362 = vcombine.low %v1360, %v1360
      %v1364 = vunpack.c.l.s4 1983009808
      %v1365 = vunpack.c.0.s8 %v1364
      %v1366 = vlaneseq
      %v1367 = vshrl.u32 %v1366, 7
      %v1368 = vsub.s32 %v1365, %v1367
      %v1369 = vrot.slane %v1362, %v1368
      %1370 = vrot.lane.b32.xlu0 %v1369, 126
      %v1371 = vpop.permute.xlu0 %1370
      %1373 = vst.msk [vmem:[#allocation2 + $0xac] sm:$0xc] %vm265, %v1371
      %v1374 = vld [vmem:[%s243] sm:$0x3]
      %v1376 = vcombine.low %v1374, %v1374
      %v1378 = vunpack.c.l.s4 1983009808
      %v1379 = vunpack.c.0.s8 %v1378
      %v1380 = vlaneseq
      %v1381 = vshrl.u32 %v1380, 7
      %v1382 = vsub.s32 %v1379, %v1381
      %v1383 = vrot.slane %v1376, %v1382
      %1384 = vrot.lane.b32.xlu0 %v1383, 126
      %v1385 = vpop.permute.xlu0 %1384
      %1387 = vst.msk [vmem:[#allocation2 + $0xb0] sm:$0xc] %vm265, %v1385
      %v1388 = vld [vmem:[%s246] sm:$0x3]
      %v1390 = vcombine.low %v1388, %v1388
      %v1392 = vunpack.c.l.s4 1983009808
      %v1393 = vunpack.c.0.s8 %v1392
      %v1394 = vlaneseq
      %v1395 = vshrl.u32 %v1394, 7
      %v1396 = vsub.s32 %v1393, %v1395
      %v1397 = vrot.slane %v1390, %v1396
      %1398 = vrot.lane.b32.xlu0 %v1397, 126
      %v1399 = vpop.permute.xlu0 %1398
      %1401 = vst.msk [vmem:[#allocation2 + $0xb4] sm:$0xc] %vm265, %v1399
      %v1402 = vld [vmem:[%s249] sm:$0x3]
      %v1404 = vcombine.low %v1402, %v1402
      %v1406 = vunpack.c.l.s4 1983009808
      %v1407 = vunpack.c.0.s8 %v1406
      %v1408 = vlaneseq
      %v1409 = vshrl.u32 %v1408, 7
      %v1410 = vsub.s32 %v1407, %v1409
      %v1411 = vrot.slane %v1404, %v1410
      %1412 = vrot.lane.b32.xlu0 %v1411, 126
      %v1413 = vpop.permute.xlu0 %1412
      %1415 = vst.msk [vmem:[#allocation2 + $0xb8] sm:$0xc] %vm265, %v1413
      %v1416 = vld [vmem:[%s1201] sm:$0x3]
      %v1418 = vcombine.low %v1416, %v1416
      %v1420 = vunpack.c.l.s4 1983009808
      %v1421 = vunpack.c.0.s8 %v1420
      %v1422 = vlaneseq
      %v1423 = vshrl.u32 %v1422, 7
      %v1424 = vsub.s32 %v1421, %v1423
      %v1425 = vrot.slane %v1418, %v1424
      %1426 = vrot.lane.b32.xlu0 %v1425, 126
      %v1427 = vpop.permute.xlu0 %1426
      %1429 = vst.msk [vmem:[#allocation2 + $0xbc] sm:$0xc] %vm265, %v1427
      %v1430 = vld [vmem:[%s231] sm:$0x3]
      %v1433 = vunpack.c.l.s4 1983009808
      %v1434 = vunpack.c.0.s8 %v1433
      %v1435 = vlaneseq
      %v1436 = vshrl.u32 %v1435, 7
      %v1437 = vsub.s32 %v1434, %v1436
      %v1438 = vrot.slane %v1430, %v1437
      %1439 = vrot.lane.b32.xlu0 %v1438, 118
      %v1440 = vpop.permute.xlu0 %1439
      %1442 = vst.msk [vmem:[#allocation2 + $0xc0] sm:$0x3] %vm229, %v1440
      %v1443 = vld [vmem:[%s234] sm:$0x3]
      %v1446 = vunpack.c.l.s4 1983009808
      %v1447 = vunpack.c.0.s8 %v1446
      %v1448 = vlaneseq
      %v1449 = vshrl.u32 %v1448, 7
      %v1450 = vsub.s32 %v1447, %v1449
      %v1451 = vrot.slane %v1443, %v1450
      %1452 = vrot.lane.b32.xlu0 %v1451, 118
      %v1453 = vpop.permute.xlu0 %1452
      %1455 = vst.msk [vmem:[#allocation2 + $0xc4] sm:$0x3] %vm229, %v1453
      %v1456 = vld [vmem:[%s237] sm:$0x3]
      %v1459 = vunpack.c.l.s4 1983009808
      %v1460 = vunpack.c.0.s8 %v1459
      %v1461 = vlaneseq
      %v1462 = vshrl.u32 %v1461, 7
      %v1463 = vsub.s32 %v1460, %v1462
      %v1464 = vrot.slane %v1456, %v1463
      %1465 = vrot.lane.b32.xlu0 %v1464, 118
      %v1466 = vpop.permute.xlu0 %1465
      %1468 = vst.msk [vmem:[#allocation2 + $0xc8] sm:$0x3] %vm229, %v1466
      %v1469 = vld [vmem:[%s240] sm:$0x3]
      %v1472 = vunpack.c.l.s4 1983009808
      %v1473 = vunpack.c.0.s8 %v1472
      %v1474 = vlaneseq
      %v1475 = vshrl.u32 %v1474, 7
      %v1476 = vsub.s32 %v1473, %v1475
      %v1477 = vrot.slane %v1469, %v1476
      %1478 = vrot.lane.b32.xlu0 %v1477, 118
      %v1479 = vpop.permute.xlu0 %1478
      %1481 = vst.msk [vmem:[#allocation2 + $0xcc] sm:$0x3] %vm229, %v1479
      %v1482 = vld [vmem:[%s243] sm:$0x3]
      %v1485 = vunpack.c.l.s4 1983009808
      %v1486 = vunpack.c.0.s8 %v1485
      %v1487 = vlaneseq
      %v1488 = vshrl.u32 %v1487, 7
      %v1489 = vsub.s32 %v1486, %v1488
      %v1490 = vrot.slane %v1482, %v1489
      %1491 = vrot.lane.b32.xlu0 %v1490, 118
      %v1492 = vpop.permute.xlu0 %1491
      %1494 = vst.msk [vmem:[#allocation2 + $0xd0] sm:$0x3] %vm229, %v1492
      %v1495 = vld [vmem:[%s246] sm:$0x3]
      %v1498 = vunpack.c.l.s4 1983009808
      %v1499 = vunpack.c.0.s8 %v1498
      %v1500 = vlaneseq
      %v1501 = vshrl.u32 %v1500, 7
      %v1502 = vsub.s32 %v1499, %v1501
      %v1503 = vrot.slane %v1495, %v1502
      %1504 = vrot.lane.b32.xlu0 %v1503, 118
      %v1505 = vpop.permute.xlu0 %1504
      %1507 = vst.msk [vmem:[#allocation2 + $0xd4] sm:$0x3] %vm229, %v1505
      %v1508 = vld [vmem:[%s249] sm:$0x3]
      %v1511 = vunpack.c.l.s4 1983009808
      %v1512 = vunpack.c.0.s8 %v1511
      %v1513 = vlaneseq
      %v1514 = vshrl.u32 %v1513, 7
      %v1515 = vsub.s32 %v1512, %v1514
      %v1516 = vrot.slane %v1508, %v1515
      %1517 = vrot.lane.b32.xlu0 %v1516, 118
      %v1518 = vpop.permute.xlu0 %1517
      %1520 = vst.msk [vmem:[#allocation2 + $0xd8] sm:$0x3] %vm229, %v1518
      %v1521 = vld [vmem:[%s1201] sm:$0x3]
      %v1524 = vunpack.c.l.s4 1983009808
      %v1525 = vunpack.c.0.s8 %v1524
      %v1526 = vlaneseq
      %v1527 = vshrl.u32 %v1526, 7
      %v1528 = vsub.s32 %v1525, %v1527
      %v1529 = vrot.slane %v1521, %v1528
      %1530 = vrot.lane.b32.xlu0 %v1529, 118
      %v1531 = vpop.permute.xlu0 %1530
      %1533 = vst.msk [vmem:[#allocation2 + $0xdc] sm:$0x3] %vm229, %v1531
      %v1534 = vld [vmem:[%s231] sm:$0x3]
      %v1536 = vcombine.low %v1534, %v1534
      %v1538 = vunpack.c.l.s4 1983009808
      %v1539 = vunpack.c.0.s8 %v1538
      %v1540 = vlaneseq
      %v1541 = vshrl.u32 %v1540, 7
      %v1542 = vsub.s32 %v1539, %v1541
      %v1543 = vrot.slane %v1536, %v1542
      %1544 = vrot.lane.b32.xlu0 %v1543, 117
      %v1545 = vpop.permute.xlu0 %1544
      %1547 = vst.msk [vmem:[#allocation2 + $0xc0] sm:$0xc] %vm265, %v1545
      %v1548 = vld [vmem:[%s234] sm:$0x3]
      %v1550 = vcombine.low %v1548, %v1548
      %v1552 = vunpack.c.l.s4 1983009808
      %v1553 = vunpack.c.0.s8 %v1552
      %v1554 = vlaneseq
      %v1555 = vshrl.u32 %v1554, 7
      %v1556 = vsub.s32 %v1553, %v1555
      %v1557 = vrot.slane %v1550, %v1556
      %1558 = vrot.lane.b32.xlu0 %v1557, 117
      %v1559 = vpop.permute.xlu0 %1558
      %1561 = vst.msk [vmem:[#allocation2 + $0xc4] sm:$0xc] %vm265, %v1559
      %v1562 = vld [vmem:[%s237] sm:$0x3]
      %v1564 = vcombine.low %v1562, %v1562
      %v1566 = vunpack.c.l.s4 1983009808
      %v1567 = vunpack.c.0.s8 %v1566
      %v1568 = vlaneseq
      %v1569 = vshrl.u32 %v1568, 7
      %v1570 = vsub.s32 %v1567, %v1569
      %v1571 = vrot.slane %v1564, %v1570
      %1572 = vrot.lane.b32.xlu0 %v1571, 117
      %v1573 = vpop.permute.xlu0 %1572
      %1575 = vst.msk [vmem:[#allocation2 + $0xc8] sm:$0xc] %vm265, %v1573
      %v1576 = vld [vmem:[%s240] sm:$0x3]
      %v1578 = vcombine.low %v1576, %v1576
      %v1580 = vunpack.c.l.s4 1983009808
      %v1581 = vunpack.c.0.s8 %v1580
      %v1582 = vlaneseq
      %v1583 = vshrl.u32 %v1582, 7
      %v1584 = vsub.s32 %v1581, %v1583
      %v1585 = vrot.slane %v1578, %v1584
      %1586 = vrot.lane.b32.xlu0 %v1585, 117
      %v1587 = vpop.permute.xlu0 %1586
      %1589 = vst.msk [vmem:[#allocation2 + $0xcc] sm:$0xc] %vm265, %v1587
      %v1590 = vld [vmem:[%s243] sm:$0x3]
      %v1592 = vcombine.low %v1590, %v1590
      %v1594 = vunpack.c.l.s4 1983009808
      %v1595 = vunpack.c.0.s8 %v1594
      %v1596 = vlaneseq
      %v1597 = vshrl.u32 %v1596, 7
      %v1598 = vsub.s32 %v1595, %v1597
      %v1599 = vrot.slane %v1592, %v1598
      %1600 = vrot.lane.b32.xlu0 %v1599, 117
      %v1601 = vpop.permute.xlu0 %1600
      %1603 = vst.msk [vmem:[#allocation2 + $0xd0] sm:$0xc] %vm265, %v1601
      %v1604 = vld [vmem:[%s246] sm:$0x3]
      %v1606 = vcombine.low %v1604, %v1604
      %v1608 = vunpack.c.l.s4 1983009808
      %v1609 = vunpack.c.0.s8 %v1608
      %v1610 = vlaneseq
      %v1611 = vshrl.u32 %v1610, 7
      %v1612 = vsub.s32 %v1609, %v1611
      %v1613 = vrot.slane %v1606, %v1612
      %1614 = vrot.lane.b32.xlu0 %v1613, 117
      %v1615 = vpop.permute.xlu0 %1614
      %1617 = vst.msk [vmem:[#allocation2 + $0xd4] sm:$0xc] %vm265, %v1615
      %v1618 = vld [vmem:[%s249] sm:$0x3]
      %v1620 = vcombine.low %v1618, %v1618
      %v1622 = vunpack.c.l.s4 1983009808
      %v1623 = vunpack.c.0.s8 %v1622
      %v1624 = vlaneseq
      %v1625 = vshrl.u32 %v1624, 7
      %v1626 = vsub.s32 %v1623, %v1625
      %v1627 = vrot.slane %v1620, %v1626
      %1628 = vrot.lane.b32.xlu0 %v1627, 117
      %v1629 = vpop.permute.xlu0 %1628
      %1631 = vst.msk [vmem:[#allocation2 + $0xd8] sm:$0xc] %vm265, %v1629
      %v1632 = vld [vmem:[%s1201] sm:$0x3]
      %v1634 = vcombine.low %v1632, %v1632
      %v1636 = vunpack.c.l.s4 1983009808
      %v1637 = vunpack.c.0.s8 %v1636
      %v1638 = vlaneseq
      %v1639 = vshrl.u32 %v1638, 7
      %v1640 = vsub.s32 %v1637, %v1639
      %v1641 = vrot.slane %v1634, %v1640
      %1642 = vrot.lane.b32.xlu0 %v1641, 117
      %v1643 = vpop.permute.xlu0 %1642
      %1645 = vst.msk [vmem:[#allocation2 + $0xdc] sm:$0xc] %vm265, %v1643
      %v1646 = vld [vmem:[%s231] sm:$0x3]
      %v1649 = vunpack.c.l.s4 1983009808
      %v1650 = vunpack.c.0.s8 %v1649
      %v1651 = vlaneseq
      %v1652 = vshrl.u32 %v1651, 7
      %v1653 = vsub.s32 %v1650, %v1652
      %v1654 = vrot.slane %v1646, %v1653
      %1655 = vrot.lane.b32.xlu0 %v1654, 116
      %v1656 = vpop.permute.xlu0 %1655
      %1658 = vst.msk [vmem:[#allocation2 + $0xe0] sm:$0x3] %vm229, %v1656
      %v1659 = vld [vmem:[%s234] sm:$0x3]
      %v1662 = vunpack.c.l.s4 1983009808
      %v1663 = vunpack.c.0.s8 %v1662
      %v1664 = vlaneseq
      %v1665 = vshrl.u32 %v1664, 7
      %v1666 = vsub.s32 %v1663, %v1665
      %v1667 = vrot.slane %v1659, %v1666
      %1668 = vrot.lane.b32.xlu0 %v1667, 116
      %v1669 = vpop.permute.xlu0 %1668
      %1671 = vst.msk [vmem:[#allocation2 + $0xe4] sm:$0x3] %vm229, %v1669
      %v1672 = vld [vmem:[%s237] sm:$0x3]
      %v1675 = vunpack.c.l.s4 1983009808
      %v1676 = vunpack.c.0.s8 %v1675
      %v1677 = vlaneseq
      %v1678 = vshrl.u32 %v1677, 7
      %v1679 = vsub.s32 %v1676, %v1678
      %v1680 = vrot.slane %v1672, %v1679
      %1681 = vrot.lane.b32.xlu0 %v1680, 116
      %v1682 = vpop.permute.xlu0 %1681
      %1684 = vst.msk [vmem:[#allocation2 + $0xe8] sm:$0x3] %vm229, %v1682
      %v1685 = vld [vmem:[%s240] sm:$0x3]
      %v1688 = vunpack.c.l.s4 1983009808
      %v1689 = vunpack.c.0.s8 %v1688
      %v1690 = vlaneseq
      %v1691 = vshrl.u32 %v1690, 7
      %v1692 = vsub.s32 %v1689, %v1691
      %v1693 = vrot.slane %v1685, %v1692
      %1694 = vrot.lane.b32.xlu0 %v1693, 116
      %v1695 = vpop.permute.xlu0 %1694
      %1697 = vst.msk [vmem:[#allocation2 + $0xec] sm:$0x3] %vm229, %v1695
      %v1698 = vld [vmem:[%s243] sm:$0x3]
      %v1701 = vunpack.c.l.s4 1983009808
      %v1702 = vunpack.c.0.s8 %v1701
      %v1703 = vlaneseq
      %v1704 = vshrl.u32 %v1703, 7
      %v1705 = vsub.s32 %v1702, %v1704
      %v1706 = vrot.slane %v1698, %v1705
      %1707 = vrot.lane.b32.xlu0 %v1706, 116
      %v1708 = vpop.permute.xlu0 %1707
      %1710 = vst.msk [vmem:[#allocation2 + $0xf0] sm:$0x3] %vm229, %v1708
      %v1711 = vld [vmem:[%s246] sm:$0x3]
      %v1714 = vunpack.c.l.s4 1983009808
      %v1715 = vunpack.c.0.s8 %v1714
      %v1716 = vlaneseq
      %v1717 = vshrl.u32 %v1716, 7
      %v1718 = vsub.s32 %v1715, %v1717
      %v1719 = vrot.slane %v1711, %v1718
      %1720 = vrot.lane.b32.xlu0 %v1719, 116
      %v1721 = vpop.permute.xlu0 %1720
      %1723 = vst.msk [vmem:[#allocation2 + $0xf4] sm:$0x3] %vm229, %v1721
      %v1724 = vld [vmem:[%s249] sm:$0x3]
      %v1727 = vunpack.c.l.s4 1983009808
      %v1728 = vunpack.c.0.s8 %v1727
      %v1729 = vlaneseq
      %v1730 = vshrl.u32 %v1729, 7
      %v1731 = vsub.s32 %v1728, %v1730
      %v1732 = vrot.slane %v1724, %v1731
      %1733 = vrot.lane.b32.xlu0 %v1732, 116
      %v1734 = vpop.permute.xlu0 %1733
      %1736 = vst.msk [vmem:[#allocation2 + $0xf8] sm:$0x3] %vm229, %v1734
      %v1737 = vld [vmem:[%s1201] sm:$0x3]
      %v1740 = vunpack.c.l.s4 1983009808
      %v1741 = vunpack.c.0.s8 %v1740
      %v1742 = vlaneseq
      %v1743 = vshrl.u32 %v1742, 7
      %v1744 = vsub.s32 %v1741, %v1743
      %v1745 = vrot.slane %v1737, %v1744
      %1746 = vrot.lane.b32.xlu0 %v1745, 116
      %v1747 = vpop.permute.xlu0 %1746
      %1749 = vst.msk [vmem:[#allocation2 + $0xfc] sm:$0x3] %vm229, %v1747
      %v1750 = vld [vmem:[%s231] sm:$0x3]
      %v1752 = vcombine.low %v1750, %v1750
      %v1754 = vunpack.c.l.s4 1983009808
      %v1755 = vunpack.c.0.s8 %v1754
      %v1756 = vlaneseq
      %v1757 = vshrl.u32 %v1756, 7
      %v1758 = vsub.s32 %v1755, %v1757
      %v1759 = vrot.slane %v1752, %v1758
      %1760 = vrot.lane.b32.xlu0 %v1759, 108
      %v1761 = vpop.permute.xlu0 %1760
      %1763 = vst.msk [vmem:[#allocation2 + $0xe0] sm:$0xc] %vm265, %v1761
      %v1764 = vld [vmem:[%s234] sm:$0x3]
      %v1766 = vcombine.low %v1764, %v1764
      %v1768 = vunpack.c.l.s4 1983009808
      %v1769 = vunpack.c.0.s8 %v1768
      %v1770 = vlaneseq
      %v1771 = vshrl.u32 %v1770, 7
      %v1772 = vsub.s32 %v1769, %v1771
      %v1773 = vrot.slane %v1766, %v1772
      %1774 = vrot.lane.b32.xlu0 %v1773, 108
      %v1775 = vpop.permute.xlu0 %1774
      %1777 = vst.msk [vmem:[#allocation2 + $0xe4] sm:$0xc] %vm265, %v1775
      %v1778 = vld [vmem:[%s237] sm:$0x3]
      %v1780 = vcombine.low %v1778, %v1778
      %v1782 = vunpack.c.l.s4 1983009808
      %v1783 = vunpack.c.0.s8 %v1782
      %v1784 = vlaneseq
      %v1785 = vshrl.u32 %v1784, 7
      %v1786 = vsub.s32 %v1783, %v1785
      %v1787 = vrot.slane %v1780, %v1786
      %1788 = vrot.lane.b32.xlu0 %v1787, 108
      %v1789 = vpop.permute.xlu0 %1788
      %1791 = vst.msk [vmem:[#allocation2 + $0xe8] sm:$0xc] %vm265, %v1789
      %v1792 = vld [vmem:[%s240] sm:$0x3]
      %v1794 = vcombine.low %v1792, %v1792
      %v1796 = vunpack.c.l.s4 1983009808
      %v1797 = vunpack.c.0.s8 %v1796
      %v1798 = vlaneseq
      %v1799 = vshrl.u32 %v1798, 7
      %v1800 = vsub.s32 %v1797, %v1799
      %v1801 = vrot.slane %v1794, %v1800
      %1802 = vrot.lane.b32.xlu0 %v1801, 108
      %v1803 = vpop.permute.xlu0 %1802
      %1805 = vst.msk [vmem:[#allocation2 + $0xec] sm:$0xc] %vm265, %v1803
      %v1806 = vld [vmem:[%s243] sm:$0x3]
      %v1808 = vcombine.low %v1806, %v1806
      %v1810 = vunpack.c.l.s4 1983009808
      %v1811 = vunpack.c.0.s8 %v1810
      %v1812 = vlaneseq
      %v1813 = vshrl.u32 %v1812, 7
      %v1814 = vsub.s32 %v1811, %v1813
      %v1815 = vrot.slane %v1808, %v1814
      %1816 = vrot.lane.b32.xlu0 %v1815, 108
      %v1817 = vpop.permute.xlu0 %1816
      %1819 = vst.msk [vmem:[#allocation2 + $0xf0] sm:$0xc] %vm265, %v1817
      %v1820 = vld [vmem:[%s246] sm:$0x3]
      %v1822 = vcombine.low %v1820, %v1820
      %v1824 = vunpack.c.l.s4 1983009808
      %v1825 = vunpack.c.0.s8 %v1824
      %v1826 = vlaneseq
      %v1827 = vshrl.u32 %v1826, 7
      %v1828 = vsub.s32 %v1825, %v1827
      %v1829 = vrot.slane %v1822, %v1828
      %1830 = vrot.lane.b32.xlu0 %v1829, 108
      %v1831 = vpop.permute.xlu0 %1830
      %1833 = vst.msk [vmem:[#allocation2 + $0xf4] sm:$0xc] %vm265, %v1831
      %v1834 = vld [vmem:[%s249] sm:$0x3]
      %v1836 = vcombine.low %v1834, %v1834
      %v1838 = vunpack.c.l.s4 1983009808
      %v1839 = vunpack.c.0.s8 %v1838
      %v1840 = vlaneseq
      %v1841 = vshrl.u32 %v1840, 7
      %v1842 = vsub.s32 %v1839, %v1841
      %v1843 = vrot.slane %v1836, %v1842
      %1844 = vrot.lane.b32.xlu0 %v1843, 108
      %v1845 = vpop.permute.xlu0 %1844
      %1847 = vst.msk [vmem:[#allocation2 + $0xf8] sm:$0xc] %vm265, %v1845
      %v1848 = vld [vmem:[%s1201] sm:$0x3]
      %v1850 = vcombine.low %v1848, %v1848
      %v1852 = vunpack.c.l.s4 1983009808
      %v1853 = vunpack.c.0.s8 %v1852
      %v1854 = vlaneseq
      %v1855 = vshrl.u32 %v1854, 7
      %v1856 = vsub.s32 %v1853, %v1855
      %v1857 = vrot.slane %v1850, %v1856
      %1858 = vrot.lane.b32.xlu0 %v1857, 108
      %v1859 = vpop.permute.xlu0 %1858
      %1861 = vst.msk [vmem:[#allocation2 + $0xfc] sm:$0xc] %vm265, %v1859
      %v1862 = vld [vmem:[%s231] sm:$0x3]
      %v1865 = vunpack.c.l.s4 1983009808
      %v1866 = vunpack.c.0.s8 %v1865
      %v1867 = vlaneseq
      %v1868 = vshrl.u32 %v1867, 7
      %v1869 = vsub.s32 %v1866, %v1868
      %v1870 = vrot.slane %v1862, %v1869
      %1871 = vrot.lane.b32.xlu0 %v1870, 107
      %v1872 = vpop.permute.xlu0 %1871
      %1874 = vst.msk [vmem:[#allocation2 + $0x100] sm:$0x3] %vm229, %v1872
      %v1875 = vld [vmem:[%s234] sm:$0x3]
      %v1878 = vunpack.c.l.s4 1983009808
      %v1879 = vunpack.c.0.s8 %v1878
      %v1880 = vlaneseq
      %v1881 = vshrl.u32 %v1880, 7
      %v1882 = vsub.s32 %v1879, %v1881
      %v1883 = vrot.slane %v1875, %v1882
      %1884 = vrot.lane.b32.xlu0 %v1883, 107
      %v1885 = vpop.permute.xlu0 %1884
      %1887 = vst.msk [vmem:[#allocation2 + $0x104] sm:$0x3] %vm229, %v1885
      %v1888 = vld [vmem:[%s237] sm:$0x3]
      %v1891 = vunpack.c.l.s4 1983009808
      %v1892 = vunpack.c.0.s8 %v1891
      %v1893 = vlaneseq
      %v1894 = vshrl.u32 %v1893, 7
      %v1895 = vsub.s32 %v1892, %v1894
      %v1896 = vrot.slane %v1888, %v1895
      %1897 = vrot.lane.b32.xlu0 %v1896, 107
      %v1898 = vpop.permute.xlu0 %1897
      %1900 = vst.msk [vmem:[#allocation2 + $0x108] sm:$0x3] %vm229, %v1898
      %v1901 = vld [vmem:[%s240] sm:$0x3]
      %v1904 = vunpack.c.l.s4 1983009808
      %v1905 = vunpack.c.0.s8 %v1904
      %v1906 = vlaneseq
      %v1907 = vshrl.u32 %v1906, 7
      %v1908 = vsub.s32 %v1905, %v1907
      %v1909 = vrot.slane %v1901, %v1908
      %1910 = vrot.lane.b32.xlu0 %v1909, 107
      %v1911 = vpop.permute.xlu0 %1910
      %1913 = vst.msk [vmem:[#allocation2 + $0x10c] sm:$0x3] %vm229, %v1911
      %v1914 = vld [vmem:[%s243] sm:$0x3]
      %v1917 = vunpack.c.l.s4 1983009808
      %v1918 = vunpack.c.0.s8 %v1917
      %v1919 = vlaneseq
      %v1920 = vshrl.u32 %v1919, 7
      %v1921 = vsub.s32 %v1918, %v1920
      %v1922 = vrot.slane %v1914, %v1921
      %1923 = vrot.lane.b32.xlu0 %v1922, 107
      %v1924 = vpop.permute.xlu0 %1923
      %1926 = vst.msk [vmem:[#allocation2 + $0x110] sm:$0x3] %vm229, %v1924
      %v1927 = vld [vmem:[%s246] sm:$0x3]
      %v1930 = vunpack.c.l.s4 1983009808
      %v1931 = vunpack.c.0.s8 %v1930
      %v1932 = vlaneseq
      %v1933 = vshrl.u32 %v1932, 7
      %v1934 = vsub.s32 %v1931, %v1933
      %v1935 = vrot.slane %v1927, %v1934
      %1936 = vrot.lane.b32.xlu0 %v1935, 107
      %v1937 = vpop.permute.xlu0 %1936
      %1939 = vst.msk [vmem:[#allocation2 + $0x114] sm:$0x3] %vm229, %v1937
      %v1940 = vld [vmem:[%s249] sm:$0x3]
      %v1943 = vunpack.c.l.s4 1983009808
      %v1944 = vunpack.c.0.s8 %v1943
      %v1945 = vlaneseq
      %v1946 = vshrl.u32 %v1945, 7
      %v1947 = vsub.s32 %v1944, %v1946
      %v1948 = vrot.slane %v1940, %v1947
      %1949 = vrot.lane.b32.xlu0 %v1948, 107
      %v1950 = vpop.permute.xlu0 %1949
      %1952 = vst.msk [vmem:[#allocation2 + $0x118] sm:$0x3] %vm229, %v1950
      %v1953 = vld [vmem:[%s1201] sm:$0x3]
      %v1956 = vunpack.c.l.s4 1983009808
      %v1957 = vunpack.c.0.s8 %v1956
      %v1958 = vlaneseq
      %v1959 = vshrl.u32 %v1958, 7
      %v1960 = vsub.s32 %v1957, %v1959
      %v1961 = vrot.slane %v1953, %v1960
      %1962 = vrot.lane.b32.xlu0 %v1961, 107
      %v1963 = vpop.permute.xlu0 %1962
      %1965 = vst.msk [vmem:[#allocation2 + $0x11c] sm:$0x3] %vm229, %v1963
      %v1966 = vld [vmem:[%s231] sm:$0x3]
      %v1968 = vcombine.low %v1966, %v1966
      %v1970 = vunpack.c.l.s4 1983009808
      %v1971 = vunpack.c.0.s8 %v1970
      %v1972 = vlaneseq
      %v1973 = vshrl.u32 %v1972, 7
      %v1974 = vsub.s32 %v1971, %v1973
      %v1975 = vrot.slane %v1968, %v1974
      %1976 = vrot.lane.b32.xlu0 %v1975, 106
      %v1977 = vpop.permute.xlu0 %1976
      %1979 = vst.msk [vmem:[#allocation2 + $0x100] sm:$0xc] %vm265, %v1977
      %v1980 = vld [vmem:[%s234] sm:$0x3]
      %v1982 = vcombine.low %v1980, %v1980
      %v1984 = vunpack.c.l.s4 1983009808
      %v1985 = vunpack.c.0.s8 %v1984
      %v1986 = vlaneseq
      %v1987 = vshrl.u32 %v1986, 7
      %v1988 = vsub.s32 %v1985, %v1987
      %v1989 = vrot.slane %v1982, %v1988
      %1990 = vrot.lane.b32.xlu0 %v1989, 106
      %v1991 = vpop.permute.xlu0 %1990
      %1993 = vst.msk [vmem:[#allocation2 + $0x104] sm:$0xc] %vm265, %v1991
      %v1994 = vld [vmem:[%s237] sm:$0x3]
      %v1996 = vcombine.low %v1994, %v1994
      %v1998 = vunpack.c.l.s4 1983009808
      %v1999 = vunpack.c.0.s8 %v1998
      %v2000 = vlaneseq
      %v2001 = vshrl.u32 %v2000, 7
      %v2002 = vsub.s32 %v1999, %v2001
      %v2003 = vrot.slane %v1996, %v2002
      %2004 = vrot.lane.b32.xlu0 %v2003, 106
      %v2005 = vpop.permute.xlu0 %2004
      %2007 = vst.msk [vmem:[#allocation2 + $0x108] sm:$0xc] %vm265, %v2005
      %v2008 = vld [vmem:[%s240] sm:$0x3]
      %v2010 = vcombine.low %v2008, %v2008
      %v2012 = vunpack.c.l.s4 1983009808
      %v2013 = vunpack.c.0.s8 %v2012
      %v2014 = vlaneseq
      %v2015 = vshrl.u32 %v2014, 7
      %v2016 = vsub.s32 %v2013, %v2015
      %v2017 = vrot.slane %v2010, %v2016
      %2018 = vrot.lane.b32.xlu0 %v2017, 106
      %v2019 = vpop.permute.xlu0 %2018
      %2021 = vst.msk [vmem:[#allocation2 + $0x10c] sm:$0xc] %vm265, %v2019
      %v2022 = vld [vmem:[%s243] sm:$0x3]
      %v2024 = vcombine.low %v2022, %v2022
      %v2026 = vunpack.c.l.s4 1983009808
      %v2027 = vunpack.c.0.s8 %v2026
      %v2028 = vlaneseq
      %v2029 = vshrl.u32 %v2028, 7
      %v2030 = vsub.s32 %v2027, %v2029
      %v2031 = vrot.slane %v2024, %v2030
      %2032 = vrot.lane.b32.xlu0 %v2031, 106
      %v2033 = vpop.permute.xlu0 %2032
      %2035 = vst.msk [vmem:[#allocation2 + $0x110] sm:$0xc] %vm265, %v2033
      %v2036 = vld [vmem:[%s246] sm:$0x3]
      %v2038 = vcombine.low %v2036, %v2036
      %v2040 = vunpack.c.l.s4 1983009808
      %v2041 = vunpack.c.0.s8 %v2040
      %v2042 = vlaneseq
      %v2043 = vshrl.u32 %v2042, 7
      %v2044 = vsub.s32 %v2041, %v2043
      %v2045 = vrot.slane %v2038, %v2044
      %2046 = vrot.lane.b32.xlu0 %v2045, 106
      %v2047 = vpop.permute.xlu0 %2046
      %2049 = vst.msk [vmem:[#allocation2 + $0x114] sm:$0xc] %vm265, %v2047
      %v2050 = vld [vmem:[%s249] sm:$0x3]
      %v2052 = vcombine.low %v2050, %v2050
      %v2054 = vunpack.c.l.s4 1983009808
      %v2055 = vunpack.c.0.s8 %v2054
      %v2056 = vlaneseq
      %v2057 = vshrl.u32 %v2056, 7
      %v2058 = vsub.s32 %v2055, %v2057
      %v2059 = vrot.slane %v2052, %v2058
      %2060 = vrot.lane.b32.xlu0 %v2059, 106
      %v2061 = vpop.permute.xlu0 %2060
      %2063 = vst.msk [vmem:[#allocation2 + $0x118] sm:$0xc] %vm265, %v2061
      %v2064 = vld [vmem:[%s1201] sm:$0x3]
      %v2066 = vcombine.low %v2064, %v2064
      %v2068 = vunpack.c.l.s4 1983009808
      %v2069 = vunpack.c.0.s8 %v2068
      %v2070 = vlaneseq
      %v2071 = vshrl.u32 %v2070, 7
      %v2072 = vsub.s32 %v2069, %v2071
      %v2073 = vrot.slane %v2066, %v2072
      %2074 = vrot.lane.b32.xlu0 %v2073, 106
      %v2075 = vpop.permute.xlu0 %2074
      %2077 = vst.msk [vmem:[#allocation2 + $0x11c] sm:$0xc] %vm265, %v2075
      %v2078 = vld [vmem:[%s234] sm:$0x3]
      %2079 = vst.msk [vmem:[#allocation2 + $0x120] sm:$0x3] %vm229, %v2078
      %v2080 = vld [vmem:[%s237] sm:$0x3]
      %2081 = vst.msk [vmem:[#allocation2 + $0x124] sm:$0x3] %vm229, %v2080
      %v2082 = vld [vmem:[%s240] sm:$0x3]
      %2083 = vst.msk [vmem:[#allocation2 + $0x128] sm:$0x3] %vm229, %v2082
      %v2084 = vld [vmem:[%s243] sm:$0x3]
      %2085 = vst.msk [vmem:[#allocation2 + $0x12c] sm:$0x3] %vm229, %v2084
      %v2086 = vld [vmem:[%s246] sm:$0x3]
      %2087 = vst.msk [vmem:[#allocation2 + $0x130] sm:$0x3] %vm229, %v2086
      %v2088 = vld [vmem:[%s249] sm:$0x3]
      %2089 = vst.msk [vmem:[#allocation2 + $0x134] sm:$0x3] %vm229, %v2088
      %v2090 = vld [vmem:[%s1201] sm:$0x3]
      %2091 = vst.msk [vmem:[#allocation2 + $0x138] sm:$0x3] %vm229, %v2090
      %s2092 = scalar_lea.vmem %s165, 18
      %v2093 = vld [vmem:[%s2092] sm:$0x3]
      %2094 = vst.msk [vmem:[#allocation2 + $0x13c] sm:$0x3] %vm229, %v2093
      %v2095 = vld [vmem:[%s234] sm:$0x3]
      %v2097 = vcombine.low %v2095, %v2095
      %v2099 = vunpack.c.l.s4 1983009808
      %v2100 = vunpack.c.0.s8 %v2099
      %v2101 = vlaneseq
      %v2102 = vshrl.u32 %v2101, 7
      %v2103 = vsub.s32 %v2100, %v2102
      %v2104 = vrot.slane %v2097, %v2103
      %2105 = vrot.lane.b32.xlu0 %v2104, 127
      %v2106 = vpop.permute.xlu0 %2105
      %2108 = vst.msk [vmem:[#allocation2 + $0x120] sm:$0xc] %vm265, %v2106
      %v2109 = vld [vmem:[%s237] sm:$0x3]
      %v2111 = vcombine.low %v2109, %v2109
      %v2113 = vunpack.c.l.s4 1983009808
      %v2114 = vunpack.c.0.s8 %v2113
      %v2115 = vlaneseq
      %v2116 = vshrl.u32 %v2115, 7
      %v2117 = vsub.s32 %v2114, %v2116
      %v2118 = vrot.slane %v2111, %v2117
      %2119 = vrot.lane.b32.xlu0 %v2118, 127
      %v2120 = vpop.permute.xlu0 %2119
      %2122 = vst.msk [vmem:[#allocation2 + $0x124] sm:$0xc] %vm265, %v2120
      %v2123 = vld [vmem:[%s240] sm:$0x3]
      %v2125 = vcombine.low %v2123, %v2123
      %v2127 = vunpack.c.l.s4 1983009808
      %v2128 = vunpack.c.0.s8 %v2127
      %v2129 = vlaneseq
      %v2130 = vshrl.u32 %v2129, 7
      %v2131 = vsub.s32 %v2128, %v2130
      %v2132 = vrot.slane %v2125, %v2131
      %2133 = vrot.lane.b32.xlu0 %v2132, 127
      %v2134 = vpop.permute.xlu0 %2133
      %2136 = vst.msk [vmem:[#allocation2 + $0x128] sm:$0xc] %vm265, %v2134
      %v2137 = vld [vmem:[%s243] sm:$0x3]
      %v2139 = vcombine.low %v2137, %v2137
      %v2141 = vunpack.c.l.s4 1983009808
      %v2142 = vunpack.c.0.s8 %v2141
      %v2143 = vlaneseq
      %v2144 = vshrl.u32 %v2143, 7
      %v2145 = vsub.s32 %v2142, %v2144
      %v2146 = vrot.slane %v2139, %v2145
      %2147 = vrot.lane.b32.xlu0 %v2146, 127
      %v2148 = vpop.permute.xlu0 %2147
      %2150 = vst.msk [vmem:[#allocation2 + $0x12c] sm:$0xc] %vm265, %v2148
      %v2151 = vld [vmem:[%s246] sm:$0x3]
      %v2153 = vcombine.low %v2151, %v2151
      %v2155 = vunpack.c.l.s4 1983009808
      %v2156 = vunpack.c.0.s8 %v2155
      %v2157 = vlaneseq
      %v2158 = vshrl.u32 %v2157, 7
      %v2159 = vsub.s32 %v2156, %v2158
      %v2160 = vrot.slane %v2153, %v2159
      %2161 = vrot.lane.b32.xlu0 %v2160, 127
      %v2162 = vpop.permute.xlu0 %2161
      %2164 = vst.msk [vmem:[#allocation2 + $0x130] sm:$0xc] %vm265, %v2162
      %v2165 = vld [vmem:[%s249] sm:$0x3]
      %v2167 = vcombine.low %v2165, %v2165
      %v2169 = vunpack.c.l.s4 1983009808
      %v2170 = vunpack.c.0.s8 %v2169
      %v2171 = vlaneseq
      %v2172 = vshrl.u32 %v2171, 7
      %v2173 = vsub.s32 %v2170, %v2172
      %v2174 = vrot.slane %v2167, %v2173
      %2175 = vrot.lane.b32.xlu0 %v2174, 127
      %v2176 = vpop.permute.xlu0 %2175
      %2178 = vst.msk [vmem:[#allocation2 + $0x134] sm:$0xc] %vm265, %v2176
      %v2179 = vld [vmem:[%s1201] sm:$0x3]
      %v2181 = vcombine.low %v2179, %v2179
      %v2183 = vunpack.c.l.s4 1983009808
      %v2184 = vunpack.c.0.s8 %v2183
      %v2185 = vlaneseq
      %v2186 = vshrl.u32 %v2185, 7
      %v2187 = vsub.s32 %v2184, %v2186
      %v2188 = vrot.slane %v2181, %v2187
      %2189 = vrot.lane.b32.xlu0 %v2188, 127
      %v2190 = vpop.permute.xlu0 %2189
      %2192 = vst.msk [vmem:[#allocation2 + $0x138] sm:$0xc] %vm265, %v2190
      %v2193 = vld [vmem:[%s2092] sm:$0x3]
      %v2195 = vcombine.low %v2193, %v2193
      %v2197 = vunpack.c.l.s4 1983009808
      %v2198 = vunpack.c.0.s8 %v2197
      %v2199 = vlaneseq
      %v2200 = vshrl.u32 %v2199, 7
      %v2201 = vsub.s32 %v2198, %v2200
      %v2202 = vrot.slane %v2195, %v2201
      %2203 = vrot.lane.b32.xlu0 %v2202, 127
      %v2204 = vpop.permute.xlu0 %2203
      %2206 = vst.msk [vmem:[#allocation2 + $0x13c] sm:$0xc] %vm265, %v2204
      %v2207 = vld [vmem:[%s234] sm:$0x3]
      %v2210 = vunpack.c.l.s4 1983009808
      %v2211 = vunpack.c.0.s8 %v2210
      %v2212 = vlaneseq
      %v2213 = vshrl.u32 %v2212, 7
      %v2214 = vsub.s32 %v2211, %v2213
      %v2215 = vrot.slane %v2207, %v2214
      %2216 = vrot.lane.b32.xlu0 %v2215, 126
      %v2217 = vpop.permute.xlu0 %2216
      %2219 = vst.msk [vmem:[#allocation2 + $0x140] sm:$0x3] %vm229, %v2217
      %v2220 = vld [vmem:[%s237] sm:$0x3]
      %v2223 = vunpack.c.l.s4 1983009808
      %v2224 = vunpack.c.0.s8 %v2223
      %v2225 = vlaneseq
      %v2226 = vshrl.u32 %v2225, 7
      %v2227 = vsub.s32 %v2224, %v2226
      %v2228 = vrot.slane %v2220, %v2227
      %2229 = vrot.lane.b32.xlu0 %v2228, 126
      %v2230 = vpop.permute.xlu0 %2229
      %2232 = vst.msk [vmem:[#allocation2 + $0x144] sm:$0x3] %vm229, %v2230
      %v2233 = vld [vmem:[%s240] sm:$0x3]
      %v2236 = vunpack.c.l.s4 1983009808
      %v2237 = vunpack.c.0.s8 %v2236
      %v2238 = vlaneseq
      %v2239 = vshrl.u32 %v2238, 7
      %v2240 = vsub.s32 %v2237, %v2239
      %v2241 = vrot.slane %v2233, %v2240
      %2242 = vrot.lane.b32.xlu0 %v2241, 126
      %v2243 = vpop.permute.xlu0 %2242
      %2245 = vst.msk [vmem:[#allocation2 + $0x148] sm:$0x3] %vm229, %v2243
      %v2246 = vld [vmem:[%s243] sm:$0x3]
      %v2249 = vunpack.c.l.s4 1983009808
      %v2250 = vunpack.c.0.s8 %v2249
      %v2251 = vlaneseq
      %v2252 = vshrl.u32 %v2251, 7
      %v2253 = vsub.s32 %v2250, %v2252
      %v2254 = vrot.slane %v2246, %v2253
      %2255 = vrot.lane.b32.xlu0 %v2254, 126
      %v2256 = vpop.permute.xlu0 %2255
      %2258 = vst.msk [vmem:[#allocation2 + $0x14c] sm:$0x3] %vm229, %v2256
      %v2259 = vld [vmem:[%s246] sm:$0x3]
      %v2262 = vunpack.c.l.s4 1983009808
      %v2263 = vunpack.c.0.s8 %v2262
      %v2264 = vlaneseq
      %v2265 = vshrl.u32 %v2264, 7
      %v2266 = vsub.s32 %v2263, %v2265
      %v2267 = vrot.slane %v2259, %v2266
      %2268 = vrot.lane.b32.xlu0 %v2267, 126
      %v2269 = vpop.permute.xlu0 %2268
      %2271 = vst.msk [vmem:[#allocation2 + $0x150] sm:$0x3] %vm229, %v2269
      %v2272 = vld [vmem:[%s249] sm:$0x3]
      %v2275 = vunpack.c.l.s4 1983009808
      %v2276 = vunpack.c.0.s8 %v2275
      %v2277 = vlaneseq
      %v2278 = vshrl.u32 %v2277, 7
      %v2279 = vsub.s32 %v2276, %v2278
      %v2280 = vrot.slane %v2272, %v2279
      %2281 = vrot.lane.b32.xlu0 %v2280, 126
      %v2282 = vpop.permute.xlu0 %2281
      %2284 = vst.msk [vmem:[#allocation2 + $0x154] sm:$0x3] %vm229, %v2282
      %v2285 = vld [vmem:[%s1201] sm:$0x3]
      %v2288 = vunpack.c.l.s4 1983009808
      %v2289 = vunpack.c.0.s8 %v2288
      %v2290 = vlaneseq
      %v2291 = vshrl.u32 %v2290, 7
      %v2292 = vsub.s32 %v2289, %v2291
      %v2293 = vrot.slane %v2285, %v2292
      %2294 = vrot.lane.b32.xlu0 %v2293, 126
      %v2295 = vpop.permute.xlu0 %2294
      %2297 = vst.msk [vmem:[#allocation2 + $0x158] sm:$0x3] %vm229, %v2295
      %v2298 = vld [vmem:[%s2092] sm:$0x3]
      %v2301 = vunpack.c.l.s4 1983009808
      %v2302 = vunpack.c.0.s8 %v2301
      %v2303 = vlaneseq
      %v2304 = vshrl.u32 %v2303, 7
      %v2305 = vsub.s32 %v2302, %v2304
      %v2306 = vrot.slane %v2298, %v2305
      %2307 = vrot.lane.b32.xlu0 %v2306, 126
      %v2308 = vpop.permute.xlu0 %2307
      %2310 = vst.msk [vmem:[#allocation2 + $0x15c] sm:$0x3] %vm229, %v2308
      %v2311 = vld [vmem:[%s234] sm:$0x3]
      %v2313 = vcombine.low %v2311, %v2311
      %v2315 = vunpack.c.l.s4 1983009808
      %v2316 = vunpack.c.0.s8 %v2315
      %v2317 = vlaneseq
      %v2318 = vshrl.u32 %v2317, 7
      %v2319 = vsub.s32 %v2316, %v2318
      %v2320 = vrot.slane %v2313, %v2319
      %2321 = vrot.lane.b32.xlu0 %v2320, 118
      %v2322 = vpop.permute.xlu0 %2321
      %2324 = vst.msk [vmem:[#allocation2 + $0x140] sm:$0xc] %vm265, %v2322
      %v2325 = vld [vmem:[%s237] sm:$0x3]
      %v2327 = vcombine.low %v2325, %v2325
      %v2329 = vunpack.c.l.s4 1983009808
      %v2330 = vunpack.c.0.s8 %v2329
      %v2331 = vlaneseq
      %v2332 = vshrl.u32 %v2331, 7
      %v2333 = vsub.s32 %v2330, %v2332
      %v2334 = vrot.slane %v2327, %v2333
      %2335 = vrot.lane.b32.xlu0 %v2334, 118
      %v2336 = vpop.permute.xlu0 %2335
      %2338 = vst.msk [vmem:[#allocation2 + $0x144] sm:$0xc] %vm265, %v2336
      %v2339 = vld [vmem:[%s240] sm:$0x3]
      %v2341 = vcombine.low %v2339, %v2339
      %v2343 = vunpack.c.l.s4 1983009808
      %v2344 = vunpack.c.0.s8 %v2343
      %v2345 = vlaneseq
      %v2346 = vshrl.u32 %v2345, 7
      %v2347 = vsub.s32 %v2344, %v2346
      %v2348 = vrot.slane %v2341, %v2347
      %2349 = vrot.lane.b32.xlu0 %v2348, 118
      %v2350 = vpop.permute.xlu0 %2349
      %2352 = vst.msk [vmem:[#allocation2 + $0x148] sm:$0xc] %vm265, %v2350
      %v2353 = vld [vmem:[%s243] sm:$0x3]
      %v2355 = vcombine.low %v2353, %v2353
      %v2357 = vunpack.c.l.s4 1983009808
      %v2358 = vunpack.c.0.s8 %v2357
      %v2359 = vlaneseq
      %v2360 = vshrl.u32 %v2359, 7
      %v2361 = vsub.s32 %v2358, %v2360
      %v2362 = vrot.slane %v2355, %v2361
      %2363 = vrot.lane.b32.xlu0 %v2362, 118
      %v2364 = vpop.permute.xlu0 %2363
      %2366 = vst.msk [vmem:[#allocation2 + $0x14c] sm:$0xc] %vm265, %v2364
      %v2367 = vld [vmem:[%s246] sm:$0x3]
      %v2369 = vcombine.low %v2367, %v2367
      %v2371 = vunpack.c.l.s4 1983009808
      %v2372 = vunpack.c.0.s8 %v2371
      %v2373 = vlaneseq
      %v2374 = vshrl.u32 %v2373, 7
      %v2375 = vsub.s32 %v2372, %v2374
      %v2376 = vrot.slane %v2369, %v2375
      %2377 = vrot.lane.b32.xlu0 %v2376, 118
      %v2378 = vpop.permute.xlu0 %2377
      %2380 = vst.msk [vmem:[#allocation2 + $0x150] sm:$0xc] %vm265, %v2378
      %v2381 = vld [vmem:[%s249] sm:$0x3]
      %v2383 = vcombine.low %v2381, %v2381
      %v2385 = vunpack.c.l.s4 1983009808
      %v2386 = vunpack.c.0.s8 %v2385
      %v2387 = vlaneseq
      %v2388 = vshrl.u32 %v2387, 7
      %v2389 = vsub.s32 %v2386, %v2388
      %v2390 = vrot.slane %v2383, %v2389
      %2391 = vrot.lane.b32.xlu0 %v2390, 118
      %v2392 = vpop.permute.xlu0 %2391
      %2394 = vst.msk [vmem:[#allocation2 + $0x154] sm:$0xc] %vm265, %v2392
      %v2395 = vld [vmem:[%s1201] sm:$0x3]
      %v2397 = vcombine.low %v2395, %v2395
      %v2399 = vunpack.c.l.s4 1983009808
      %v2400 = vunpack.c.0.s8 %v2399
      %v2401 = vlaneseq
      %v2402 = vshrl.u32 %v2401, 7
      %v2403 = vsub.s32 %v2400, %v2402
      %v2404 = vrot.slane %v2397, %v2403
      %2405 = vrot.lane.b32.xlu0 %v2404, 118
      %v2406 = vpop.permute.xlu0 %2405
      %2408 = vst.msk [vmem:[#allocation2 + $0x158] sm:$0xc] %vm265, %v2406
      %v2409 = vld [vmem:[%s2092] sm:$0x3]
      %v2411 = vcombine.low %v2409, %v2409
      %v2413 = vunpack.c.l.s4 1983009808
      %v2414 = vunpack.c.0.s8 %v2413
      %v2415 = vlaneseq
      %v2416 = vshrl.u32 %v2415, 7
      %v2417 = vsub.s32 %v2414, %v2416
      %v2418 = vrot.slane %v2411, %v2417
      %2419 = vrot.lane.b32.xlu0 %v2418, 118
      %v2420 = vpop.permute.xlu0 %2419
      %2422 = vst.msk [vmem:[#allocation2 + $0x15c] sm:$0xc] %vm265, %v2420
      %v2423 = vld [vmem:[%s234] sm:$0x3]
      %v2426 = vunpack.c.l.s4 1983009808
      %v2427 = vunpack.c.0.s8 %v2426
      %v2428 = vlaneseq
      %v2429 = vshrl.u32 %v2428, 7
      %v2430 = vsub.s32 %v2427, %v2429
      %v2431 = vrot.slane %v2423, %v2430
      %2432 = vrot.lane.b32.xlu0 %v2431, 117
      %v2433 = vpop.permute.xlu0 %2432
      %2435 = vst.msk [vmem:[#allocation2 + $0x160] sm:$0x3] %vm229, %v2433
      %v2436 = vld [vmem:[%s237] sm:$0x3]
      %v2439 = vunpack.c.l.s4 1983009808
      %v2440 = vunpack.c.0.s8 %v2439
      %v2441 = vlaneseq
      %v2442 = vshrl.u32 %v2441, 7
      %v2443 = vsub.s32 %v2440, %v2442
      %v2444 = vrot.slane %v2436, %v2443
      %2445 = vrot.lane.b32.xlu0 %v2444, 117
      %v2446 = vpop.permute.xlu0 %2445
      %2448 = vst.msk [vmem:[#allocation2 + $0x164] sm:$0x3] %vm229, %v2446
      %v2449 = vld [vmem:[%s240] sm:$0x3]
      %v2452 = vunpack.c.l.s4 1983009808
      %v2453 = vunpack.c.0.s8 %v2452
      %v2454 = vlaneseq
      %v2455 = vshrl.u32 %v2454, 7
      %v2456 = vsub.s32 %v2453, %v2455
      %v2457 = vrot.slane %v2449, %v2456
      %2458 = vrot.lane.b32.xlu0 %v2457, 117
      %v2459 = vpop.permute.xlu0 %2458
      %2461 = vst.msk [vmem:[#allocation2 + $0x168] sm:$0x3] %vm229, %v2459
      %v2462 = vld [vmem:[%s243] sm:$0x3]
      %v2465 = vunpack.c.l.s4 1983009808
      %v2466 = vunpack.c.0.s8 %v2465
      %v2467 = vlaneseq
      %v2468 = vshrl.u32 %v2467, 7
      %v2469 = vsub.s32 %v2466, %v2468
      %v2470 = vrot.slane %v2462, %v2469
      %2471 = vrot.lane.b32.xlu0 %v2470, 117
      %v2472 = vpop.permute.xlu0 %2471
      %2474 = vst.msk [vmem:[#allocation2 + $0x16c] sm:$0x3] %vm229, %v2472
      %v2475 = vld [vmem:[%s246] sm:$0x3]
      %v2478 = vunpack.c.l.s4 1983009808
      %v2479 = vunpack.c.0.s8 %v2478
      %v2480 = vlaneseq
      %v2481 = vshrl.u32 %v2480, 7
      %v2482 = vsub.s32 %v2479, %v2481
      %v2483 = vrot.slane %v2475, %v2482
      %2484 = vrot.lane.b32.xlu0 %v2483, 117
      %v2485 = vpop.permute.xlu0 %2484
      %2487 = vst.msk [vmem:[#allocation2 + $0x170] sm:$0x3] %vm229, %v2485
      %v2488 = vld [vmem:[%s249] sm:$0x3]
      %v2491 = vunpack.c.l.s4 1983009808
      %v2492 = vunpack.c.0.s8 %v2491
      %v2493 = vlaneseq
      %v2494 = vshrl.u32 %v2493, 7
      %v2495 = vsub.s32 %v2492, %v2494
      %v2496 = vrot.slane %v2488, %v2495
      %2497 = vrot.lane.b32.xlu0 %v2496, 117
      %v2498 = vpop.permute.xlu0 %2497
      %2500 = vst.msk [vmem:[#allocation2 + $0x174] sm:$0x3] %vm229, %v2498
      %v2501 = vld [vmem:[%s1201] sm:$0x3]
      %v2504 = vunpack.c.l.s4 1983009808
      %v2505 = vunpack.c.0.s8 %v2504
      %v2506 = vlaneseq
      %v2507 = vshrl.u32 %v2506, 7
      %v2508 = vsub.s32 %v2505, %v2507
      %v2509 = vrot.slane %v2501, %v2508
      %2510 = vrot.lane.b32.xlu0 %v2509, 117
      %v2511 = vpop.permute.xlu0 %2510
      %2513 = vst.msk [vmem:[#allocation2 + $0x178] sm:$0x3] %vm229, %v2511
      %v2514 = vld [vmem:[%s2092] sm:$0x3]
      %v2517 = vunpack.c.l.s4 1983009808
      %v2518 = vunpack.c.0.s8 %v2517
      %v2519 = vlaneseq
      %v2520 = vshrl.u32 %v2519, 7
      %v2521 = vsub.s32 %v2518, %v2520
      %v2522 = vrot.slane %v2514, %v2521
      %2523 = vrot.lane.b32.xlu0 %v2522, 117
      %v2524 = vpop.permute.xlu0 %2523
      %2526 = vst.msk [vmem:[#allocation2 + $0x17c] sm:$0x3] %vm229, %v2524
      %v2527 = vld [vmem:[%s234] sm:$0x3]
      %v2529 = vcombine.low %v2527, %v2527
      %v2531 = vunpack.c.l.s4 1983009808
      %v2532 = vunpack.c.0.s8 %v2531
      %v2533 = vlaneseq
      %v2534 = vshrl.u32 %v2533, 7
      %v2535 = vsub.s32 %v2532, %v2534
      %v2536 = vrot.slane %v2529, %v2535
      %2537 = vrot.lane.b32.xlu0 %v2536, 116
      %v2538 = vpop.permute.xlu0 %2537
      %2540 = vst.msk [vmem:[#allocation2 + $0x160] sm:$0xc] %vm265, %v2538
      %v2541 = vld [vmem:[%s237] sm:$0x3]
      %v2543 = vcombine.low %v2541, %v2541
      %v2545 = vunpack.c.l.s4 1983009808
      %v2546 = vunpack.c.0.s8 %v2545
      %v2547 = vlaneseq
      %v2548 = vshrl.u32 %v2547, 7
      %v2549 = vsub.s32 %v2546, %v2548
      %v2550 = vrot.slane %v2543, %v2549
      %2551 = vrot.lane.b32.xlu0 %v2550, 116
      %v2552 = vpop.permute.xlu0 %2551
      %2554 = vst.msk [vmem:[#allocation2 + $0x164] sm:$0xc] %vm265, %v2552
      %v2555 = vld [vmem:[%s240] sm:$0x3]
      %v2557 = vcombine.low %v2555, %v2555
      %v2559 = vunpack.c.l.s4 1983009808
      %v2560 = vunpack.c.0.s8 %v2559
      %v2561 = vlaneseq
      %v2562 = vshrl.u32 %v2561, 7
      %v2563 = vsub.s32 %v2560, %v2562
      %v2564 = vrot.slane %v2557, %v2563
      %2565 = vrot.lane.b32.xlu0 %v2564, 116
      %v2566 = vpop.permute.xlu0 %2565
      %2568 = vst.msk [vmem:[#allocation2 + $0x168] sm:$0xc] %vm265, %v2566
      %v2569 = vld [vmem:[%s243] sm:$0x3]
      %v2571 = vcombine.low %v2569, %v2569
      %v2573 = vunpack.c.l.s4 1983009808
      %v2574 = vunpack.c.0.s8 %v2573
      %v2575 = vlaneseq
      %v2576 = vshrl.u32 %v2575, 7
      %v2577 = vsub.s32 %v2574, %v2576
      %v2578 = vrot.slane %v2571, %v2577
      %2579 = vrot.lane.b32.xlu0 %v2578, 116
      %v2580 = vpop.permute.xlu0 %2579
      %2582 = vst.msk [vmem:[#allocation2 + $0x16c] sm:$0xc] %vm265, %v2580
      %v2583 = vld [vmem:[%s246] sm:$0x3]
      %v2585 = vcombine.low %v2583, %v2583
      %v2587 = vunpack.c.l.s4 1983009808
      %v2588 = vunpack.c.0.s8 %v2587
      %v2589 = vlaneseq
      %v2590 = vshrl.u32 %v2589, 7
      %v2591 = vsub.s32 %v2588, %v2590
      %v2592 = vrot.slane %v2585, %v2591
      %2593 = vrot.lane.b32.xlu0 %v2592, 116
      %v2594 = vpop.permute.xlu0 %2593
      %2596 = vst.msk [vmem:[#allocation2 + $0x170] sm:$0xc] %vm265, %v2594
      %v2597 = vld [vmem:[%s249] sm:$0x3]
      %v2599 = vcombine.low %v2597, %v2597
      %v2601 = vunpack.c.l.s4 1983009808
      %v2602 = vunpack.c.0.s8 %v2601
      %v2603 = vlaneseq
      %v2604 = vshrl.u32 %v2603, 7
      %v2605 = vsub.s32 %v2602, %v2604
      %v2606 = vrot.slane %v2599, %v2605
      %2607 = vrot.lane.b32.xlu0 %v2606, 116
      %v2608 = vpop.permute.xlu0 %2607
      %2610 = vst.msk [vmem:[#allocation2 + $0x174] sm:$0xc] %vm265, %v2608
      %v2611 = vld [vmem:[%s1201] sm:$0x3]
      %v2613 = vcombine.low %v2611, %v2611
      %v2615 = vunpack.c.l.s4 1983009808
      %v2616 = vunpack.c.0.s8 %v2615
      %v2617 = vlaneseq
      %v2618 = vshrl.u32 %v2617, 7
      %v2619 = vsub.s32 %v2616, %v2618
      %v2620 = vrot.slane %v2613, %v2619
      %2621 = vrot.lane.b32.xlu0 %v2620, 116
      %v2622 = vpop.permute.xlu0 %2621
      %2624 = vst.msk [vmem:[#allocation2 + $0x178] sm:$0xc] %vm265, %v2622
      %v2625 = vld [vmem:[%s2092] sm:$0x3]
      %v2627 = vcombine.low %v2625, %v2625
      %v2629 = vunpack.c.l.s4 1983009808
      %v2630 = vunpack.c.0.s8 %v2629
      %v2631 = vlaneseq
      %v2632 = vshrl.u32 %v2631, 7
      %v2633 = vsub.s32 %v2630, %v2632
      %v2634 = vrot.slane %v2627, %v2633
      %2635 = vrot.lane.b32.xlu0 %v2634, 116
      %v2636 = vpop.permute.xlu0 %2635
      %2638 = vst.msk [vmem:[#allocation2 + $0x17c] sm:$0xc] %vm265, %v2636
      %v2639 = vld [vmem:[%s234] sm:$0x3]
      %v2642 = vunpack.c.l.s4 1983009808
      %v2643 = vunpack.c.0.s8 %v2642
      %v2644 = vlaneseq
      %v2645 = vshrl.u32 %v2644, 7
      %v2646 = vsub.s32 %v2643, %v2645
      %v2647 = vrot.slane %v2639, %v2646
      %2648 = vrot.lane.b32.xlu0 %v2647, 108
      %v2649 = vpop.permute.xlu0 %2648
      %2651 = vst.msk [vmem:[#allocation2 + $0x180] sm:$0x3] %vm229, %v2649
      %v2652 = vld [vmem:[%s237] sm:$0x3]
      %v2655 = vunpack.c.l.s4 1983009808
      %v2656 = vunpack.c.0.s8 %v2655
      %v2657 = vlaneseq
      %v2658 = vshrl.u32 %v2657, 7
      %v2659 = vsub.s32 %v2656, %v2658
      %v2660 = vrot.slane %v2652, %v2659
      %2661 = vrot.lane.b32.xlu0 %v2660, 108
      %v2662 = vpop.permute.xlu0 %2661
      %2664 = vst.msk [vmem:[#allocation2 + $0x184] sm:$0x3] %vm229, %v2662
      %v2665 = vld [vmem:[%s240] sm:$0x3]
      %v2668 = vunpack.c.l.s4 1983009808
      %v2669 = vunpack.c.0.s8 %v2668
      %v2670 = vlaneseq
      %v2671 = vshrl.u32 %v2670, 7
      %v2672 = vsub.s32 %v2669, %v2671
      %v2673 = vrot.slane %v2665, %v2672
      %2674 = vrot.lane.b32.xlu0 %v2673, 108
      %v2675 = vpop.permute.xlu0 %2674
      %2677 = vst.msk [vmem:[#allocation2 + $0x188] sm:$0x3] %vm229, %v2675
      %v2678 = vld [vmem:[%s243] sm:$0x3]
      %v2681 = vunpack.c.l.s4 1983009808
      %v2682 = vunpack.c.0.s8 %v2681
      %v2683 = vlaneseq
      %v2684 = vshrl.u32 %v2683, 7
      %v2685 = vsub.s32 %v2682, %v2684
      %v2686 = vrot.slane %v2678, %v2685
      %2687 = vrot.lane.b32.xlu0 %v2686, 108
      %v2688 = vpop.permute.xlu0 %2687
      %2690 = vst.msk [vmem:[#allocation2 + $0x18c] sm:$0x3] %vm229, %v2688
      %v2691 = vld [vmem:[%s246] sm:$0x3]
      %v2694 = vunpack.c.l.s4 1983009808
      %v2695 = vunpack.c.0.s8 %v2694
      %v2696 = vlaneseq
      %v2697 = vshrl.u32 %v2696, 7
      %v2698 = vsub.s32 %v2695, %v2697
      %v2699 = vrot.slane %v2691, %v2698
      %2700 = vrot.lane.b32.xlu0 %v2699, 108
      %v2701 = vpop.permute.xlu0 %2700
      %2703 = vst.msk [vmem:[#allocation2 + $0x190] sm:$0x3] %vm229, %v2701
      %v2704 = vld [vmem:[%s249] sm:$0x3]
      %v2707 = vunpack.c.l.s4 1983009808
      %v2708 = vunpack.c.0.s8 %v2707
      %v2709 = vlaneseq
      %v2710 = vshrl.u32 %v2709, 7
      %v2711 = vsub.s32 %v2708, %v2710
      %v2712 = vrot.slane %v2704, %v2711
      %2713 = vrot.lane.b32.xlu0 %v2712, 108
      %v2714 = vpop.permute.xlu0 %2713
      %2716 = vst.msk [vmem:[#allocation2 + $0x194] sm:$0x3] %vm229, %v2714
      %v2717 = vld [vmem:[%s1201] sm:$0x3]
      %v2720 = vunpack.c.l.s4 1983009808
      %v2721 = vunpack.c.0.s8 %v2720
      %v2722 = vlaneseq
      %v2723 = vshrl.u32 %v2722, 7
      %v2724 = vsub.s32 %v2721, %v2723
      %v2725 = vrot.slane %v2717, %v2724
      %2726 = vrot.lane.b32.xlu0 %v2725, 108
      %v2727 = vpop.permute.xlu0 %2726
      %2729 = vst.msk [vmem:[#allocation2 + $0x198] sm:$0x3] %vm229, %v2727
      %v2730 = vld [vmem:[%s2092] sm:$0x3]
      %v2733 = vunpack.c.l.s4 1983009808
      %v2734 = vunpack.c.0.s8 %v2733
      %v2735 = vlaneseq
      %v2736 = vshrl.u32 %v2735, 7
      %v2737 = vsub.s32 %v2734, %v2736
      %v2738 = vrot.slane %v2730, %v2737
      %2739 = vrot.lane.b32.xlu0 %v2738, 108
      %v2740 = vpop.permute.xlu0 %2739
      %2742 = vst.msk [vmem:[#allocation2 + $0x19c] sm:$0x3] %vm229, %v2740
      %v2743 = vld [vmem:[%s234] sm:$0x3]
      %v2745 = vcombine.low %v2743, %v2743
      %v2747 = vunpack.c.l.s4 1983009808
      %v2748 = vunpack.c.0.s8 %v2747
      %v2749 = vlaneseq
      %v2750 = vshrl.u32 %v2749, 7
      %v2751 = vsub.s32 %v2748, %v2750
      %v2752 = vrot.slane %v2745, %v2751
      %2753 = vrot.lane.b32.xlu0 %v2752, 107
      %v2754 = vpop.permute.xlu0 %2753
      %2756 = vst.msk [vmem:[#allocation2 + $0x180] sm:$0xc] %vm265, %v2754
      %v2757 = vld [vmem:[%s237] sm:$0x3]
      %v2759 = vcombine.low %v2757, %v2757
      %v2761 = vunpack.c.l.s4 1983009808
      %v2762 = vunpack.c.0.s8 %v2761
      %v2763 = vlaneseq
      %v2764 = vshrl.u32 %v2763, 7
      %v2765 = vsub.s32 %v2762, %v2764
      %v2766 = vrot.slane %v2759, %v2765
      %2767 = vrot.lane.b32.xlu0 %v2766, 107
      %v2768 = vpop.permute.xlu0 %2767
      %2770 = vst.msk [vmem:[#allocation2 + $0x184] sm:$0xc] %vm265, %v2768
      %v2771 = vld [vmem:[%s240] sm:$0x3]
      %v2773 = vcombine.low %v2771, %v2771
      %v2775 = vunpack.c.l.s4 1983009808
      %v2776 = vunpack.c.0.s8 %v2775
      %v2777 = vlaneseq
      %v2778 = vshrl.u32 %v2777, 7
      %v2779 = vsub.s32 %v2776, %v2778
      %v2780 = vrot.slane %v2773, %v2779
      %2781 = vrot.lane.b32.xlu0 %v2780, 107
      %v2782 = vpop.permute.xlu0 %2781
      %2784 = vst.msk [vmem:[#allocation2 + $0x188] sm:$0xc] %vm265, %v2782
      %v2785 = vld [vmem:[%s243] sm:$0x3]
      %v2787 = vcombine.low %v2785, %v2785
      %v2789 = vunpack.c.l.s4 1983009808
      %v2790 = vunpack.c.0.s8 %v2789
      %v2791 = vlaneseq
      %v2792 = vshrl.u32 %v2791, 7
      %v2793 = vsub.s32 %v2790, %v2792
      %v2794 = vrot.slane %v2787, %v2793
      %2795 = vrot.lane.b32.xlu0 %v2794, 107
      %v2796 = vpop.permute.xlu0 %2795
      %2798 = vst.msk [vmem:[#allocation2 + $0x18c] sm:$0xc] %vm265, %v2796
      %v2799 = vld [vmem:[%s246] sm:$0x3]
      %v2801 = vcombine.low %v2799, %v2799
      %v2803 = vunpack.c.l.s4 1983009808
      %v2804 = vunpack.c.0.s8 %v2803
      %v2805 = vlaneseq
      %v2806 = vshrl.u32 %v2805, 7
      %v2807 = vsub.s32 %v2804, %v2806
      %v2808 = vrot.slane %v2801, %v2807
      %2809 = vrot.lane.b32.xlu0 %v2808, 107
      %v2810 = vpop.permute.xlu0 %2809
      %2812 = vst.msk [vmem:[#allocation2 + $0x190] sm:$0xc] %vm265, %v2810
      %v2813 = vld [vmem:[%s249] sm:$0x3]
      %v2815 = vcombine.low %v2813, %v2813
      %v2817 = vunpack.c.l.s4 1983009808
      %v2818 = vunpack.c.0.s8 %v2817
      %v2819 = vlaneseq
      %v2820 = vshrl.u32 %v2819, 7
      %v2821 = vsub.s32 %v2818, %v2820
      %v2822 = vrot.slane %v2815, %v2821
      %2823 = vrot.lane.b32.xlu0 %v2822, 107
      %v2824 = vpop.permute.xlu0 %2823
      %2826 = vst.msk [vmem:[#allocation2 + $0x194] sm:$0xc] %vm265, %v2824
      %v2827 = vld [vmem:[%s1201] sm:$0x3]
      %v2829 = vcombine.low %v2827, %v2827
      %v2831 = vunpack.c.l.s4 1983009808
      %v2832 = vunpack.c.0.s8 %v2831
      %v2833 = vlaneseq
      %v2834 = vshrl.u32 %v2833, 7
      %v2835 = vsub.s32 %v2832, %v2834
      %v2836 = vrot.slane %v2829, %v2835
      %2837 = vrot.lane.b32.xlu0 %v2836, 107
      %v2838 = vpop.permute.xlu0 %2837
      %2840 = vst.msk [vmem:[#allocation2 + $0x198] sm:$0xc] %vm265, %v2838
      %v2841 = vld [vmem:[%s2092] sm:$0x3]
      %v2843 = vcombine.low %v2841, %v2841
      %v2845 = vunpack.c.l.s4 1983009808
      %v2846 = vunpack.c.0.s8 %v2845
      %v2847 = vlaneseq
      %v2848 = vshrl.u32 %v2847, 7
      %v2849 = vsub.s32 %v2846, %v2848
      %v2850 = vrot.slane %v2843, %v2849
      %2851 = vrot.lane.b32.xlu0 %v2850, 107
      %v2852 = vpop.permute.xlu0 %2851
      %2854 = vst.msk [vmem:[#allocation2 + $0x19c] sm:$0xc] %vm265, %v2852
      %v2855 = vld [vmem:[%s234] sm:$0x3]
      %v2858 = vunpack.c.l.s4 1983009808
      %v2859 = vunpack.c.0.s8 %v2858
      %v2860 = vlaneseq
      %v2861 = vshrl.u32 %v2860, 7
      %v2862 = vsub.s32 %v2859, %v2861
      %v2863 = vrot.slane %v2855, %v2862
      %2864 = vrot.lane.b32.xlu0 %v2863, 106
      %v2865 = vpop.permute.xlu0 %2864
      %2867 = vst.msk [vmem:[#allocation2 + $0x1a0] sm:$0x3] %vm229, %v2865
      %v2868 = vld [vmem:[%s237] sm:$0x3]
      %v2871 = vunpack.c.l.s4 1983009808
      %v2872 = vunpack.c.0.s8 %v2871
      %v2873 = vlaneseq
      %v2874 = vshrl.u32 %v2873, 7
      %v2875 = vsub.s32 %v2872, %v2874
      %v2876 = vrot.slane %v2868, %v2875
      %2877 = vrot.lane.b32.xlu0 %v2876, 106
      %v2878 = vpop.permute.xlu0 %2877
      %2880 = vst.msk [vmem:[#allocation2 + $0x1a4] sm:$0x3] %vm229, %v2878
      %v2881 = vld [vmem:[%s240] sm:$0x3]
      %v2884 = vunpack.c.l.s4 1983009808
      %v2885 = vunpack.c.0.s8 %v2884
      %v2886 = vlaneseq
      %v2887 = vshrl.u32 %v2886, 7
      %v2888 = vsub.s32 %v2885, %v2887
      %v2889 = vrot.slane %v2881, %v2888
      %2890 = vrot.lane.b32.xlu0 %v2889, 106
      %v2891 = vpop.permute.xlu0 %2890
      %2893 = vst.msk [vmem:[#allocation2 + $0x1a8] sm:$0x3] %vm229, %v2891
      %v2894 = vld [vmem:[%s243] sm:$0x3]
      %v2897 = vunpack.c.l.s4 1983009808
      %v2898 = vunpack.c.0.s8 %v2897
      %v2899 = vlaneseq
      %v2900 = vshrl.u32 %v2899, 7
      %v2901 = vsub.s32 %v2898, %v2900
      %v2902 = vrot.slane %v2894, %v2901
      %2903 = vrot.lane.b32.xlu0 %v2902, 106
      %v2904 = vpop.permute.xlu0 %2903
      %2906 = vst.msk [vmem:[#allocation2 + $0x1ac] sm:$0x3] %vm229, %v2904
      %v2907 = vld [vmem:[%s246] sm:$0x3]
      %v2910 = vunpack.c.l.s4 1983009808
      %v2911 = vunpack.c.0.s8 %v2910
      %v2912 = vlaneseq
      %v2913 = vshrl.u32 %v2912, 7
      %v2914 = vsub.s32 %v2911, %v2913
      %v2915 = vrot.slane %v2907, %v2914
      %2916 = vrot.lane.b32.xlu0 %v2915, 106
      %v2917 = vpop.permute.xlu0 %2916
      %2919 = vst.msk [vmem:[#allocation2 + $0x1b0] sm:$0x3] %vm229, %v2917
      %v2920 = vld [vmem:[%s249] sm:$0x3]
      %v2923 = vunpack.c.l.s4 1983009808
      %v2924 = vunpack.c.0.s8 %v2923
      %v2925 = vlaneseq
      %v2926 = vshrl.u32 %v2925, 7
      %v2927 = vsub.s32 %v2924, %v2926
      %v2928 = vrot.slane %v2920, %v2927
      %2929 = vrot.lane.b32.xlu0 %v2928, 106
      %v2930 = vpop.permute.xlu0 %2929
      %2932 = vst.msk [vmem:[#allocation2 + $0x1b4] sm:$0x3] %vm229, %v2930
      %v2933 = vld [vmem:[%s1201] sm:$0x3]
      %v2936 = vunpack.c.l.s4 1983009808
      %v2937 = vunpack.c.0.s8 %v2936
      %v2938 = vlaneseq
      %v2939 = vshrl.u32 %v2938, 7
      %v2940 = vsub.s32 %v2937, %v2939
      %v2941 = vrot.slane %v2933, %v2940
      %2942 = vrot.lane.b32.xlu0 %v2941, 106
      %v2943 = vpop.permute.xlu0 %2942
      %2945 = vst.msk [vmem:[#allocation2 + $0x1b8] sm:$0x3] %vm229, %v2943
      %v2946 = vld [vmem:[%s2092] sm:$0x3]
      %v2949 = vunpack.c.l.s4 1983009808
      %v2950 = vunpack.c.0.s8 %v2949
      %v2951 = vlaneseq
      %v2952 = vshrl.u32 %v2951, 7
      %v2953 = vsub.s32 %v2950, %v2952
      %v2954 = vrot.slane %v2946, %v2953
      %2955 = vrot.lane.b32.xlu0 %v2954, 106
      %v2956 = vpop.permute.xlu0 %2955
      %2958 = vst.msk [vmem:[#allocation2 + $0x1bc] sm:$0x3] %vm229, %v2956
      %v2959 = vld [vmem:[%s1] sm:$0xf]
      %v2960 = vld [vmem:[#allocation2] sm:$0xff]
      %v2961 = vld [vmem:[#allocation2 + $0x8] sm:$0xff]
      %v2962 = vld [vmem:[#allocation2 + $0x10] sm:$0xff]
      %v2963 = vld [vmem:[#allocation2 + $0x18] sm:$0xff]
      %v2964 = vld [vmem:[#allocation2 + $0x20] sm:$0xff]
      %v2965 = vld [vmem:[#allocation2 + $0x28] sm:$0xff]
      %v2966 = vld [vmem:[#allocation2 + $0x30] sm:$0xff]
      %v2967 = vld [vmem:[#allocation2 + $0x38] sm:$0xff]
      %v2968 = vld [vmem:[#allocation2 + $0x40] sm:$0xff]
      %v2969 = vld [vmem:[#allocation2 + $0x48] sm:$0xff]
      %v2970 = vld [vmem:[#allocation2 + $0x50] sm:$0xff]
      %v2971 = vld [vmem:[#allocation2 + $0x58] sm:$0xff]
      %v2972 = vld [vmem:[#allocation2 + $0x60] sm:$0xff]
      %v2973 = vld [vmem:[#allocation2 + $0x68] sm:$0xff]
      %v2974 = vld [vmem:[#allocation2 + $0x70] sm:$0xff]
      %v2975 = vld [vmem:[#allocation2 + $0x78] sm:$0xff]
      %v2976 = vld [vmem:[#allocation2 + $0x80] sm:$0xff]
      %v2977 = vld [vmem:[#allocation2 + $0x88] sm:$0xff]
      %v2978 = vld [vmem:[#allocation2 + $0x90] sm:$0xff]
      %v2979 = vld [vmem:[#allocation2 + $0x98] sm:$0xff]
      %v2980 = vld [vmem:[#allocation2 + $0xa0] sm:$0xff]
      %v2981 = vld [vmem:[#allocation2 + $0xa8] sm:$0xff]
      %v2982 = vld [vmem:[#allocation2 + $0xb0] sm:$0xff]
      %v2983 = vld [vmem:[#allocation2 + $0xb8] sm:$0xff]
      %v2984 = vld [vmem:[#allocation2 + $0xc0] sm:$0xff]
      %v2985 = vld [vmem:[#allocation2 + $0xc8] sm:$0xff]
      %v2986 = vld [vmem:[#allocation2 + $0xd0] sm:$0xff]
      %v2987 = vld [vmem:[#allocation2 + $0xd8] sm:$0xff]
      %v2988 = vld [vmem:[#allocation2 + $0xe0] sm:$0xff]
      %v2989 = vld [vmem:[#allocation2 + $0xe8] sm:$0xff]
      %v2990 = vld [vmem:[#allocation2 + $0xf0] sm:$0xff]
      %v2991 = vld [vmem:[#allocation2 + $0xf8] sm:$0xff]
      %v2992 = vld [vmem:[#allocation2 + $0x100] sm:$0xff]
      %v2993 = vld [vmem:[#allocation2 + $0x108] sm:$0xff]
      %v2994 = vld [vmem:[#allocation2 + $0x110] sm:$0xff]
      %v2995 = vld [vmem:[#allocation2 + $0x118] sm:$0xff]
      %v2996 = vld [vmem:[#allocation2 + $0x120] sm:$0xff]
      %v2997 = vld [vmem:[#allocation2 + $0x128] sm:$0xff]
      %v2998 = vld [vmem:[#allocation2 + $0x130] sm:$0xff]
      %v2999 = vld [vmem:[#allocation2 + $0x138] sm:$0xff]
      %v3000 = vld [vmem:[#allocation2 + $0x140] sm:$0xff]
      %v3001 = vld [vmem:[#allocation2 + $0x148] sm:$0xff]
      %v3002 = vld [vmem:[#allocation2 + $0x150] sm:$0xff]
      %v3003 = vld [vmem:[#allocation2 + $0x158] sm:$0xff]
      %v3004 = vld [vmem:[#allocation2 + $0x160] sm:$0xff]
      %v3005 = vld [vmem:[#allocation2 + $0x168] sm:$0xff]
      %v3006 = vld [vmem:[#allocation2 + $0x170] sm:$0xff]
      %v3007 = vld [vmem:[#allocation2 + $0x178] sm:$0xff]
      %v3008 = vld [vmem:[#allocation2 + $0x180] sm:$0xff]
      %v3009 = vld [vmem:[#allocation2 + $0x188] sm:$0xff]
      %v3010 = vld [vmem:[#allocation2 + $0x190] sm:$0xff]
      %v3011 = vld [vmem:[#allocation2 + $0x198] sm:$0xff]
      %v3012 = vld [vmem:[#allocation2 + $0x1a0] sm:$0x33]
      %v3013 = vld [vmem:[#allocation2 + $0x1a8] sm:$0x33]
      %v3014 = vld [vmem:[#allocation2 + $0x1b0] sm:$0x33]
      %v3015 = vld [vmem:[#allocation2 + $0x1b8] sm:$0x33]
      %v3016 = vld [vmem:[%s2] sm:$0xff]
      %3018 = vset.pattern.permute.xlu0 0
      %3019 = vperm.xlu0 %3018, %v3016
      %v3020 = vpop.permute.xlu0 %3019
      %v3078 = vunpack.c.l.b16 %v2960
      %v3079 = vunpack.c.h.b16 %v2960
      %v3080 = vunpack.c.l.b16 %v2961
      %v3081 = vunpack.c.h.b16 %v2961
      %v3082 = vunpack.c.l.b16 %v2962
      %v3083 = vunpack.c.h.b16 %v2962
      %v3084 = vunpack.c.l.b16 %v2963
      %v3085 = vunpack.c.h.b16 %v2963
      %v3086 = vunpack.c.l.b16 %v2964
      %v3087 = vunpack.c.h.b16 %v2964
      %v3088 = vunpack.c.l.b16 %v2965
      %v3089 = vunpack.c.h.b16 %v2965
      %v3090 = vunpack.c.l.b16 %v2966
      %v3091 = vunpack.c.h.b16 %v2966
      %v3092 = vunpack.c.l.b16 %v2967
      %v3093 = vunpack.c.h.b16 %v2967
      %v3094 = vunpack.c.l.b16 %v2968
      %v3095 = vunpack.c.h.b16 %v2968
      %v3096 = vunpack.c.l.b16 %v2969
      %v3097 = vunpack.c.h.b16 %v2969
      %v3098 = vunpack.c.l.b16 %v2970
      %v3099 = vunpack.c.h.b16 %v2970
      %v3100 = vunpack.c.l.b16 %v2971
      %v3101 = vunpack.c.h.b16 %v2971
      %v3102 = vunpack.c.l.b16 %v2972
      %v3103 = vunpack.c.h.b16 %v2972
      %v3104 = vunpack.c.l.b16 %v2973
      %v3105 = vunpack.c.h.b16 %v2973
      %v3106 = vunpack.c.l.b16 %v2974
      %v3107 = vunpack.c.h.b16 %v2974
      %v3108 = vunpack.c.l.b16 %v2975
      %v3109 = vunpack.c.h.b16 %v2975
      %v3110 = vunpack.c.l.b16 %v2976
      %v3111 = vunpack.c.h.b16 %v2976
      %v3112 = vunpack.c.l.b16 %v2977
      %v3113 = vunpack.c.h.b16 %v2977
      %v3114 = vunpack.c.l.b16 %v2978
      %v3115 = vunpack.c.h.b16 %v2978
      %v3116 = vunpack.c.l.b16 %v2979
      %v3117 = vunpack.c.h.b16 %v2979
      %v3118 = vunpack.c.l.b16 %v2980
      %v3119 = vunpack.c.h.b16 %v2980
      %v3120 = vunpack.c.l.b16 %v2981
      %v3121 = vunpack.c.h.b16 %v2981
      %v3122 = vunpack.c.l.b16 %v2982
      %v3123 = vunpack.c.h.b16 %v2982
      %v3124 = vunpack.c.l.b16 %v2983
      %v3125 = vunpack.c.h.b16 %v2983
      %v3126 = vunpack.c.l.b16 %v2984
      %v3127 = vunpack.c.h.b16 %v2984
      %v3128 = vunpack.c.l.b16 %v2985
      %v3129 = vunpack.c.h.b16 %v2985
      %v3130 = vunpack.c.l.b16 %v2986
      %v3131 = vunpack.c.h.b16 %v2986
      %v3132 = vunpack.c.l.b16 %v2987
      %v3133 = vunpack.c.h.b16 %v2987
      %v3134 = vunpack.c.l.b16 %v2988
      %v3135 = vunpack.c.h.b16 %v2988
      %v3136 = vunpack.c.l.b16 %v2989
      %v3137 = vunpack.c.h.b16 %v2989
      %v3138 = vunpack.c.l.b16 %v2990
      %v3139 = vunpack.c.h.b16 %v2990
      %v3140 = vunpack.c.l.b16 %v2991
      %v3141 = vunpack.c.h.b16 %v2991
      %v3142 = vunpack.c.l.b16 %v2992
      %v3143 = vunpack.c.h.b16 %v2992
      %v3144 = vunpack.c.l.b16 %v2993
      %v3145 = vunpack.c.h.b16 %v2993
      %v3146 = vunpack.c.l.b16 %v2994
      %v3147 = vunpack.c.h.b16 %v2994
      %v3148 = vunpack.c.l.b16 %v2995
      %v3149 = vunpack.c.h.b16 %v2995
      %v3150 = vunpack.c.l.b16 %v2996
      %v3151 = vunpack.c.h.b16 %v2996
      %v3152 = vunpack.c.l.b16 %v2997
      %v3153 = vunpack.c.h.b16 %v2997
      %v3154 = vunpack.c.l.b16 %v2998
      %v3155 = vunpack.c.h.b16 %v2998
      %v3156 = vunpack.c.l.b16 %v2999
      %v3157 = vunpack.c.h.b16 %v2999
      %v3158 = vunpack.c.l.b16 %v3000
      %v3159 = vunpack.c.h.b16 %v3000
      %v3160 = vunpack.c.l.b16 %v3001
      %v3161 = vunpack.c.h.b16 %v3001
      %v3162 = vunpack.c.l.b16 %v3002
      %v3163 = vunpack.c.h.b16 %v3002
      %v3164 = vunpack.c.l.b16 %v3003
      %v3165 = vunpack.c.h.b16 %v3003
      %v3166 = vunpack.c.l.b16 %v3004
      %v3167 = vunpack.c.h.b16 %v3004
      %v3168 = vunpack.c.l.b16 %v3005
      %v3169 = vunpack.c.h.b16 %v3005
      %v3170 = vunpack.c.l.b16 %v3006
      %v3171 = vunpack.c.h.b16 %v3006
      %v3172 = vunpack.c.l.b16 %v3007
      %v3173 = vunpack.c.h.b16 %v3007
      %v3174 = vunpack.c.l.b16 %v3008
      %v3175 = vunpack.c.h.b16 %v3008
      %v3176 = vunpack.c.l.b16 %v3009
      %v3177 = vunpack.c.h.b16 %v3009
      %v3178 = vunpack.c.l.b16 %v3010
      %v3179 = vunpack.c.h.b16 %v3010
      %v3180 = vunpack.c.l.b16 %v3011
      %v3181 = vunpack.c.h.b16 %v3011
      %v3182 = vunpack.c.l.b16 %v3012
      %v3183 = vunpack.c.h.b16 %v3012
      %v3184 = vunpack.c.l.b16 %v3013
      %v3185 = vunpack.c.h.b16 %v3013
      %v3186 = vunpack.c.l.b16 %v3014
      %v3187 = vunpack.c.h.b16 %v3014
      %v3188 = vunpack.c.l.b16 %v3015
      %v3189 = vunpack.c.h.b16 %v3015
      %v3190 = vpack.c.b16 %v3086, %v3078
      %v3191 = vpack.c.b16 %v3087, %v3079
      %v3192 = vpack.c.b16 %v3088, %v3080
      %v3193 = vpack.c.b16 %v3089, %v3081
      %v3194 = vpack.c.b16 %v3090, %v3082
      %v3195 = vpack.c.b16 %v3091, %v3083
      %v3196 = vpack.c.b16 %v3092, %v3084
      %v3197 = vpack.c.b16 %v3093, %v3085
      %v3198 = vpack.c.b16 %v3102, %v3094
      %v3199 = vpack.c.b16 %v3103, %v3095
      %v3200 = vpack.c.b16 %v3104, %v3096
      %v3201 = vpack.c.b16 %v3105, %v3097
      %v3202 = vpack.c.b16 %v3106, %v3098
      %v3203 = vpack.c.b16 %v3107, %v3099
      %v3204 = vpack.c.b16 %v3108, %v3100
      %v3205 = vpack.c.b16 %v3109, %v3101
      %v3206 = vpack.c.b16 %v3118, %v3110
      %v3207 = vpack.c.b16 %v3119, %v3111
      %v3208 = vpack.c.b16 %v3120, %v3112
      %v3209 = vpack.c.b16 %v3121, %v3113
      %v3210 = vpack.c.b16 %v3122, %v3114
      %v3211 = vpack.c.b16 %v3123, %v3115
      %v3212 = vpack.c.b16 %v3124, %v3116
      %v3213 = vpack.c.b16 %v3125, %v3117
      %v3214 = vpack.c.b16 %v3134, %v3126
      %v3215 = vpack.c.b16 %v3135, %v3127
      %v3216 = vpack.c.b16 %v3136, %v3128
      %v3217 = vpack.c.b16 %v3137, %v3129
      %v3218 = vpack.c.b16 %v3138, %v3130
      %v3219 = vpack.c.b16 %v3139, %v3131
      %v3220 = vpack.c.b16 %v3140, %v3132
      %v3221 = vpack.c.b16 %v3141, %v3133
      %v3222 = vpack.c.b16 %v3150, %v3142
      %v3223 = vpack.c.b16 %v3151, %v3143
      %v3224 = vpack.c.b16 %v3152, %v3144
      %v3225 = vpack.c.b16 %v3153, %v3145
      %v3226 = vpack.c.b16 %v3154, %v3146
      %v3227 = vpack.c.b16 %v3155, %v3147
      %v3228 = vpack.c.b16 %v3156, %v3148
      %v3229 = vpack.c.b16 %v3157, %v3149
      %v3230 = vpack.c.b16 %v3166, %v3158
      %v3231 = vpack.c.b16 %v3167, %v3159
      %v3232 = vpack.c.b16 %v3168, %v3160
      %v3233 = vpack.c.b16 %v3169, %v3161
      %v3234 = vpack.c.b16 %v3170, %v3162
      %v3235 = vpack.c.b16 %v3171, %v3163
      %v3236 = vpack.c.b16 %v3172, %v3164
      %v3237 = vpack.c.b16 %v3173, %v3165
      %v3238 = vpack.c.b16 %v3182, %v3174
      %v3239 = vpack.c.b16 %v3183, %v3175
      %v3240 = vpack.c.b16 %v3184, %v3176
      %v3241 = vpack.c.b16 %v3185, %v3177
      %v3242 = vpack.c.b16 %v3186, %v3178
      %v3243 = vpack.c.b16 %v3187, %v3179
      %v3244 = vpack.c.b16 %v3188, %v3180
      %v3245 = vpack.c.b16 %v3189, %v3181
      %vm3294 = vcmask 883712
      %v3296 = vsel %vm3294, %v2959, 0
      %vm3298 = vcmask 1045504
      %v3300 = vsel %vm3298, %v3238, 0
      %v3303 = vsel %vm3298, %v3239, 0
      %v3306 = vsel %vm3298, %v3240, 0
      %v3309 = vsel %vm3298, %v3241, 0
      %v3312 = vsel %vm3298, %v3242, 0
      %v3315 = vsel %vm3298, %v3243, 0
      %v3318 = vsel %vm3298, %v3244, 0
      %v3321 = vsel %vm3298, %v3245, 0
      %3323 = vmatprep.subr.bf16.mxu0 %v3191
      %3324 = vmatpush1.bf16.msra.mxu0 %v3190
      %3325 = vmatprep.subr.bf16.mxu0 %v3199
      %3326 = vmatpush1.bf16.msra.mxu0 %v3198
      %3327 = vmatprep.subr.bf16.mxu0 %v3207
      %3328 = vmatpush1.bf16.msra.mxu0 %v3206
      %3329 = vmatprep.subr.bf16.mxu0 %v3215
      %3330 = vmatpush1.bf16.msra.mxu0 %v3214
      %3331 = vmatprep.subr.bf16.mxu0 %v3223
      %3332 = vmatpush1.bf16.msra.mxu0 %v3222
      %3333 = vmatprep.subr.bf16.mxu0 %v3231
      %3334 = vmatpush1.bf16.msra.mxu0 %v3230
      %3335 = vmatprep.subr.bf16.mxu0 %v3303
      %3336 = vmatpush1.bf16.msra.mxu0 %v3300
      %3337 = vmatprep.subr.bf16.mxu0 0
      %3338 = vmatpush1.bf16.msra.mxu0 0
      %3339 = vmatprep.subr.bf16.mxu0 0
      %3340 = vmatpush1.bf16.msra.mxu0 0
      %3341 = vmatprep.subr.bf16.mxu0 0
      %3342 = vmatpush1.bf16.msra.mxu0 0
      %3343 = vmatprep.subr.bf16.mxu0 0
      %3344 = vmatpush1.bf16.msra.mxu0 0
      %3345 = vmatprep.subr.bf16.mxu0 0
      %3346 = vmatpush1.bf16.msra.mxu0 0
      %3347 = vmatprep.subr.bf16.mxu0 0
      %3348 = vmatpush1.bf16.msra.mxu0 0
      %3349 = vmatprep.subr.bf16.mxu0 0
      %3350 = vmatpush1.bf16.msra.mxu0 0
      %3351 = vmatprep.subr.bf16.mxu0 0
      %3352 = vmatpush1.bf16.msra.mxu0 0
      %3353 = vmatprep.subr.bf16.mxu0 0
      %3354 = vmatpush1.bf16.msra.mxu0 0
      %3355 = vmatprep.mubr.bf16.mxu0 0
      %3356 = vmatmul.mubr.bf16.gmra.mrb[0].mxu0 %v3296
      %v3357 = vpop.f32.mrb[0].mxu0
      %v3358 = vadd.f32 %v3020, %v3357
      %v3359 = vpop.f32.mrb[0].mxu0
      %v3360 = vadd.f32 %v3020, %v3359
      %v3361 = vpop.f32.mrb[0].mxu0
      %v3362 = vpop.f32.mrb[0].mxu0
      %3363 = vdwg.mxu0
      %3364 = vmatprep.subr.bf16.mxu0 %v3193
      %3365 = vmatpush1.bf16.msra.mxu0 %v3192
      %3366 = vmatprep.subr.bf16.mxu0 %v3201
      %3367 = vmatpush1.bf16.msra.mxu0 %v3200
      %3368 = vmatprep.subr.bf16.mxu0 %v3209
      %3369 = vmatpush1.bf16.msra.mxu0 %v3208
      %3370 = vmatprep.subr.bf16.mxu0 %v3217
      %3371 = vmatpush1.bf16.msra.mxu0 %v3216
      %3372 = vmatprep.subr.bf16.mxu0 %v3225
      %3373 = vmatpush1.bf16.msra.mxu0 %v3224
      %3374 = vmatprep.subr.bf16.mxu0 %v3233
      %3375 = vmatpush1.bf16.msra.mxu0 %v3232
      %3376 = vmatprep.subr.bf16.mxu0 %v3309
      %3377 = vmatpush1.bf16.msra.mxu0 %v3306
      %3378 = vmatprep.subr.bf16.mxu0 0
      %3379 = vmatpush1.bf16.msra.mxu0 0
      %3380 = vmatprep.subr.bf16.mxu0 0
      %3381 = vmatpush1.bf16.msra.mxu0 0
      %3382 = vmatprep.subr.bf16.mxu0 0
      %3383 = vmatpush1.bf16.msra.mxu0 0
      %3384 = vmatprep.subr.bf16.mxu0 0
      %3385 = vmatpush1.bf16.msra.mxu0 0
      %3386 = vmatprep.subr.bf16.mxu0 0
      %3387 = vmatpush1.bf16.msra.mxu0 0
      %3388 = vmatprep.subr.bf16.mxu0 0
      %3389 = vmatpush1.bf16.msra.mxu0 0
      %3390 = vmatprep.subr.bf16.mxu0 0
      %3391 = vmatpush1.bf16.msra.mxu0 0
      %3392 = vmatprep.subr.bf16.mxu0 0
      %3393 = vmatpush1.bf16.msra.mxu0 0
      %3394 = vmatprep.subr.bf16.mxu0 0
      %3395 = vmatpush1.bf16.msra.mxu0 0
      %3396 = vmatprep.mubr.bf16.mxu0 0
      %3397 = vmatmul.mubr.bf16.gmra.mrb[0].mxu0 %v3296
      %v3398 = vpop.f32.mrb[0].mxu0
      %v3399 = vadd.f32 %v3020, %v3398
      %v3400 = vpop.f32.mrb[0].mxu0
      %v3401 = vadd.f32 %v3020, %v3400
      %v3402 = vpop.f32.mrb[0].mxu0
      %v3403 = vpop.f32.mrb[0].mxu0
      %3404 = vdwg.mxu0
      %3405 = vmatprep.subr.bf16.mxu0 %v3195
      %3406 = vmatpush1.bf16.msra.mxu0 %v3194
      %3407 = vmatprep.subr.bf16.mxu0 %v3203
      %3408 = vmatpush1.bf16.msra.mxu0 %v3202
      %3409 = vmatprep.subr.bf16.mxu0 %v3211
      %3410 = vmatpush1.bf16.msra.mxu0 %v3210
      %3411 = vmatprep.subr.bf16.mxu0 %v3219
      %3412 = vmatpush1.bf16.msra.mxu0 %v3218
      %3413 = vmatprep.subr.bf16.mxu0 %v3227
      %3414 = vmatpush1.bf16.msra.mxu0 %v3226
      %3415 = vmatprep.subr.bf16.mxu0 %v3235
      %3416 = vmatpush1.bf16.msra.mxu0 %v3234
      %3417 = vmatprep.subr.bf16.mxu0 %v3315
      %3418 = vmatpush1.bf16.msra.mxu0 %v3312
      %3419 = vmatprep.subr.bf16.mxu0 0
      %3420 = vmatpush1.bf16.msra.mxu0 0
      %3421 = vmatprep.subr.bf16.mxu0 0
      %3422 = vmatpush1.bf16.msra.mxu0 0
      %3423 = vmatprep.subr.bf16.mxu0 0
      %3424 = vmatpush1.bf16.msra.mxu0 0
      %3425 = vmatprep.subr.bf16.mxu0 0
      %3426 = vmatpush1.bf16.msra.mxu0 0
      %3427 = vmatprep.subr.bf16.mxu0 0
      %3428 = vmatpush1.bf16.msra.mxu0 0
      %3429 = vmatprep.subr.bf16.mxu0 0
      %3430 = vmatpush1.bf16.msra.mxu0 0
      %3431 = vmatprep.subr.bf16.mxu0 0
      %3432 = vmatpush1.bf16.msra.mxu0 0
      %3433 = vmatprep.subr.bf16.mxu0 0
      %3434 = vmatpush1.bf16.msra.mxu0 0
      %3435 = vmatprep.subr.bf16.mxu0 0
      %3436 = vmatpush1.bf16.msra.mxu0 0
      %3437 = vmatprep.mubr.bf16.mxu0 0
      %3438 = vmatmul.mubr.bf16.gmra.mrb[0].mxu0 %v3296
      %v3439 = vpop.f32.mrb[0].mxu0
      %v3440 = vadd.f32 %v3020, %v3439
      %v3441 = vpop.f32.mrb[0].mxu0
      %v3442 = vadd.f32 %v3020, %v3441
      %v3443 = vpop.f32.mrb[0].mxu0
      %v3444 = vpop.f32.mrb[0].mxu0
      %3445 = vdwg.mxu0
      %3446 = vmatprep.subr.bf16.mxu0 %v3197
      %3447 = vmatpush1.bf16.msra.mxu0 %v3196
      %3448 = vmatprep.subr.bf16.mxu0 %v3205
      %3449 = vmatpush1.bf16.msra.mxu0 %v3204
      %3450 = vmatprep.subr.bf16.mxu0 %v3213
      %3451 = vmatpush1.bf16.msra.mxu0 %v3212
      %3452 = vmatprep.subr.bf16.mxu0 %v3221
      %3453 = vmatpush1.bf16.msra.mxu0 %v3220
      %3454 = vmatprep.subr.bf16.mxu0 %v3229
      %3455 = vmatpush1.bf16.msra.mxu0 %v3228
      %3456 = vmatprep.subr.bf16.mxu0 %v3237
      %3457 = vmatpush1.bf16.msra.mxu0 %v3236
      %3458 = vmatprep.subr.bf16.mxu0 %v3321
      %3459 = vmatpush1.bf16.msra.mxu0 %v3318
      %3460 = vmatprep.subr.bf16.mxu0 0
      %3461 = vmatpush1.bf16.msra.mxu0 0
      %3462 = vmatprep.subr.bf16.mxu0 0
      %3463 = vmatpush1.bf16.msra.mxu0 0
      %3464 = vmatprep.subr.bf16.mxu0 0
      %3465 = vmatpush1.bf16.msra.mxu0 0
      %3466 = vmatprep.subr.bf16.mxu0 0
      %3467 = vmatpush1.bf16.msra.mxu0 0
      %3468 = vmatprep.subr.bf16.mxu0 0
      %3469 = vmatpush1.bf16.msra.mxu0 0
      %3470 = vmatprep.subr.bf16.mxu0 0
      %3471 = vmatpush1.bf16.msra.mxu0 0
      %3472 = vmatprep.subr.bf16.mxu0 0
      %3473 = vmatpush1.bf16.msra.mxu0 0
      %3474 = vmatprep.subr.bf16.mxu0 0
      %3475 = vmatpush1.bf16.msra.mxu0 0
      %3476 = vmatprep.subr.bf16.mxu0 0
      %3477 = vmatpush1.bf16.msra.mxu0 0
      %3478 = vmatprep.mubr.bf16.mxu0 0
      %3479 = vmatmul.mubr.bf16.gmra.mrb[0].mxu0 %v3296
      %v3480 = vpop.f32.mrb[0].mxu0
      %v3481 = vadd.f32 %v3020, %v3480
      %v3482 = vpop.f32.mrb[0].mxu0
      %v3483 = vadd.f32 %v3020, %v3482
      %v3484 = vpop.f32.mrb[0].mxu0
      %v3485 = vpop.f32.mrb[0].mxu0
      %3486 = vdwg.mxu0
      %v3487 = vmax.f32 %v3358, 0.0
      %v3488 = vmax.f32 %v3360, 0.0
      %v3489 = vmax.f32 %v3399, 0.0
      %v3490 = vmax.f32 %v3401, 0.0
      %v3491 = vmax.f32 %v3440, 0.0
      %v3492 = vmax.f32 %v3442, 0.0
      %v3493 = vmax.f32 %v3481, 0.0
      %v3494 = vmax.f32 %v3483, 0.0
      %3495 = vst [vmem:[%s170] sm:$0xff] %v3487
      %3496 = vst [vmem:[%s170 + $0x8] sm:$0xff] %v3488
      %3497 = vst [vmem:[%s170 + $0x10] sm:$0xff] %v3489
      %3498 = vst [vmem:[%s170 + $0x18] sm:$0xff] %v3490
      %3499 = vst [vmem:[%s170 + $0x20] sm:$0xff] %v3491
      %3500 = vst [vmem:[%s170 + $0x28] sm:$0xff] %v3492
      %3501 = vst [vmem:[%s170 + $0x30] sm:$0xff] %v3493
      %3502 = vst [vmem:[%s170 + $0x38] sm:$0xff] %v3494
      %p3503 = scmp.lt.s32.totalorder %s14, 1
      %s3504 = scalar_select %p3503, %s14, 1
      %s3505 = smul.addr %s3504, 8
      %s3506 = smul.addr %s3505, 8
      %s3507 = scalar_lea.vmem %s3, %s3506
      // Predicated region
      $region33: #{_cr_forward.1} parent=31 // pred_check
        %p3508 = pneg %p100
      $region34: #{_cr_forward.1} parent=31 // pred_check_branch
        %3510 = sbr.rel (%p3508) target = $region36
      $region35: #{_cr_forward.1} parent=31 // pred_region
        _
      $region36: #{_cr_forward.1} parent=31 // pred_fallthru
        _
    $region32: #{_cr_forward.1} parent=5 // pred_fallthru
      _
    %p3511 = scmp.le.s32.totalorder 2, %s9
    // Predicated region
    $region37: #{_cr_forward.1} parent=5 // pred_check
      %p3512 = pneg %p3511
    $region38: #{_cr_forward.1} parent=5 // pred_check_branch
      %3514 = sbr.rel (%p3512) target = $region40
    $region39: #{_cr_forward.1} parent=5 // pred_region
      %s3515 = ssub.s32 %s9, 2
      // Predicated region
      $region41: #{_cr_forward.1} parent=39 // pred_check
        %p3516 = pneg %p106
      $region42: #{_cr_forward.1} parent=39 // pred_check_branch
        %3518 = sbr.rel (%p3516) target = $region44
      $region43: #{_cr_forward.1} parent=39 // pred_region
        %p3519 = scmp.lt.s32.totalorder %s15, 1
        %s3520 = scalar_select %p3519, %s15, 1
        %s3521 = smul.addr %s3520, 8
        %s3522 = smul.addr %s3521, 8
        %s3523 = scalar_lea.vmem %s3, %s3522
      $region44: #{_cr_forward.1} parent=39 // pred_fallthru
        _
    $region40: #{_cr_forward.1} parent=5 // pred_fallthru
      _
  $region6: #{_cr_forward.1} parent=0 // loop_footer
    %s13 = sadd.s32 1, %s9
  $region7: #{_cr_forward.1} parent=0 // loop_footer_branch
    %8 = sbr.rel target = $region3
  $region8: #{_cr_forward.1} parent=0 // loop_exit
    _

</llo_original>
